<compile_context>
chip_gen: v7x
topology: tpu7x:2x2x1
jax: 0.10.0
libtpu: 0.0.40
codegen_flags: <defaults>
</compile_context>

<pallas_src>
import jax
import jax.numpy as jnp
from jax import lax
from jax.experimental import pallas as pl
from jax.experimental.pallas import tpu as pltpu


# ---------------------------------------------------------------------------
# Kernel
# ---------------------------------------------------------------------------
def _conv_block(x, t_ref, scale_ref, shift_ref):
    """One Conv3x3(SAME) + folded-BN + MaxPool2x2 + ReLU block.

    x:         (H, W*Cin) float32, lane-dense rows.
    t_ref:     (3, 2, W*Cin, (W//2)*Cout) band matrices, indexed [kh, parity].
    scale_ref: (1, (W//2)*Cout) folded BN scale, tiled per output column.
    shift_ref: (1, (W//2)*Cout) folded conv-bias + BN shift, tiled per column.
    Returns    (H//2, (W//2)*Cout) float32.
    """
    H = x.shape[0]

    # Constant +/-1 row-shift matrices implement the H-direction zero padding.
    r = lax.broadcasted_iota(jnp.int32, (H, H), 0)
    c = lax.broadcasted_iota(jnp.int32, (H, H), 1)
    x_dn = jnp.dot((r == c + 1).astype(jnp.float32), x,
                   preferred_element_type=jnp.float32)   # row h -> x[h-1], row 0 -> 0
    x_up = jnp.dot((c == r + 1).astype(jnp.float32), x,
                   preferred_element_type=jnp.float32)   # row h -> x[h+1], last  -> 0
    rows = (x_dn, x, x_up)

    def conv_cols(parity):
        acc = jnp.dot(rows[0], t_ref[0, parity], preferred_element_type=jnp.float32)
        acc = acc + jnp.dot(rows[1], t_ref[1, parity],
                            preferred_element_type=jnp.float32)
        acc = acc + jnp.dot(rows[2], t_ref[2, parity],
                            preferred_element_type=jnp.float32)
        return acc * scale_ref[...] + shift_ref[...]     # conv bias + BN folded

    even = conv_cols(0)                                  # conv output columns 0,2,4,...
    odd = conv_cols(1)                                   # conv output columns 1,3,5,...
    col = jnp.maximum(even, odd)                         # 2x2 max-pool over width
    t = col.reshape(H // 2, 2, col.shape[-1])
    pooled = jnp.maximum(t[:, 0], t[:, 1])               # 2x2 max-pool over height
    return jnp.maximum(pooled, 0.0)                      # ReLU
    # TODO(synk): training-mode Dropout(0.1) masks and training-mode BatchNorm
    # batch statistics are stochastic/mode-dependent; eval-mode semantics used.


def _convnet_kernel(x_ref, *refs):
    """Fused forward pass for one batch element.

    refs = [T_1, scale_1, shift_1, ..., T_L, scale_L, shift_L, fc_w, fc_b, out]
    """
    o_ref = refs[-1]
    fc_b_ref = refs[-2]
    fc_w_ref = refs[-3]
    layer_refs = refs[:-3]

    x = x_ref[0]                                         # (H, W*Cin), lane-dense
    for i in range(0, len(layer_refs), 3):               # static unroll over layers
        x = _conv_block(x, layer_refs[i], layer_refs[i + 1], layer_refs[i + 2])

    # nn.Flatten + nn.Linear (spatial is 1x1 here, so x is already (1, C)).
    logits = (jnp.dot(x, fc_w_ref[...], preferred_element_type=jnp.float32)
              + fc_b_ref[...])
    o_ref[0] = logits.astype(o_ref.dtype)


# ---------------------------------------------------------------------------
# Host-side parameter preparation
# ---------------------------------------------------------------------------
def _make_band_mats(w_hwio, width):
    """Banded matrices turning a 3x3 SAME conv into row matmuls on a lane-dense
    (H, width*Cin) layout.

    Returns (3, 2, width*Cin, (width//2)*Cout): entry [kh, p] maps input row
    (h + kh - 1) to the parity-p output columns of output row h.  The clipped
    bands encode the W-direction zero padding exactly."""
    _, _, cin, cout = w_hwio.shape
    w_out = jnp.arange(width)
    w_in = jnp.arange(width)
    kw = jnp.arange(3)
    # ind[kw, w_out, w_in] = 1 iff w_in == w_out + kw - 1  (out of range -> 0)
    ind = (w_in[None, None, :] == (w_out[None, :, None] + kw[:, None, None] - 1))
    ind = ind.astype(jnp.float32)
    # full[kh, w_in, cin, w_out, cout]
    full = jnp.einsum("xov,hxcd->hvcod", ind, w_hwio.astype(jnp.float32),
                      precision=lax.Precision.HIGHEST)
    even = full[:, :, :, 0::2, :]
    odd = full[:, :, :, 1::2, :]
    stacked = jnp.stack([even, odd], axis=1)             # (3, 2, W, Cin, W//2, Cout)
    return stacked.reshape(3, 2, width * cin, (width // 2) * cout)


def convnet_forward(x_nchw, conv_params, fc_w, fc_b):
    """conv_params: list of (w_hwio(3,3,Cin,Cout), bias(Cout,), bn_scale, bn_shift)."""
    x = jnp.transpose(x_nchw, (0, 2, 3, 1)).astype(jnp.float32)   # NCHW -> NHWC
    N, H, W, Cin = x.shape
    x_rows = x.reshape(N, H, W * Cin)                    # lane-dense row layout

    inputs = [x_rows]
    in_specs = [pl.BlockSpec((1, H, W * Cin), lambda n: (n, 0, 0))]

    width = W
    for (w_hwio, b, scale, shift) in conv_params:
        T = _make_band_mats(w_hwio, width)
        sc = jnp.tile(scale, width // 2).reshape(1, -1).astype(jnp.float32)
        # Fold the conv bias into the BN shift:  (y + b)*s + t  ==  y*s + (b*s + t)
        sh = jnp.tile(b * scale + shift, width // 2).reshape(1, -1).astype(jnp.float32)
        for a in (T, sc, sh):
            inputs.append(a)
            in_specs.append(pl.BlockSpec(a.shape, lambda n, _z=(0,) * a.ndim: _z))
        width //= 2

    num_classes = fc_w.shape[-1]
    inputs += [fc_w.astype(jnp.float32),
               fc_b.reshape(1, num_classes).astype(jnp.float32)]
    in_specs += [pl.BlockSpec(fc_w.shape, lambda n: (0, 0)),
                 pl.BlockSpec((1, num_classes), lambda n: (0, 0))]

    out = pl.pallas_call(
        _convnet_kernel,
        out_shape=jax.ShapeDtypeStruct((N, 1, num_classes), jnp.float32),
        grid=(N,),
        in_specs=in_specs,
        out_specs=pl.BlockSpec((1, 1, num_classes), lambda n: (n, 0, 0)),
        compiler_params=pltpu.CompilerParams(dimension_semantics=("parallel",)),
    )(*inputs)
    return out.reshape(N, num_classes)


# ---------------------------------------------------------------------------
# Pure-JAX reference for correctness checking
# ---------------------------------------------------------------------------
def reference_forward(x_nchw, conv_params, fc_w, fc_b):
    x = jnp.transpose(x_nchw, (0, 2, 3, 1))
    for (w, b, scale, shift) in conv_params:
        y = lax.conv_general_dilated(
            x, w, window_strides=(1, 1), padding="SAME",
            dimension_numbers=("NHWC", "HWIO", "NHWC"),
            precision=lax.Precision.HIGHEST)
        y = y + b
        y = y * scale + shift
        y = lax.reduce_window(y, -jnp.inf, lax.max,
                              (1, 2, 2, 1), (1, 2, 2, 1), "VALID")
        x = jnp.maximum(y, 0.0)
    x = x.reshape(x.shape[0], -1)
    return x @ fc_w + fc_b


if __name__ == "__main__":
    key = jax.random.PRNGKey(0)
    N, input_size, spatial = 2, 3, 16
    # 4 conv blocks (channels 8,16,32,32): spatial 16->8->4->2->1, so
    # Flatten gives 32*1*1 = hidden_layers[-1], matching nn.Linear(hidden_layers[-1], 10).
    hidden_layers = [8, 16, 32, 32, 32]
    num_classes = 10
    eps = 1e-5

    key, k_x = jax.random.split(key)
    x = jax.random.normal(k_x, (N, input_size, spatial, spatial), jnp.float32)

    conv_params = []
    prev = input_size
    for c in hidden_layers[:-1]:
        key, kw, kb = jax.random.split(key, 3)
        w = 0.1 * jax.random.normal(kw, (3, 3, prev, c), jnp.float32)   # HWIO
        b = 0.05 * jax.random.normal(kb, (c,), jnp.float32)
        # BatchNorm2d with fresh init (gamma=1, beta=0, running_mean=0,
        # running_var=1), eval mode, folded into an affine scale/shift.
        scale = jnp.ones((c,), jnp.float32) / jnp.sqrt(1.0 + eps)
        shift = jnp.zeros((c,), jnp.float32)
        conv_params.append((w, b, scale, shift))
        prev = c

    key, kw, kb = jax.random.split(key, 3)
    fc_w = 0.1 * jax.random.normal(kw, (hidden_layers[-1], num_classes), jnp.float32)
    fc_b = 0.05 * jax.random.normal(kb, (num_classes,), jnp.float32)

    out = convnet_forward(x, conv_params, fc_w, fc_b)
    out = jax.block_until_ready(out)

    ref = reference_forward(x, conv_params, fc_w, fc_b)
    assert out.shape == (N, num_classes)
    assert bool(jnp.all(jnp.isfinite(out)))
    assert bool(jnp.allclose(out, ref, rtol=1e-2, atol=1e-2))
    print("KERNEL_OK")
</pallas_src>

<mosaic_0001>
module attributes {stable_mosaic.version = 11 : i64} {
  func.func @_convnet_kernel(%arg0: i32, %arg1: memref<1x16x48xf32, #tpu.memory_space<vmem>>, %arg2: memref<3x2x48x64xf32, #tpu.memory_space<vmem>>, %arg3: memref<1x64xf32, #tpu.memory_space<vmem>>, %arg4: memref<1x64xf32, #tpu.memory_space<vmem>>, %arg5: memref<3x2x64x64xf32, #tpu.memory_space<vmem>>, %arg6: memref<1x64xf32, #tpu.memory_space<vmem>>, %arg7: memref<1x64xf32, #tpu.memory_space<vmem>>, %arg8: memref<3x2x64x64xf32, #tpu.memory_space<vmem>>, %arg9: memref<1x64xf32, #tpu.memory_space<vmem>>, %arg10: memref<1x64xf32, #tpu.memory_space<vmem>>, %arg11: memref<3x2x64x32xf32, #tpu.memory_space<vmem>>, %arg12: memref<1x32xf32, #tpu.memory_space<vmem>>, %arg13: memref<1x32xf32, #tpu.memory_space<vmem>>, %arg14: memref<32x10xf32, #tpu.memory_space<vmem>>, %arg15: memref<1x10xf32, #tpu.memory_space<vmem>>, %arg16: memref<1x1x10xf32, #tpu.memory_space<vmem>>) attributes {dimension_semantics = [#tpu.dimension_semantics<parallel>], iteration_bounds = array<i64: 2>, scalar_prefetch = 0 : i64, scratch_operands = 0 : i64, tpu.core_type = #tpu.core_type<tc>, window_params = [{transform_indices = @transform_0, window_bounds = array<i64: 1, 16, 48>}, {pipeline_mode = #tpu.pipeline_mode<synchronous>, transform_indices = @transform_1, window_bounds = array<i64: 3, 2, 48, 64>}, {pipeline_mode = #tpu.pipeline_mode<synchronous>, transform_indices = @transform_2, window_bounds = array<i64: 1, 64>}, {pipeline_mode = #tpu.pipeline_mode<synchronous>, transform_indices = @transform_3, window_bounds = array<i64: 1, 64>}, {pipeline_mode = #tpu.pipeline_mode<synchronous>, transform_indices = @transform_4, window_bounds = array<i64: 3, 2, 64, 64>}, {pipeline_mode = #tpu.pipeline_mode<synchronous>, transform_indices = @transform_5, window_bounds = array<i64: 1, 64>}, {pipeline_mode = #tpu.pipeline_mode<synchronous>, transform_indices = @transform_6, window_bounds = array<i64: 1, 64>}, {pipeline_mode = #tpu.pipeline_mode<synchronous>, transform_indices = @transform_7, window_bounds = array<i64: 3, 2, 64, 64>}, {pipeline_mode = #tpu.pipeline_mode<synchronous>, transform_indices = @transform_8, window_bounds = array<i64: 1, 64>}, {pipeline_mode = #tpu.pipeline_mode<synchronous>, transform_indices = @transform_9, window_bounds = array<i64: 1, 64>}, {pipeline_mode = #tpu.pipeline_mode<synchronous>, transform_indices = @transform_10, window_bounds = array<i64: 3, 2, 64, 32>}, {pipeline_mode = #tpu.pipeline_mode<synchronous>, transform_indices = @transform_11, window_bounds = array<i64: 1, 32>}, {pipeline_mode = #tpu.pipeline_mode<synchronous>, transform_indices = @transform_12, window_bounds = array<i64: 1, 32>}, {pipeline_mode = #tpu.pipeline_mode<synchronous>, transform_indices = @transform_13, window_bounds = array<i64: 32, 10>}, {pipeline_mode = #tpu.pipeline_mode<synchronous>, transform_indices = @transform_14, window_bounds = array<i64: 1, 10>}, {transform_indices = @transform_15, window_bounds = array<i64: 1, 1, 10>}]} {
    %c0 = arith.constant 0 : index
    %c0_0 = arith.constant 0 : index
    %c0_1 = arith.constant 0 : index
    %0 = vector.load %arg1[%c0, %c0_0, %c0_1] : memref<1x16x48xf32, #tpu.memory_space<vmem>>, vector<1x16x48xf32>
    %1 = vector.shape_cast %0 : vector<1x16x48xf32> to vector<16x48xf32>
    %2 = tpu.iota {dimensions = array<i32: 0>} : vector<16x16xi32>
    %3 = tpu.iota {dimensions = array<i32: 1>} : vector<16x16xi32>
    %c1_i32 = arith.constant 1 : i32
    %4 = vector.broadcast %c1_i32 : i32 to vector<16x16xi32>
    %5 = arith.addi %3, %4 : vector<16x16xi32>
    %6 = arith.cmpi eq, %2, %5 : vector<16x16xi32>
    %7 = arith.extui %6 : vector<16x16xi1> to vector<16x16xi32>
    %8 = arith.sitofp %7 : vector<16x16xi32> to vector<16x16xf32>
    %cst = arith.constant dense<0.000000e+00> : vector<16x48xf32>
    %9 = tpu.matmul %8, %1, %cst {dimension_numbers = #tpu.dot_dimension_numbers<[1], [0], [0], [1], [0, 0, 1, 1], [], []>} : vector<16x16xf32>, vector<16x48xf32>, vector<16x48xf32> -> vector<16x48xf32>
    %c1_i32_2 = arith.constant 1 : i32
    %10 = vector.broadcast %c1_i32_2 : i32 to vector<16x16xi32>
    %11 = arith.addi %2, %10 : vector<16x16xi32>
    %12 = arith.cmpi eq, %3, %11 : vector<16x16xi32>
    %13 = arith.extui %12 : vector<16x16xi1> to vector<16x16xi32>
    %14 = arith.sitofp %13 : vector<16x16xi32> to vector<16x16xf32>
    %cst_3 = arith.constant dense<0.000000e+00> : vector<16x48xf32>
    %15 = tpu.matmul %14, %1, %cst_3 {dimension_numbers = #tpu.dot_dimension_numbers<[1], [0], [0], [1], [0, 0, 1, 1], [], []>} : vector<16x16xf32>, vector<16x48xf32>, vector<16x48xf32> -> vector<16x48xf32>
    %c0_4 = arith.constant 0 : index
    %c0_5 = arith.constant 0 : index
    %c0_6 = arith.constant 0 : index
    %c0_7 = arith.constant 0 : index
    %16 = vector.load %arg2[%c0_4, %c0_5, %c0_6, %c0_7] : memref<3x2x48x64xf32, #tpu.memory_space<vmem>>, vector<1x1x48x64xf32>
    %17 = vector.shape_cast %16 : vector<1x1x48x64xf32> to vector<48x64xf32>
    %cst_8 = arith.constant dense<0.000000e+00> : vector<16x64xf32>
    %18 = tpu.matmul %9, %17, %cst_8 {dimension_numbers = #tpu.dot_dimension_numbers<[1], [0], [0], [1], [0, 0, 1, 1], [], []>} : vector<16x48xf32>, vector<48x64xf32>, vector<16x64xf32> -> vector<16x64xf32>
    %c1 = arith.constant 1 : index
    %c0_9 = arith.constant 0 : index
    %c0_10 = arith.constant 0 : index
    %c0_11 = arith.constant 0 : index
    %19 = vector.load %arg2[%c1, %c0_9, %c0_10, %c0_11] : memref<3x2x48x64xf32, #tpu.memory_space<vmem>>, vector<1x1x48x64xf32>
    %20 = vector.shape_cast %19 : vector<1x1x48x64xf32> to vector<48x64xf32>
    %cst_12 = arith.constant dense<0.000000e+00> : vector<16x64xf32>
    %21 = tpu.matmul %1, %20, %cst_12 {dimension_numbers = #tpu.dot_dimension_numbers<[1], [0], [0], [1], [0, 0, 1, 1], [], []>} : vector<16x48xf32>, vector<48x64xf32>, vector<16x64xf32> -> vector<16x64xf32>
    %22 = arith.addf %18, %21 : vector<16x64xf32>
    %c2 = arith.constant 2 : index
    %c0_13 = arith.constant 0 : index
    %c0_14 = arith.constant 0 : index
    %c0_15 = arith.constant 0 : index
    %23 = vector.load %arg2[%c2, %c0_13, %c0_14, %c0_15] : memref<3x2x48x64xf32, #tpu.memory_space<vmem>>, vector<1x1x48x64xf32>
    %24 = vector.shape_cast %23 : vector<1x1x48x64xf32> to vector<48x64xf32>
    %cst_16 = arith.constant dense<0.000000e+00> : vector<16x64xf32>
    %25 = tpu.matmul %15, %24, %cst_16 {dimension_numbers = #tpu.dot_dimension_numbers<[1], [0], [0], [1], [0, 0, 1, 1], [], []>} : vector<16x48xf32>, vector<48x64xf32>, vector<16x64xf32> -> vector<16x64xf32>
    %26 = arith.addf %22, %25 : vector<16x64xf32>
    %c0_17 = arith.constant 0 : index
    %c0_18 = arith.constant 0 : index
    %27 = vector.load %arg3[%c0_17, %c0_18] : memref<1x64xf32, #tpu.memory_space<vmem>>, vector<1x64xf32>
    %28 = vector.broadcast %27 : vector<1x64xf32> to vector<16x64xf32>
    %29 = arith.mulf %26, %28 : vector<16x64xf32>
    %c0_19 = arith.constant 0 : index
    %c0_20 = arith.constant 0 : index
    %30 = vector.load %arg4[%c0_19, %c0_20] : memref<1x64xf32, #tpu.memory_space<vmem>>, vector<1x64xf32>
    %31 = vector.broadcast %30 : vector<1x64xf32> to vector<16x64xf32>
    %32 = arith.addf %29, %31 : vector<16x64xf32>
    %c0_21 = arith.constant 0 : index
    %c1_22 = arith.constant 1 : index
    %c0_23 = arith.constant 0 : index
    %c0_24 = arith.constant 0 : index
    %33 = vector.load %arg2[%c0_21, %c1_22, %c0_23, %c0_24] : memref<3x2x48x64xf32, #tpu.memory_space<vmem>>, vector<1x1x48x64xf32>
    %34 = vector.shape_cast %33 : vector<1x1x48x64xf32> to vector<48x64xf32>
    %cst_25 = arith.constant dense<0.000000e+00> : vector<16x64xf32>
    %35 = tpu.matmul %9, %34, %cst_25 {dimension_numbers = #tpu.dot_dimension_numbers<[1], [0], [0], [1], [0, 0, 1, 1], [], []>} : vector<16x48xf32>, vector<48x64xf32>, vector<16x64xf32> -> vector<16x64xf32>
    %c1_26 = arith.constant 1 : index
    %c1_27 = arith.constant 1 : index
    %c0_28 = arith.constant 0 : index
    %c0_29 = arith.constant 0 : index
    %36 = vector.load %arg2[%c1_26, %c1_27, %c0_28, %c0_29] : memref<3x2x48x64xf32, #tpu.memory_space<vmem>>, vector<1x1x48x64xf32>
    %37 = vector.shape_cast %36 : vector<1x1x48x64xf32> to vector<48x64xf32>
    %cst_30 = arith.constant dense<0.000000e+00> : vector<16x64xf32>
    %38 = tpu.matmul %1, %37, %cst_30 {dimension_numbers = #tpu.dot_dimension_numbers<[1], [0], [0], [1], [0, 0, 1, 1], [], []>} : vector<16x48xf32>, vector<48x64xf32>, vector<16x64xf32> -> vector<16x64xf32>
    %39 = arith.addf %35, %38 : vector<16x64xf32>
    %c2_31 = arith.constant 2 : index
    %c1_32 = arith.constant 1 : index
    %c0_33 = arith.constant 0 : index
    %c0_34 = arith.constant 0 : index
    %40 = vector.load %arg2[%c2_31, %c1_32, %c0_33, %c0_34] : memref<3x2x48x64xf32, #tpu.memory_space<vmem>>, vector<1x1x48x64xf32>
    %41 = vector.shape_cast %40 : vector<1x1x48x64xf32> to vector<48x64xf32>
    %cst_35 = arith.constant dense<0.000000e+00> : vector<16x64xf32>
    %42 = tpu.matmul %15, %41, %cst_35 {dimension_numbers = #tpu.dot_dimension_numbers<[1], [0], [0], [1], [0, 0, 1, 1], [], []>} : vector<16x48xf32>, vector<48x64xf32>, vector<16x64xf32> -> vector<16x64xf32>
    %43 = arith.addf %39, %42 : vector<16x64xf32>
    %c0_36 = arith.constant 0 : index
    %c0_37 = arith.constant 0 : index
    %44 = vector.load %arg3[%c0_36, %c0_37] : memref<1x64xf32, #tpu.memory_space<vmem>>, vector<1x64xf32>
    %45 = vector.broadcast %44 : vector<1x64xf32> to vector<16x64xf32>
    %46 = arith.mulf %43, %45 : vector<16x64xf32>
    %c0_38 = arith.constant 0 : index
    %c0_39 = arith.constant 0 : index
    %47 = vector.load %arg4[%c0_38, %c0_39] : memref<1x64xf32, #tpu.memory_space<vmem>>, vector<1x64xf32>
    %48 = vector.broadcast %47 : vector<1x64xf32> to vector<16x64xf32>
    %49 = arith.addf %46, %48 : vector<16x64xf32>
    %50 = arith.maximumf %32, %49 : vector<16x64xf32>
    %51 = vector.shape_cast %50 : vector<16x64xf32> to vector<8x2x64xf32>
    %52 = vector.extract_strided_slice %51 {offsets = [0, 0, 0], sizes = [8, 1, 64], strides = [1, 1, 1]} : vector<8x2x64xf32> to vector<8x1x64xf32>
    %53 = vector.shape_cast %52 : vector<8x1x64xf32> to vector<8x64xf32>
    %54 = vector.extract_strided_slice %51 {offsets = [0, 1, 0], sizes = [8, 1, 64], strides = [1, 1, 1]} : vector<8x2x64xf32> to vector<8x1x64xf32>
    %55 = vector.shape_cast %54 : vector<8x1x64xf32> to vector<8x64xf32>
    %56 = arith.maximumf %53, %55 : vector<8x64xf32>
    %cst_40 = arith.constant 0.000000e+00 : f32
    %57 = vector.broadcast %cst_40 : f32 to vector<8x64xf32>
    %58 = arith.maximumf %56, %57 : vector<8x64xf32>
    %59 = tpu.iota {dimensions = array<i32: 0>} : vector<8x8xi32>
    %60 = tpu.iota {dimensions = array<i32: 1>} : vector<8x8xi32>
    %c1_i32_41 = arith.constant 1 : i32
    %61 = vector.broadcast %c1_i32_41 : i32 to vector<8x8xi32>
    %62 = arith.addi %60, %61 : vector<8x8xi32>
    %63 = arith.cmpi eq, %59, %62 : vector<8x8xi32>
    %64 = arith.extui %63 : vector<8x8xi1> to vector<8x8xi32>
    %65 = arith.sitofp %64 : vector<8x8xi32> to vector<8x8xf32>
    %cst_42 = arith.constant dense<0.000000e+00> : vector<8x64xf32>
    %66 = tpu.matmul %65, %58, %cst_42 {dimension_numbers = #tpu.dot_dimension_numbers<[1], [0], [0], [1], [0, 0, 1, 1], [], []>} : vector<8x8xf32>, vector<8x64xf32>, vector<8x64xf32> -> vector<8x64xf32>
    %c1_i32_43 = arith.constant 1 : i32
    %67 = vector.broadcast %c1_i32_43 : i32 to vector<8x8xi32>
    %68 = arith.addi %59, %67 : vector<8x8xi32>
    %69 = arith.cmpi eq, %60, %68 : vector<8x8xi32>
    %70 = arith.extui %69 : vector<8x8xi1> to vector<8x8xi32>
    %71 = arith.sitofp %70 : vector<8x8xi32> to vector<8x8xf32>
    %cst_44 = arith.constant dense<0.000000e+00> : vector<8x64xf32>
    %72 = tpu.matmul %71, %58, %cst_44 {dimension_numbers = #tpu.dot_dimension_numbers<[1], [0], [0], [1], [0, 0, 1, 1], [], []>} : vector<8x8xf32>, vector<8x64xf32>, vector<8x64xf32> -> vector<8x64xf32>
    %c0_45 = arith.constant 0 : index
    %c0_46 = arith.constant 0 : index
    %c0_47 = arith.constant 0 : index
    %c0_48 = arith.constant 0 : index
    %73 = vector.load %arg5[%c0_45, %c0_46, %c0_47, %c0_48] : memref<3x2x64x64xf32, #tpu.memory_space<vmem>>, vector<1x1x64x64xf32>
    %74 = vector.shape_cast %73 : vector<1x1x64x64xf32> to vector<64x64xf32>
    %cst_49 = arith.constant dense<0.000000e+00> : vector<8x64xf32>
    %75 = tpu.matmul %66, %74, %cst_49 {dimension_numbers = #tpu.dot_dimension_numbers<[1], [0], [0], [1], [0, 0, 1, 1], [], []>} : vector<8x64xf32>, vector<64x64xf32>, vector<8x64xf32> -> vector<8x64xf32>
    %c1_50 = arith.constant 1 : index
    %c0_51 = arith.constant 0 : index
    %c0_52 = arith.constant 0 : index
    %c0_53 = arith.constant 0 : index
    %76 = vector.load %arg5[%c1_50, %c0_51, %c0_52, %c0_53] : memref<3x2x64x64xf32, #tpu.memory_space<vmem>>, vector<1x1x64x64xf32>
    %77 = vector.shape_cast %76 : vector<1x1x64x64xf32> to vector<64x64xf32>
    %cst_54 = arith.constant dense<0.000000e+00> : vector<8x64xf32>
    %78 = tpu.matmul %58, %77, %cst_54 {dimension_numbers = #tpu.dot_dimension_numbers<[1], [0], [0], [1], [0, 0, 1, 1], [], []>} : vector<8x64xf32>, vector<64x64xf32>, vector<8x64xf32> -> vector<8x64xf32>
    %79 = arith.addf %75, %78 : vector<8x64xf32>
    %c2_55 = arith.constant 2 : index
    %c0_56 = arith.constant 0 : index
    %c0_57 = arith.constant 0 : index
    %c0_58 = arith.constant 0 : index
    %80 = vector.load %arg5[%c2_55, %c0_56, %c0_57, %c0_58] : memref<3x2x64x64xf32, #tpu.memory_space<vmem>>, vector<1x1x64x64xf32>
    %81 = vector.shape_cast %80 : vector<1x1x64x64xf32> to vector<64x64xf32>
    %cst_59 = arith.constant dense<0.000000e+00> : vector<8x64xf32>
    %82 = tpu.matmul %72, %81, %cst_59 {dimension_numbers = #tpu.dot_dimension_numbers<[1], [0], [0], [1], [0, 0, 1, 1], [], []>} : vector<8x64xf32>, vector<64x64xf32>, vector<8x64xf32> -> vector<8x64xf32>
    %83 = arith.addf %79, %82 : vector<8x64xf32>
    %c0_60 = arith.constant 0 : index
    %c0_61 = arith.constant 0 : index
    %84 = vector.load %arg6[%c0_60, %c0_61] : memref<1x64xf32, #tpu.memory_space<vmem>>, vector<1x64xf32>
    %85 = vector.broadcast %84 : vector<1x64xf32> to vector<8x64xf32>
    %86 = arith.mulf %83, %85 : vector<8x64xf32>
    %c0_62 = arith.constant 0 : index
    %c0_63 = arith.constant 0 : index
    %87 = vector.load %arg7[%c0_62, %c0_63] : memref<1x64xf32, #tpu.memory_space<vmem>>, vector<1x64xf32>
    %88 = vector.broadcast %87 : vector<1x64xf32> to vector<8x64xf32>
    %89 = arith.addf %86, %88 : vector<8x64xf32>
    %c0_64 = arith.constant 0 : index
    %c1_65 = arith.constant 1 : index
    %c0_66 = arith.constant 0 : index
    %c0_67 = arith.constant 0 : index
    %90 = vector.load %arg5[%c0_64, %c1_65, %c0_66, %c0_67] : memref<3x2x64x64xf32, #tpu.memory_space<vmem>>, vector<1x1x64x64xf32>
    %91 = vector.shape_cast %90 : vector<1x1x64x64xf32> to vector<64x64xf32>
    %cst_68 = arith.constant dense<0.000000e+00> : vector<8x64xf32>
    %92 = tpu.matmul %66, %91, %cst_68 {dimension_numbers = #tpu.dot_dimension_numbers<[1], [0], [0], [1], [0, 0, 1, 1], [], []>} : vector<8x64xf32>, vector<64x64xf32>, vector<8x64xf32> -> vector<8x64xf32>
    %c1_69 = arith.constant 1 : index
    %c1_70 = arith.constant 1 : index
    %c0_71 = arith.constant 0 : index
    %c0_72 = arith.constant 0 : index
    %93 = vector.load %arg5[%c1_69, %c1_70, %c0_71, %c0_72] : memref<3x2x64x64xf32, #tpu.memory_space<vmem>>, vector<1x1x64x64xf32>
    %94 = vector.shape_cast %93 : vector<1x1x64x64xf32> to vector<64x64xf32>
    %cst_73 = arith.constant dense<0.000000e+00> : vector<8x64xf32>
    %95 = tpu.matmul %58, %94, %cst_73 {dimension_numbers = #tpu.dot_dimension_numbers<[1], [0], [0], [1], [0, 0, 1, 1], [], []>} : vector<8x64xf32>, vector<64x64xf32>, vector<8x64xf32> -> vector<8x64xf32>
    %96 = arith.addf %92, %95 : vector<8x64xf32>
    %c2_74 = arith.constant 2 : index
    %c1_75 = arith.constant 1 : index
    %c0_76 = arith.constant 0 : index
    %c0_77 = arith.constant 0 : index
    %97 = vector.load %arg5[%c2_74, %c1_75, %c0_76, %c0_77] : memref<3x2x64x64xf32, #tpu.memory_space<vmem>>, vector<1x1x64x64xf32>
    %98 = vector.shape_cast %97 : vector<1x1x64x64xf32> to vector<64x64xf32>
    %cst_78 = arith.constant dense<0.000000e+00> : vector<8x64xf32>
    %99 = tpu.matmul %72, %98, %cst_78 {dimension_numbers = #tpu.dot_dimension_numbers<[1], [0], [0], [1], [0, 0, 1, 1], [], []>} : vector<8x64xf32>, vector<64x64xf32>, vector<8x64xf32> -> vector<8x64xf32>
    %100 = arith.addf %96, %99 : vector<8x64xf32>
    %c0_79 = arith.constant 0 : index
    %c0_80 = arith.constant 0 : index
    %101 = vector.load %arg6[%c0_79, %c0_80] : memref<1x64xf32, #tpu.memory_space<vmem>>, vector<1x64xf32>
    %102 = vector.broadcast %101 : vector<1x64xf32> to vector<8x64xf32>
    %103 = arith.mulf %100, %102 : vector<8x64xf32>
    %c0_81 = arith.constant 0 : index
    %c0_82 = arith.constant 0 : index
    %104 = vector.load %arg7[%c0_81, %c0_82] : memref<1x64xf32, #tpu.memory_space<vmem>>, vector<1x64xf32>
    %105 = vector.broadcast %104 : vector<1x64xf32> to vector<8x64xf32>
    %106 = arith.addf %103, %105 : vector<8x64xf32>
    %107 = arith.maximumf %89, %106 : vector<8x64xf32>
    %108 = vector.shape_cast %107 : vector<8x64xf32> to vector<4x2x64xf32>
    %109 = vector.extract_strided_slice %108 {offsets = [0, 0, 0], sizes = [4, 1, 64], strides = [1, 1, 1]} : vector<4x2x64xf32> to vector<4x1x64xf32>
    %110 = vector.shape_cast %109 : vector<4x1x64xf32> to vector<4x64xf32>
    %111 = vector.extract_strided_slice %108 {offsets = [0, 1, 0], sizes = [4, 1, 64], strides = [1, 1, 1]} : vector<4x2x64xf32> to vector<4x1x64xf32>
    %112 = vector.shape_cast %111 : vector<4x1x64xf32> to vector<4x64xf32>
    %113 = arith.maximumf %110, %112 : vector<4x64xf32>
    %cst_83 = arith.constant 0.000000e+00 : f32
    %114 = vector.broadcast %cst_83 : f32 to vector<4x64xf32>
    %115 = arith.maximumf %113, %114 : vector<4x64xf32>
    %116 = tpu.iota {dimensions = array<i32: 0>} : vector<4x4xi32>
    %117 = tpu.iota {dimensions = array<i32: 1>} : vector<4x4xi32>
    %c1_i32_84 = arith.constant 1 : i32
    %118 = vector.broadcast %c1_i32_84 : i32 to vector<4x4xi32>
    %119 = arith.addi %117, %118 : vector<4x4xi32>
    %120 = arith.cmpi eq, %116, %119 : vector<4x4xi32>
    %121 = arith.extui %120 : vector<4x4xi1> to vector<4x4xi32>
    %122 = arith.sitofp %121 : vector<4x4xi32> to vector<4x4xf32>
    %cst_85 = arith.constant dense<0.000000e+00> : vector<4x64xf32>
    %123 = tpu.matmul %122, %115, %cst_85 {dimension_numbers = #tpu.dot_dimension_numbers<[1], [0], [0], [1], [0, 0, 1, 1], [], []>} : vector<4x4xf32>, vector<4x64xf32>, vector<4x64xf32> -> vector<4x64xf32>
    %c1_i32_86 = arith.constant 1 : i32
    %124 = vector.broadcast %c1_i32_86 : i32 to vector<4x4xi32>
    %125 = arith.addi %116, %124 : vector<4x4xi32>
    %126 = arith.cmpi eq, %117, %125 : vector<4x4xi32>
    %127 = arith.extui %126 : vector<4x4xi1> to vector<4x4xi32>
    %128 = arith.sitofp %127 : vector<4x4xi32> to vector<4x4xf32>
    %cst_87 = arith.constant dense<0.000000e+00> : vector<4x64xf32>
    %129 = tpu.matmul %128, %115, %cst_87 {dimension_numbers = #tpu.dot_dimension_numbers<[1], [0], [0], [1], [0, 0, 1, 1], [], []>} : vector<4x4xf32>, vector<4x64xf32>, vector<4x64xf32> -> vector<4x64xf32>
    %c0_88 = arith.constant 0 : index
    %c0_89 = arith.constant 0 : index
    %c0_90 = arith.constant 0 : index
    %c0_91 = arith.constant 0 : index
    %130 = vector.load %arg8[%c0_88, %c0_89, %c0_90, %c0_91] : memref<3x2x64x64xf32, #tpu.memory_space<vmem>>, vector<1x1x64x64xf32>
    %131 = vector.shape_cast %130 : vector<1x1x64x64xf32> to vector<64x64xf32>
    %cst_92 = arith.constant dense<0.000000e+00> : vector<4x64xf32>
    %132 = tpu.matmul %123, %131, %cst_92 {dimension_numbers = #tpu.dot_dimension_numbers<[1], [0], [0], [1], [0, 0, 1, 1], [], []>} : vector<4x64xf32>, vector<64x64xf32>, vector<4x64xf32> -> vector<4x64xf32>
    %c1_93 = arith.constant 1 : index
    %c0_94 = arith.constant 0 : index
    %c0_95 = arith.constant 0 : index
    %c0_96 = arith.constant 0 : index
    %133 = vector.load %arg8[%c1_93, %c0_94, %c0_95, %c0_96] : memref<3x2x64x64xf32, #tpu.memory_space<vmem>>, vector<1x1x64x64xf32>
    %134 = vector.shape_cast %133 : vector<1x1x64x64xf32> to vector<64x64xf32>
    %cst_97 = arith.constant dense<0.000000e+00> : vector<4x64xf32>
    %135 = tpu.matmul %115, %134, %cst_97 {dimension_numbers = #tpu.dot_dimension_numbers<[1], [0], [0], [1], [0, 0, 1, 1], [], []>} : vector<4x64xf32>, vector<64x64xf32>, vector<4x64xf32> -> vector<4x64xf32>
    %136 = arith.addf %132, %135 : vector<4x64xf32>
    %c2_98 = arith.constant 2 : index
    %c0_99 = arith.constant 0 : index
    %c0_100 = arith.constant 0 : index
    %c0_101 = arith.constant 0 : index
    %137 = vector.load %arg8[%c2_98, %c0_99, %c0_100, %c0_101] : memref<3x2x64x64xf32, #tpu.memory_space<vmem>>, vector<1x1x64x64xf32>
    %138 = vector.shape_cast %137 : vector<1x1x64x64xf32> to vector<64x64xf32>
    %cst_102 = arith.constant dense<0.000000e+00> : vector<4x64xf32>
    %139 = tpu.matmul %129, %138, %cst_102 {dimension_numbers = #tpu.dot_dimension_numbers<[1], [0], [0], [1], [0, 0, 1, 1], [], []>} : vector<4x64xf32>, vector<64x64xf32>, vector<4x64xf32> -> vector<4x64xf32>
    %140 = arith.addf %136, %139 : vector<4x64xf32>
    %c0_103 = arith.constant 0 : index
    %c0_104 = arith.constant 0 : index
    %141 = vector.load %arg9[%c0_103, %c0_104] : memref<1x64xf32, #tpu.memory_space<vmem>>, vector<1x64xf32>
    %142 = vector.broadcast %141 : vector<1x64xf32> to vector<4x64xf32>
    %143 = arith.mulf %140, %142 : vector<4x64xf32>
    %c0_105 = arith.constant 0 : index
    %c0_106 = arith.constant 0 : index
    %144 = vector.load %arg10[%c0_105, %c0_106] : memref<1x64xf32, #tpu.memory_space<vmem>>, vector<1x64xf32>
    %145 = vector.broadcast %144 : vector<1x64xf32> to vector<4x64xf32>
    %146 = arith.addf %143, %145 : vector<4x64xf32>
    %c0_107 = arith.constant 0 : index
    %c1_108 = arith.constant 1 : index
    %c0_109 = arith.constant 0 : index
    %c0_110 = arith.constant 0 : index
    %147 = vector.load %arg8[%c0_107, %c1_108, %c0_109, %c0_110] : memref<3x2x64x64xf32, #tpu.memory_space<vmem>>, vector<1x1x64x64xf32>
    %148 = vector.shape_cast %147 : vector<1x1x64x64xf32> to vector<64x64xf32>
    %cst_111 = arith.constant dense<0.000000e+00> : vector<4x64xf32>
    %149 = tpu.matmul %123, %148, %cst_111 {dimension_numbers = #tpu.dot_dimension_numbers<[1], [0], [0], [1], [0, 0, 1, 1], [], []>} : vector<4x64xf32>, vector<64x64xf32>, vector<4x64xf32> -> vector<4x64xf32>
    %c1_112 = arith.constant 1 : index
    %c1_113 = arith.constant 1 : index
    %c0_114 = arith.constant 0 : index
    %c0_115 = arith.constant 0 : index
    %150 = vector.load %arg8[%c1_112, %c1_113, %c0_114, %c0_115] : memref<3x2x64x64xf32, #tpu.memory_space<vmem>>, vector<1x1x64x64xf32>
    %151 = vector.shape_cast %150 : vector<1x1x64x64xf32> to vector<64x64xf32>
    %cst_116 = arith.constant dense<0.000000e+00> : vector<4x64xf32>
    %152 = tpu.matmul %115, %151, %cst_116 {dimension_numbers = #tpu.dot_dimension_numbers<[1], [0], [0], [1], [0, 0, 1, 1], [], []>} : vector<4x64xf32>, vector<64x64xf32>, vector<4x64xf32> -> vector<4x64xf32>
    %153 = arith.addf %149, %152 : vector<4x64xf32>
    %c2_117 = arith.constant 2 : index
    %c1_118 = arith.constant 1 : index
    %c0_119 = arith.constant 0 : index
    %c0_120 = arith.constant 0 : index
    %154 = vector.load %arg8[%c2_117, %c1_118, %c0_119, %c0_120] : memref<3x2x64x64xf32, #tpu.memory_space<vmem>>, vector<1x1x64x64xf32>
    %155 = vector.shape_cast %154 : vector<1x1x64x64xf32> to vector<64x64xf32>
    %cst_121 = arith.constant dense<0.000000e+00> : vector<4x64xf32>
    %156 = tpu.matmul %129, %155, %cst_121 {dimension_numbers = #tpu.dot_dimension_numbers<[1], [0], [0], [1], [0, 0, 1, 1], [], []>} : vector<4x64xf32>, vector<64x64xf32>, vector<4x64xf32> -> vector<4x64xf32>
    %157 = arith.addf %153, %156 : vector<4x64xf32>
    %c0_122 = arith.constant 0 : index
    %c0_123 = arith.constant 0 : index
    %158 = vector.load %arg9[%c0_122, %c0_123] : memref<1x64xf32, #tpu.memory_space<vmem>>, vector<1x64xf32>
    %159 = vector.broadcast %158 : vector<1x64xf32> to vector<4x64xf32>
    %160 = arith.mulf %157, %159 : vector<4x64xf32>
    %c0_124 = arith.constant 0 : index
    %c0_125 = arith.constant 0 : index
    %161 = vector.load %arg10[%c0_124, %c0_125] : memref<1x64xf32, #tpu.memory_space<vmem>>, vector<1x64xf32>
    %162 = vector.broadcast %161 : vector<1x64xf32> to vector<4x64xf32>
    %163 = arith.addf %160, %162 : vector<4x64xf32>
    %164 = arith.maximumf %146, %163 : vector<4x64xf32>
    %165 = vector.shape_cast %164 : vector<4x64xf32> to vector<2x2x64xf32>
    %166 = vector.extract_strided_slice %165 {offsets = [0, 0, 0], sizes = [2, 1, 64], strides = [1, 1, 1]} : vector<2x2x64xf32> to vector<2x1x64xf32>
    %167 = vector.shape_cast %166 : vector<2x1x64xf32> to vector<2x64xf32>
    %168 = vector.extract_strided_slice %165 {offsets = [0, 1, 0], sizes = [2, 1, 64], strides = [1, 1, 1]} : vector<2x2x64xf32> to vector<2x1x64xf32>
    %169 = vector.shape_cast %168 : vector<2x1x64xf32> to vector<2x64xf32>
    %170 = arith.maximumf %167, %169 : vector<2x64xf32>
    %cst_126 = arith.constant 0.000000e+00 : f32
    %171 = vector.broadcast %cst_126 : f32 to vector<2x64xf32>
    %172 = arith.maximumf %170, %171 : vector<2x64xf32>
    %173 = tpu.iota {dimensions = array<i32: 0>} : vector<2x2xi32>
    %174 = tpu.iota {dimensions = array<i32: 1>} : vector<2x2xi32>
    %c1_i32_127 = arith.constant 1 : i32
    %175 = vector.broadcast %c1_i32_127 : i32 to vector<2x2xi32>
    %176 = arith.addi %174, %175 : vector<2x2xi32>
    %177 = arith.cmpi eq, %173, %176 : vector<2x2xi32>
    %178 = arith.extui %177 : vector<2x2xi1> to vector<2x2xi32>
    %179 = arith.sitofp %178 : vector<2x2xi32> to vector<2x2xf32>
    %cst_128 = arith.constant dense<0.000000e+00> : vector<2x64xf32>
    %180 = tpu.matmul %179, %172, %cst_128 {dimension_numbers = #tpu.dot_dimension_numbers<[1], [0], [0], [1], [0, 0, 1, 1], [], []>} : vector<2x2xf32>, vector<2x64xf32>, vector<2x64xf32> -> vector<2x64xf32>
    %c1_i32_129 = arith.constant 1 : i32
    %181 = vector.broadcast %c1_i32_129 : i32 to vector<2x2xi32>
    %182 = arith.addi %173, %181 : vector<2x2xi32>
    %183 = arith.cmpi eq, %174, %182 : vector<2x2xi32>
    %184 = arith.extui %183 : vector<2x2xi1> to vector<2x2xi32>
    %185 = arith.sitofp %184 : vector<2x2xi32> to vector<2x2xf32>
    %cst_130 = arith.constant dense<0.000000e+00> : vector<2x64xf32>
    %186 = tpu.matmul %185, %172, %cst_130 {dimension_numbers = #tpu.dot_dimension_numbers<[1], [0], [0], [1], [0, 0, 1, 1], [], []>} : vector<2x2xf32>, vector<2x64xf32>, vector<2x64xf32> -> vector<2x64xf32>
    %c0_131 = arith.constant 0 : index
    %c0_132 = arith.constant 0 : index
    %c0_133 = arith.constant 0 : index
    %c0_134 = arith.constant 0 : index
    %187 = vector.load %arg11[%c0_131, %c0_132, %c0_133, %c0_134] : memref<3x2x64x32xf32, #tpu.memory_space<vmem>>, vector<1x1x64x32xf32>
    %188 = vector.shape_cast %187 : vector<1x1x64x32xf32> to vector<64x32xf32>
    %cst_135 = arith.constant dense<0.000000e+00> : vector<2x32xf32>
    %189 = tpu.matmul %180, %188, %cst_135 {dimension_numbers = #tpu.dot_dimension_numbers<[1], [0], [0], [1], [0, 0, 1, 1], [], []>} : vector<2x64xf32>, vector<64x32xf32>, vector<2x32xf32> -> vector<2x32xf32>
    %c1_136 = arith.constant 1 : index
    %c0_137 = arith.constant 0 : index
    %c0_138 = arith.constant 0 : index
    %c0_139 = arith.constant 0 : index
    %190 = vector.load %arg11[%c1_136, %c0_137, %c0_138, %c0_139] : memref<3x2x64x32xf32, #tpu.memory_space<vmem>>, vector<1x1x64x32xf32>
    %191 = vector.shape_cast %190 : vector<1x1x64x32xf32> to vector<64x32xf32>
    %cst_140 = arith.constant dense<0.000000e+00> : vector<2x32xf32>
    %192 = tpu.matmul %172, %191, %cst_140 {dimension_numbers = #tpu.dot_dimension_numbers<[1], [0], [0], [1], [0, 0, 1, 1], [], []>} : vector<2x64xf32>, vector<64x32xf32>, vector<2x32xf32> -> vector<2x32xf32>
    %193 = arith.addf %189, %192 : vector<2x32xf32>
    %c2_141 = arith.constant 2 : index
    %c0_142 = arith.constant 0 : index
    %c0_143 = arith.constant 0 : index
    %c0_144 = arith.constant 0 : index
    %194 = vector.load %arg11[%c2_141, %c0_142, %c0_143, %c0_144] : memref<3x2x64x32xf32, #tpu.memory_space<vmem>>, vector<1x1x64x32xf32>
    %195 = vector.shape_cast %194 : vector<1x1x64x32xf32> to vector<64x32xf32>
    %cst_145 = arith.constant dense<0.000000e+00> : vector<2x32xf32>
    %196 = tpu.matmul %186, %195, %cst_145 {dimension_numbers = #tpu.dot_dimension_numbers<[1], [0], [0], [1], [0, 0, 1, 1], [], []>} : vector<2x64xf32>, vector<64x32xf32>, vector<2x32xf32> -> vector<2x32xf32>
    %197 = arith.addf %193, %196 : vector<2x32xf32>
    %c0_146 = arith.constant 0 : index
    %c0_147 = arith.constant 0 : index
    %198 = vector.load %arg12[%c0_146, %c0_147] : memref<1x32xf32, #tpu.memory_space<vmem>>, vector<1x32xf32>
    %199 = vector.broadcast %198 : vector<1x32xf32> to vector<2x32xf32>
    %200 = arith.mulf %197, %199 : vector<2x32xf32>
    %c0_148 = arith.constant 0 : index
    %c0_149 = arith.constant 0 : index
    %201 = vector.load %arg13[%c0_148, %c0_149] : memref<1x32xf32, #tpu.memory_space<vmem>>, vector<1x32xf32>
    %202 = vector.broadcast %201 : vector<1x32xf32> to vector<2x32xf32>
    %203 = arith.addf %200, %202 : vector<2x32xf32>
    %c0_150 = arith.constant 0 : index
    %c1_151 = arith.constant 1 : index
    %c0_152 = arith.constant 0 : index
    %c0_153 = arith.constant 0 : index
    %204 = vector.load %arg11[%c0_150, %c1_151, %c0_152, %c0_153] : memref<3x2x64x32xf32, #tpu.memory_space<vmem>>, vector<1x1x64x32xf32>
    %205 = vector.shape_cast %204 : vector<1x1x64x32xf32> to vector<64x32xf32>
    %cst_154 = arith.constant dense<0.000000e+00> : vector<2x32xf32>
    %206 = tpu.matmul %180, %205, %cst_154 {dimension_numbers = #tpu.dot_dimension_numbers<[1], [0], [0], [1], [0, 0, 1, 1], [], []>} : vector<2x64xf32>, vector<64x32xf32>, vector<2x32xf32> -> vector<2x32xf32>
    %c1_155 = arith.constant 1 : index
    %c1_156 = arith.constant 1 : index
    %c0_157 = arith.constant 0 : index
    %c0_158 = arith.constant 0 : index
    %207 = vector.load %arg11[%c1_155, %c1_156, %c0_157, %c0_158] : memref<3x2x64x32xf32, #tpu.memory_space<vmem>>, vector<1x1x64x32xf32>
    %208 = vector.shape_cast %207 : vector<1x1x64x32xf32> to vector<64x32xf32>
    %cst_159 = arith.constant dense<0.000000e+00> : vector<2x32xf32>
    %209 = tpu.matmul %172, %208, %cst_159 {dimension_numbers = #tpu.dot_dimension_numbers<[1], [0], [0], [1], [0, 0, 1, 1], [], []>} : vector<2x64xf32>, vector<64x32xf32>, vector<2x32xf32> -> vector<2x32xf32>
    %210 = arith.addf %206, %209 : vector<2x32xf32>
    %c2_160 = arith.constant 2 : index
    %c1_161 = arith.constant 1 : index
    %c0_162 = arith.constant 0 : index
    %c0_163 = arith.constant 0 : index
    %211 = vector.load %arg11[%c2_160, %c1_161, %c0_162, %c0_163] : memref<3x2x64x32xf32, #tpu.memory_space<vmem>>, vector<1x1x64x32xf32>
    %212 = vector.shape_cast %211 : vector<1x1x64x32xf32> to vector<64x32xf32>
    %cst_164 = arith.constant dense<0.000000e+00> : vector<2x32xf32>
    %213 = tpu.matmul %186, %212, %cst_164 {dimension_numbers = #tpu.dot_dimension_numbers<[1], [0], [0], [1], [0, 0, 1, 1], [], []>} : vector<2x64xf32>, vector<64x32xf32>, vector<2x32xf32> -> vector<2x32xf32>
    %214 = arith.addf %210, %213 : vector<2x32xf32>
    %c0_165 = arith.constant 0 : index
    %c0_166 = arith.constant 0 : index
    %215 = vector.load %arg12[%c0_165, %c0_166] : memref<1x32xf32, #tpu.memory_space<vmem>>, vector<1x32xf32>
    %216 = vector.broadcast %215 : vector<1x32xf32> to vector<2x32xf32>
    %217 = arith.mulf %214, %216 : vector<2x32xf32>
    %c0_167 = arith.constant 0 : index
    %c0_168 = arith.constant 0 : index
    %218 = vector.load %arg13[%c0_167, %c0_168] : memref<1x32xf32, #tpu.memory_space<vmem>>, vector<1x32xf32>
    %219 = vector.broadcast %218 : vector<1x32xf32> to vector<2x32xf32>
    %220 = arith.addf %217, %219 : vector<2x32xf32>
    %221 = arith.maximumf %203, %220 : vector<2x32xf32>
    %222 = vector.shape_cast %221 : vector<2x32xf32> to vector<1x2x32xf32>
    %223 = vector.extract_strided_slice %222 {offsets = [0, 0, 0], sizes = [1, 1, 32], strides = [1, 1, 1]} : vector<1x2x32xf32> to vector<1x1x32xf32>
    %224 = vector.shape_cast %223 : vector<1x1x32xf32> to vector<1x32xf32>
    %225 = vector.extract_strided_slice %222 {offsets = [0, 1, 0], sizes = [1, 1, 32], strides = [1, 1, 1]} : vector<1x2x32xf32> to vector<1x1x32xf32>
    %226 = vector.shape_cast %225 : vector<1x1x32xf32> to vector<1x32xf32>
    %227 = arith.maximumf %224, %226 : vector<1x32xf32>
    %cst_169 = arith.constant 0.000000e+00 : f32
    %228 = vector.broadcast %cst_169 : f32 to vector<1x32xf32>
    %229 = arith.maximumf %227, %228 : vector<1x32xf32>
    %c0_170 = arith.constant 0 : index
    %c0_171 = arith.constant 0 : index
    %230 = vector.load %arg14[%c0_170, %c0_171] : memref<32x10xf32, #tpu.memory_space<vmem>>, vector<32x10xf32>
    %cst_172 = arith.constant dense<0.000000e+00> : vector<1x10xf32>
    %231 = tpu.matmul %229, %230, %cst_172 {dimension_numbers = #tpu.dot_dimension_numbers<[1], [0], [0], [1], [0, 0, 1, 1], [], []>} : vector<1x32xf32>, vector<32x10xf32>, vector<1x10xf32> -> vector<1x10xf32>
    %c0_173 = arith.constant 0 : index
    %c0_174 = arith.constant 0 : index
    %232 = vector.load %arg15[%c0_173, %c0_174] : memref<1x10xf32, #tpu.memory_space<vmem>>, vector<1x10xf32>
    %233 = arith.addf %231, %232 : vector<1x10xf32>
    %c0_175 = arith.constant 0 : index
    %c0_176 = arith.constant 0 : index
    %c0_177 = arith.constant 0 : index
    %234 = vector.load %arg16[%c0_175, %c0_176, %c0_177] : memref<1x1x10xf32, #tpu.memory_space<vmem>>, vector<1x1x10xf32>
    %235 = vector.shape_cast %234 : vector<1x1x10xf32> to vector<1x10xf32>
    %236 = vector.shape_cast %233 : vector<1x10xf32> to vector<1x1x10xf32>
    tpu.vector_store %arg16[%c0_175, %c0_176, %c0_177], %236 {strides = array<i32>} : memref<1x1x10xf32, #tpu.memory_space<vmem>>, vector<1x1x10xf32>,
    return
  }
  func.func @transform_0(%arg0: i32) -> (i32, i32, i32) {
    %c0_i32 = arith.constant 0 : i32
    %c0_i32_0 = arith.constant 0 : i32
    %c0_i32_1 = arith.constant 0 : i32
    return %arg0, %c0_i32, %c0_i32_0 : i32, i32, i32
  }
  func.func @transform_1(%arg0: i32) -> (i32, i32, i32, i32) {
    %c0_i32 = arith.constant 0 : i32
    %c0_i32_0 = arith.constant 0 : i32
    %c0_i32_1 = arith.constant 0 : i32
    %c0_i32_2 = arith.constant 0 : i32
    %c0_i32_3 = arith.constant 0 : i32
    return %c0_i32, %c0_i32_0, %c0_i32_1, %c0_i32_2 : i32, i32, i32, i32
  }
  func.func @transform_2(%arg0: i32) -> (i32, i32) {
    %c0_i32 = arith.constant 0 : i32
    %c0_i32_0 = arith.constant 0 : i32
    %c0_i32_1 = arith.constant 0 : i32
    return %c0_i32, %c0_i32_0 : i32, i32
  }
  func.func @transform_3(%arg0: i32) -> (i32, i32) {
    %c0_i32 = arith.constant 0 : i32
    %c0_i32_0 = arith.constant 0 : i32
    %c0_i32_1 = arith.constant 0 : i32
    return %c0_i32, %c0_i32_0 : i32, i32
  }
  func.func @transform_4(%arg0: i32) -> (i32, i32, i32, i32) {
    %c0_i32 = arith.constant 0 : i32
    %c0_i32_0 = arith.constant 0 : i32
    %c0_i32_1 = arith.constant 0 : i32
    %c0_i32_2 = arith.constant 0 : i32
    %c0_i32_3 = arith.constant 0 : i32
    return %c0_i32, %c0_i32_0, %c0_i32_1, %c0_i32_2 : i32, i32, i32, i32
  }
  func.func @transform_5(%arg0: i32) -> (i32, i32) {
    %c0_i32 = arith.constant 0 : i32
    %c0_i32_0 = arith.constant 0 : i32
    %c0_i32_1 = arith.constant 0 : i32
    return %c0_i32, %c0_i32_0 : i32, i32
  }
  func.func @transform_6(%arg0: i32) -> (i32, i32) {
    %c0_i32 = arith.constant 0 : i32
    %c0_i32_0 = arith.constant 0 : i32
    %c0_i32_1 = arith.constant 0 : i32
    return %c0_i32, %c0_i32_0 : i32, i32
  }
  func.func @transform_7(%arg0: i32) -> (i32, i32, i32, i32) {
    %c0_i32 = arith.constant 0 : i32
    %c0_i32_0 = arith.constant 0 : i32
    %c0_i32_1 = arith.constant 0 : i32
    %c0_i32_2 = arith.constant 0 : i32
    %c0_i32_3 = arith.constant 0 : i32
    return %c0_i32, %c0_i32_0, %c0_i32_1, %c0_i32_2 : i32, i32, i32, i32
  }
  func.func @transform_8(%arg0: i32) -> (i32, i32) {
    %c0_i32 = arith.constant 0 : i32
    %c0_i32_0 = arith.constant 0 : i32
    %c0_i32_1 = arith.constant 0 : i32
    return %c0_i32, %c0_i32_0 : i32, i32
  }
  func.func @transform_9(%arg0: i32) -> (i32, i32) {
    %c0_i32 = arith.constant 0 : i32
    %c0_i32_0 = arith.constant 0 : i32
    %c0_i32_1 = arith.constant 0 : i32
    return %c0_i32, %c0_i32_0 : i32, i32
  }
  func.func @transform_10(%arg0: i32) -> (i32, i32, i32, i32) {
    %c0_i32 = arith.constant 0 : i32
    %c0_i32_0 = arith.constant 0 : i32
    %c0_i32_1 = arith.constant 0 : i32
    %c0_i32_2 = arith.constant 0 : i32
    %c0_i32_3 = arith.constant 0 : i32
    return %c0_i32, %c0_i32_0, %c0_i32_1, %c0_i32_2 : i32, i32, i32, i32
  }
  func.func @transform_11(%arg0: i32) -> (i32, i32) {
    %c0_i32 = arith.constant 0 : i32
    %c0_i32_0 = arith.constant 0 : i32
    %c0_i32_1 = arith.constant 0 : i32
    return %c0_i32, %c0_i32_0 : i32, i32
  }
  func.func @transform_12(%arg0: i32) -> (i32, i32) {
    %c0_i32 = arith.constant 0 : i32
    %c0_i32_0 = arith.constant 0 : i32
    %c0_i32_1 = arith.constant 0 : i32
    return %c0_i32, %c0_i32_0 : i32, i32
  }
  func.func @transform_13(%arg0: i32) -> (i32, i32) {
    %c0_i32 = arith.constant 0 : i32
    %c0_i32_0 = arith.constant 0 : i32
    %c0_i32_1 = arith.constant 0 : i32
    return %c0_i32, %c0_i32_0 : i32, i32
  }
  func.func @transform_14(%arg0: i32) -> (i32, i32) {
    %c0_i32 = arith.constant 0 : i32
    %c0_i32_0 = arith.constant 0 : i32
    %c0_i32_1 = arith.constant 0 : i32
    return %c0_i32, %c0_i32_0 : i32, i32
  }
  func.func @transform_15(%arg0: i32) -> (i32, i32, i32) {
    %c0_i32 = arith.constant 0 : i32
    %c0_i32_0 = arith.constant 0 : i32
    %c0_i32_1 = arith.constant 0 : i32
    return %arg0, %c0_i32, %c0_i32_0 : i32, i32, i32
  }
}

</mosaic_0001>

<llo_original>
// kernel: tpu_custom_call.1
$region0: #{tpu_custom_call.1}
  #allocation0 [shape = 'u32[]', space=smem, size = 0x4, offset = 0x4, fixed_abs, tag = 'smem constant byte address 0x4 - core index']
  #allocation1 [shape = 'u32[144,128]{1,0:T(1,128)}', space=vmem, size = 0x12000, scoped, tag = 'internal scratch']
  %s0 = inlined_call_operand.vmem [shape: f32[2,16,48], index: 0, kind: input, shape index: {}]
  %s1 = inlined_call_operand.hbm [shape: f32[3,2,48,64], index: 1, kind: input, shape index: {}]
  %s2 = inlined_call_operand.vmem [shape: f32[1,64], index: 2, kind: input, shape index: {}]
  %s3 = inlined_call_operand.vmem [shape: f32[1,64], index: 3, kind: input, shape index: {}]
  %s4 = inlined_call_operand.vmem [shape: f32[3,2,64,64], index: 4, kind: input, shape index: {}]
  %s5 = inlined_call_operand.vmem [shape: f32[1,64], index: 5, kind: input, shape index: {}]
  %s6 = inlined_call_operand.vmem [shape: f32[1,64], index: 6, kind: input, shape index: {}]
  %s7 = inlined_call_operand.hbm [shape: f32[3,2,64,64], index: 7, kind: input, shape index: {}]
  %s8 = inlined_call_operand.vmem [shape: f32[1,64], index: 8, kind: input, shape index: {}]
  %s9 = inlined_call_operand.vmem [shape: f32[1,64], index: 9, kind: input, shape index: {}]
  %s10 = inlined_call_operand.vmem [shape: f32[3,2,64,32], index: 10, kind: input, shape index: {}]
  %s11 = inlined_call_operand.vmem [shape: f32[1,32], index: 11, kind: input, shape index: {}]
  %s12 = inlined_call_operand.vmem [shape: f32[1,32], index: 12, kind: input, shape index: {}]
  %s13 = inlined_call_operand.vmem [shape: f32[32,10], index: 13, kind: input, shape index: {}]
  %s14 = inlined_call_operand.vmem [shape: f32[1,10], index: 14, kind: input, shape index: {}]
  %s15 = inlined_call_operand.hbm [shape: f32[2,1,10], index: 15, kind: output, shape index: {}]
  %s16 = sld [smem:[#allocation0]]
  $region101: #{tpu_custom_call.1} parent=0
    _
  %s18 = ssub.s32 1, %s16
  %s19 = scalar_select 0, %s18, %s16
  $region1: #{tpu_custom_call.1} parent=0
    #allocation2 [shape = 'u8[147456]{0}', space=vmem, size = 0x24000, scoped, tag = 'input window, operand 1, single buffered']
    #allocation3 [shape = 's32[2]{0}', space=sflag, size = 0x8, scoped, tag = 'scoped memory for tpu_custom_call.1']
    #allocation4 [shape = 's32[2]{0}', space=sflag, size = 0x8, scoped, tag = 'scoped memory for tpu_custom_call.1']
    #allocation5 [shape = 'u8[196608]{0}', space=vmem, size = 0x30000, scoped, tag = 'input window, operand 7, single buffered']
    #allocation6 [shape = 's32[1]{0}', space=sflag, size = 0x4, scoped, tag = 'scoped memory for tpu_custom_call.1']
    #allocation7 [shape = 'u8[1024]{0}', space=vmem, size = 0x400, scoped, tag = 'output window, operand 0']
    %20 = vsyncpa [#allocation3], 0
    %21 = vsyncpa [#allocation6], 0
    %22 = vsyncpa [#allocation4], 0
    %s23 = scalar_lea.sflag [#allocation4], 1
    %24 = vsyncpa %s23, 0
    loop: start=0, step=1, limit=4
    $region2: #{tpu_custom_call.1} parent=1 // loop_pre_header
      _
    $region3: #{tpu_custom_call.1} parent=1 // loop_header
      %s26 = sphi 0, %s30
      %p27 = scmp.ge.s32.totalorder %s26, 4
      %s36 = sphi 0, %s38
      %s39 = sphi 0, %s36
      %s40 = sphi 0, %s39
      %s56 = sphi 0, %s40
      %s60 = sphi 0, %s60
      %s62 = sphi 0, %s60
      %s63 = sphi 0, %s62
      %s77 = sphi 0, %s63
      %s81 = sphi 0, %s81
      %s83 = sphi 0, %s81
      %s84 = sphi 0, %s83
      %s98 = sphi 0, %s84
      %s102 = sphi 0, %s102
      %s104 = sphi 0, %s102
      %s105 = sphi 0, %s104
      %s119 = sphi 0, %s105
      %s123 = sphi 0, %s123
      %s125 = sphi 0, %s123
      %s126 = sphi 0, %s125
      %s140 = sphi 0, %s126
      %s144 = sphi 0, %s144
      %s146 = sphi 0, %s144
      %s147 = sphi 0, %s146
      %s161 = sphi 0, %s147
      %s165 = sphi 0, %s165
      %s167 = sphi 0, %s165
      %s168 = sphi 0, %s167
      %s182 = sphi 0, %s168
      %s186 = sphi 0, %s186
      %s188 = sphi 0, %s186
      %s189 = sphi 0, %s188
      %s203 = sphi 0, %s189
      %s207 = sphi 0, %s207
      %s209 = sphi 0, %s207
      %s210 = sphi 0, %s209
      %s224 = sphi 0, %s210
      %s228 = sphi 0, %s228
      %s230 = sphi 0, %s228
      %s231 = sphi 0, %s230
      %s245 = sphi 0, %s231
      %s249 = sphi 0, %s249
      %s251 = sphi 0, %s249
      %s252 = sphi 0, %s251
      %s266 = sphi 0, %s252
      %s270 = sphi 0, %s270
      %s272 = sphi 0, %s270
      %s273 = sphi 0, %s272
      %s287 = sphi 0, %s273
      %s291 = sphi 0, %s291
      %s293 = sphi 0, %s291
      %s294 = sphi 0, %s293
      %s308 = sphi 0, %s294
      %s312 = sphi 0, %s312
      %s314 = sphi 0, %s312
      %s315 = sphi 0, %s314
      %s329 = sphi 0, %s315
      %s333 = sphi 0, %s333
      %s335 = sphi 0, %s333
      %s336 = sphi 0, %s335
      %s350 = sphi 0, %s336
      %s356 = sphi 0, %s358
      %s359 = sphi 0, %s356
      %s360 = sphi 0, %s359
      %s376 = sphi 0, %s360
    $region4: #{tpu_custom_call.1} parent=1 // loop_header_branch
      %29 = sbr.rel (%p27) target = $region8
    $region5: #{tpu_custom_call.1} parent=1 // loop_body
      %s31 = ssub.s32 %s26, 1
      %s32 = ssub.s32 %s26, 2
      %s33 = sadd.s32 %s26, 1
      %s34 = ssub.s32 %s26, %s33
      %p35 = scmp.eq.s32.totalorder %s34, 0
      %s37 = sadd.s32 %s36, 1
      %s38 = scalar_select %p35, %s36, %s37
      %p41 = pneg %p35
      %p42 = scmp.eq.s32.totalorder %s26, 1
      %p43 = por %p41, %p42
      %p44 = scmp.ne.s32.totalorder %s36, %s39
      %p45 = scmp.eq.s32.totalorder %s26, 0
      %p46 = por %p44, %p45
      %p47 = scmp.ne.s32.totalorder %s36, %s39
      %p48 = scmp.eq.s32.totalorder %s31, 1
      %p49 = por %p47, %p48
      %p50 = scmp.ne.s32.totalorder %s39, %s40
      %p51 = scmp.eq.s32.totalorder %s31, 0
      %p52 = por %p50, %p51
      %p53 = scmp.ne.s32.totalorder %s39, %s40
      %p54 = scmp.eq.s32.totalorder %s32, 1
      %p55 = por %p53, %p54
      %p57 = scmp.ne.s32.totalorder %s40, %s56
      %p58 = scmp.eq.s32.totalorder %s32, 0
      %p59 = por %p57, %p58
      %s61 = sadd.s32 %s60, 1
      %p64 = scmp.eq.s32.totalorder %s26, 1
      %p65 = scmp.ne.s32.totalorder %s60, %s62
      %p66 = scmp.eq.s32.totalorder %s26, 0
      %p67 = por %p65, %p66
      %p68 = scmp.ne.s32.totalorder %s60, %s62
      %p69 = scmp.eq.s32.totalorder %s31, 1
      %p70 = por %p68, %p69
      %p71 = scmp.ne.s32.totalorder %s62, %s63
      %p72 = scmp.eq.s32.totalorder %s31, 0
      %p73 = por %p71, %p72
      %p74 = scmp.ne.s32.totalorder %s62, %s63
      %p75 = scmp.eq.s32.totalorder %s32, 1
      %p76 = por %p74, %p75
      %p78 = scmp.ne.s32.totalorder %s63, %s77
      %p79 = scmp.eq.s32.totalorder %s32, 0
      %p80 = por %p78, %p79
      %s82 = sadd.s32 %s81, 1
      %p85 = scmp.eq.s32.totalorder %s26, 1
      %p86 = scmp.ne.s32.totalorder %s81, %s83
      %p87 = scmp.eq.s32.totalorder %s26, 0
      %p88 = por %p86, %p87
      %p89 = scmp.ne.s32.totalorder %s81, %s83
      %p90 = scmp.eq.s32.totalorder %s31, 1
      %p91 = por %p89, %p90
      %p92 = scmp.ne.s32.totalorder %s83, %s84
      %p93 = scmp.eq.s32.totalorder %s31, 0
      %p94 = por %p92, %p93
      %p95 = scmp.ne.s32.totalorder %s83, %s84
      %p96 = scmp.eq.s32.totalorder %s32, 1
      %p97 = por %p95, %p96
      %p99 = scmp.ne.s32.totalorder %s84, %s98
      %p100 = scmp.eq.s32.totalorder %s32, 0
      %p101 = por %p99, %p100
      %s103 = sadd.s32 %s102, 1
      %p106 = scmp.eq.s32.totalorder %s26, 1
      %p107 = scmp.ne.s32.totalorder %s102, %s104
      %p108 = scmp.eq.s32.totalorder %s26, 0
      %p109 = por %p107, %p108
      %p110 = scmp.ne.s32.totalorder %s102, %s104
      %p111 = scmp.eq.s32.totalorder %s31, 1
      %p112 = por %p110, %p111
      %p113 = scmp.ne.s32.totalorder %s104, %s105
      %p114 = scmp.eq.s32.totalorder %s31, 0
      %p115 = por %p113, %p114
      %p116 = scmp.ne.s32.totalorder %s104, %s105
      %p117 = scmp.eq.s32.totalorder %s32, 1
      %p118 = por %p116, %p117
      %p120 = scmp.ne.s32.totalorder %s105, %s119
      %p121 = scmp.eq.s32.totalorder %s32, 0
      %p122 = por %p120, %p121
      %s124 = sadd.s32 %s123, 1
      %p127 = scmp.eq.s32.totalorder %s26, 1
      %p128 = scmp.ne.s32.totalorder %s123, %s125
      %p129 = scmp.eq.s32.totalorder %s26, 0
      %p130 = por %p128, %p129
      %p131 = scmp.ne.s32.totalorder %s123, %s125
      %p132 = scmp.eq.s32.totalorder %s31, 1
      %p133 = por %p131, %p132
      %p134 = scmp.ne.s32.totalorder %s125, %s126
      %p135 = scmp.eq.s32.totalorder %s31, 0
      %p136 = por %p134, %p135
      %p137 = scmp.ne.s32.totalorder %s125, %s126
      %p138 = scmp.eq.s32.totalorder %s32, 1
      %p139 = por %p137, %p138
      %p141 = scmp.ne.s32.totalorder %s126, %s140
      %p142 = scmp.eq.s32.totalorder %s32, 0
      %p143 = por %p141, %p142
      %s145 = sadd.s32 %s144, 1
      %p148 = scmp.eq.s32.totalorder %s26, 1
      %p149 = scmp.ne.s32.totalorder %s144, %s146
      %p150 = scmp.eq.s32.totalorder %s26, 0
      %p151 = por %p149, %p150
      %p152 = scmp.ne.s32.totalorder %s144, %s146
      %p153 = scmp.eq.s32.totalorder %s31, 1
      %p154 = por %p152, %p153
      %p155 = scmp.ne.s32.totalorder %s146, %s147
      %p156 = scmp.eq.s32.totalorder %s31, 0
      %p157 = por %p155, %p156
      %p158 = scmp.ne.s32.totalorder %s146, %s147
      %p159 = scmp.eq.s32.totalorder %s32, 1
      %p160 = por %p158, %p159
      %p162 = scmp.ne.s32.totalorder %s147, %s161
      %p163 = scmp.eq.s32.totalorder %s32, 0
      %p164 = por %p162, %p163
      %s166 = sadd.s32 %s165, 1
      %p169 = scmp.eq.s32.totalorder %s26, 1
      %p170 = scmp.ne.s32.totalorder %s165, %s167
      %p171 = scmp.eq.s32.totalorder %s26, 0
      %p172 = por %p170, %p171
      %p173 = scmp.ne.s32.totalorder %s165, %s167
      %p174 = scmp.eq.s32.totalorder %s31, 1
      %p175 = por %p173, %p174
      %p176 = scmp.ne.s32.totalorder %s167, %s168
      %p177 = scmp.eq.s32.totalorder %s31, 0
      %p178 = por %p176, %p177
      %p179 = scmp.ne.s32.totalorder %s167, %s168
      %p180 = scmp.eq.s32.totalorder %s32, 1
      %p181 = por %p179, %p180
      %p183 = scmp.ne.s32.totalorder %s168, %s182
      %p184 = scmp.eq.s32.totalorder %s32, 0
      %p185 = por %p183, %p184
      %s187 = sadd.s32 %s186, 1
      %p190 = scmp.eq.s32.totalorder %s26, 1
      %p191 = scmp.ne.s32.totalorder %s186, %s188
      %p192 = scmp.eq.s32.totalorder %s26, 0
      %p193 = por %p191, %p192
      %p194 = scmp.ne.s32.totalorder %s186, %s188
      %p195 = scmp.eq.s32.totalorder %s31, 1
      %p196 = por %p194, %p195
      %p197 = scmp.ne.s32.totalorder %s188, %s189
      %p198 = scmp.eq.s32.totalorder %s31, 0
      %p199 = por %p197, %p198
      %p200 = scmp.ne.s32.totalorder %s188, %s189
      %p201 = scmp.eq.s32.totalorder %s32, 1
      %p202 = por %p200, %p201
      %p204 = scmp.ne.s32.totalorder %s189, %s203
      %p205 = scmp.eq.s32.totalorder %s32, 0
      %p206 = por %p204, %p205
      %s208 = sadd.s32 %s207, 1
      %p211 = scmp.eq.s32.totalorder %s26, 1
      %p212 = scmp.ne.s32.totalorder %s207, %s209
      %p213 = scmp.eq.s32.totalorder %s26, 0
      %p214 = por %p212, %p213
      %p215 = scmp.ne.s32.totalorder %s207, %s209
      %p216 = scmp.eq.s32.totalorder %s31, 1
      %p217 = por %p215, %p216
      %p218 = scmp.ne.s32.totalorder %s209, %s210
      %p219 = scmp.eq.s32.totalorder %s31, 0
      %p220 = por %p218, %p219
      %p221 = scmp.ne.s32.totalorder %s209, %s210
      %p222 = scmp.eq.s32.totalorder %s32, 1
      %p223 = por %p221, %p222
      %p225 = scmp.ne.s32.totalorder %s210, %s224
      %p226 = scmp.eq.s32.totalorder %s32, 0
      %p227 = por %p225, %p226
      %s229 = sadd.s32 %s228, 1
      %p232 = scmp.eq.s32.totalorder %s26, 1
      %p233 = scmp.ne.s32.totalorder %s228, %s230
      %p234 = scmp.eq.s32.totalorder %s26, 0
      %p235 = por %p233, %p234
      %p236 = scmp.ne.s32.totalorder %s228, %s230
      %p237 = scmp.eq.s32.totalorder %s31, 1
      %p238 = por %p236, %p237
      %p239 = scmp.ne.s32.totalorder %s230, %s231
      %p240 = scmp.eq.s32.totalorder %s31, 0
      %p241 = por %p239, %p240
      %p242 = scmp.ne.s32.totalorder %s230, %s231
      %p243 = scmp.eq.s32.totalorder %s32, 1
      %p244 = por %p242, %p243
      %p246 = scmp.ne.s32.totalorder %s231, %s245
      %p247 = scmp.eq.s32.totalorder %s32, 0
      %p248 = por %p246, %p247
      %s250 = sadd.s32 %s249, 1
      %p253 = scmp.eq.s32.totalorder %s26, 1
      %p254 = scmp.ne.s32.totalorder %s249, %s251
      %p255 = scmp.eq.s32.totalorder %s26, 0
      %p256 = por %p254, %p255
      %p257 = scmp.ne.s32.totalorder %s249, %s251
      %p258 = scmp.eq.s32.totalorder %s31, 1
      %p259 = por %p257, %p258
      %p260 = scmp.ne.s32.totalorder %s251, %s252
      %p261 = scmp.eq.s32.totalorder %s31, 0
      %p262 = por %p260, %p261
      %p263 = scmp.ne.s32.totalorder %s251, %s252
      %p264 = scmp.eq.s32.totalorder %s32, 1
      %p265 = por %p263, %p264
      %p267 = scmp.ne.s32.totalorder %s252, %s266
      %p268 = scmp.eq.s32.totalorder %s32, 0
      %p269 = por %p267, %p268
      %s271 = sadd.s32 %s270, 1
      %p274 = scmp.eq.s32.totalorder %s26, 1
      %p275 = scmp.ne.s32.totalorder %s270, %s272
      %p276 = scmp.eq.s32.totalorder %s26, 0
      %p277 = por %p275, %p276
      %p278 = scmp.ne.s32.totalorder %s270, %s272
      %p279 = scmp.eq.s32.totalorder %s31, 1
      %p280 = por %p278, %p279
      %p281 = scmp.ne.s32.totalorder %s272, %s273
      %p282 = scmp.eq.s32.totalorder %s31, 0
      %p283 = por %p281, %p282
      %p284 = scmp.ne.s32.totalorder %s272, %s273
      %p285 = scmp.eq.s32.totalorder %s32, 1
      %p286 = por %p284, %p285
      %p288 = scmp.ne.s32.totalorder %s273, %s287
      %p289 = scmp.eq.s32.totalorder %s32, 0
      %p290 = por %p288, %p289
      %s292 = sadd.s32 %s291, 1
      %p295 = scmp.eq.s32.totalorder %s26, 1
      %p296 = scmp.ne.s32.totalorder %s291, %s293
      %p297 = scmp.eq.s32.totalorder %s26, 0
      %p298 = por %p296, %p297
      %p299 = scmp.ne.s32.totalorder %s291, %s293
      %p300 = scmp.eq.s32.totalorder %s31, 1
      %p301 = por %p299, %p300
      %p302 = scmp.ne.s32.totalorder %s293, %s294
      %p303 = scmp.eq.s32.totalorder %s31, 0
      %p304 = por %p302, %p303
      %p305 = scmp.ne.s32.totalorder %s293, %s294
      %p306 = scmp.eq.s32.totalorder %s32, 1
      %p307 = por %p305, %p306
      %p309 = scmp.ne.s32.totalorder %s294, %s308
      %p310 = scmp.eq.s32.totalorder %s32, 0
      %p311 = por %p309, %p310
      %s313 = sadd.s32 %s312, 1
      %p316 = scmp.eq.s32.totalorder %s26, 1
      %p317 = scmp.ne.s32.totalorder %s312, %s314
      %p318 = scmp.eq.s32.totalorder %s26, 0
      %p319 = por %p317, %p318
      %p320 = scmp.ne.s32.totalorder %s312, %s314
      %p321 = scmp.eq.s32.totalorder %s31, 1
      %p322 = por %p320, %p321
      %p323 = scmp.ne.s32.totalorder %s314, %s315
      %p324 = scmp.eq.s32.totalorder %s31, 0
      %p325 = por %p323, %p324
      %p326 = scmp.ne.s32.totalorder %s314, %s315
      %p327 = scmp.eq.s32.totalorder %s32, 1
      %p328 = por %p326, %p327
      %p330 = scmp.ne.s32.totalorder %s315, %s329
      %p331 = scmp.eq.s32.totalorder %s32, 0
      %p332 = por %p330, %p331
      %s334 = sadd.s32 %s333, 1
      %p337 = scmp.eq.s32.totalorder %s26, 1
      %p338 = scmp.ne.s32.totalorder %s333, %s335
      %p339 = scmp.eq.s32.totalorder %s26, 0
      %p340 = por %p338, %p339
      %p341 = scmp.ne.s32.totalorder %s333, %s335
      %p342 = scmp.eq.s32.totalorder %s31, 1
      %p343 = por %p341, %p342
      %p344 = scmp.ne.s32.totalorder %s335, %s336
      %p345 = scmp.eq.s32.totalorder %s31, 0
      %p346 = por %p344, %p345
      %p347 = scmp.ne.s32.totalorder %s335, %s336
      %p348 = scmp.eq.s32.totalorder %s32, 1
      %p349 = por %p347, %p348
      %p351 = scmp.ne.s32.totalorder %s336, %s350
      %p352 = scmp.eq.s32.totalorder %s32, 0
      %p353 = por %p351, %p352
      %s354 = ssub.s32 %s26, %s33
      %p355 = scmp.eq.s32.totalorder %s354, 0
      %s357 = sadd.s32 %s356, 1
      %s358 = scalar_select %p355, %s356, %s357
      %p361 = pneg %p355
      %p362 = scmp.eq.s32.totalorder %s26, 1
      %p363 = por %p361, %p362
      %p364 = scmp.ne.s32.totalorder %s356, %s359
      %p365 = scmp.eq.s32.totalorder %s26, 0
      %p366 = por %p364, %p365
      %p367 = scmp.ne.s32.totalorder %s356, %s359
      %p368 = scmp.eq.s32.totalorder %s31, 1
      %p369 = por %p367, %p368
      %p370 = scmp.ne.s32.totalorder %s359, %s360
      %p371 = scmp.eq.s32.totalorder %s31, 0
      %p372 = por %p370, %p371
      %p373 = scmp.ne.s32.totalorder %s359, %s360
      %p374 = scmp.eq.s32.totalorder %s32, 1
      %p375 = por %p373, %p374
      %p377 = scmp.ne.s32.totalorder %s360, %s376
      %p378 = scmp.eq.s32.totalorder %s32, 0
      %p379 = por %p377, %p378
      %p380 = scmp.le.s32.totalorder 1, %s26
      %p381 = scmp.lt.s32.totalorder %s26, 3
      %p382 = pnand %p380, %p381
      %p383 = pneg %p382
      // Predicated region
      $region9: #{tpu_custom_call.1} parent=5 // pred_check
        _
      $region10: #{tpu_custom_call.1} parent=5 // pred_check_branch
        %385 = sbr.rel (%p382) target = $region12
      $region11: #{tpu_custom_call.1} parent=5 // pred_region
        %s386 = ssub.s32 %s26, 1
        // Predicated region
        $region13: #{tpu_custom_call.1} parent=11 // pred_check
          %p387 = pneg %p73
        $region14: #{tpu_custom_call.1} parent=11 // pred_check_branch
          %389 = sbr.rel (%p387) target = $region16
        $region15: #{tpu_custom_call.1} parent=11 // pred_region
          %s391 = ssub.s32 4608, 4608
          %392 = vsyncadd [#allocation3], %s391
          %s393 = sshll.u32 [#allocation2], 4
          %s394 = int_to_ptr.vmem [resolvable:$true] %s393
          %399 = dma.hbm_to_vmem [thread:$0]  %s1, 4608, %s394, [#allocation3], 128, 128, 8
        $region16: #{tpu_custom_call.1} parent=11 // pred_fallthru
          _
        // Predicated region
        $region17: #{tpu_custom_call.1} parent=11 // pred_check
          %p400 = pneg %p94
        $region18: #{tpu_custom_call.1} parent=11 // pred_check_branch
          %402 = sbr.rel (%p400) target = $region20
        $region19: #{tpu_custom_call.1} parent=11 // pred_region
          _
        $region20: #{tpu_custom_call.1} parent=11 // pred_fallthru
          _
        // Predicated region
        $region21: #{tpu_custom_call.1} parent=11 // pred_check
          %p403 = pneg %p115
        $region22: #{tpu_custom_call.1} parent=11 // pred_check_branch
          %405 = sbr.rel (%p403) target = $region24
        $region23: #{tpu_custom_call.1} parent=11 // pred_region
          _
        $region24: #{tpu_custom_call.1} parent=11 // pred_fallthru
          _
        // Predicated region
        $region25: #{tpu_custom_call.1} parent=11 // pred_check
          %p406 = pneg %p136
        $region26: #{tpu_custom_call.1} parent=11 // pred_check_branch
          %408 = sbr.rel (%p406) target = $region28
        $region27: #{tpu_custom_call.1} parent=11 // pred_region
          _
        $region28: #{tpu_custom_call.1} parent=11 // pred_fallthru
          _
        // Predicated region
        $region29: #{tpu_custom_call.1} parent=11 // pred_check
          %p409 = pneg %p157
        $region30: #{tpu_custom_call.1} parent=11 // pred_check_branch
          %411 = sbr.rel (%p409) target = $region32
        $region31: #{tpu_custom_call.1} parent=11 // pred_region
          _
        $region32: #{tpu_custom_call.1} parent=11 // pred_fallthru
          _
        // Predicated region
        $region33: #{tpu_custom_call.1} parent=11 // pred_check
          %p412 = pneg %p178
        $region34: #{tpu_custom_call.1} parent=11 // pred_check_branch
          %414 = sbr.rel (%p412) target = $region36
        $region35: #{tpu_custom_call.1} parent=11 // pred_region
          _
        $region36: #{tpu_custom_call.1} parent=11 // pred_fallthru
          _
        // Predicated region
        $region37: #{tpu_custom_call.1} parent=11 // pred_check
          %p415 = pneg %p199
        $region38: #{tpu_custom_call.1} parent=11 // pred_check_branch
          %417 = sbr.rel (%p415) target = $region40
        $region39: #{tpu_custom_call.1} parent=11 // pred_region
          %s419 = ssub.s32 6144, 6144
          %420 = vsyncadd [#allocation6], %s419
          %s421 = sshll.u32 [#allocation5], 4
          %s422 = int_to_ptr.vmem [resolvable:$true] %s421
          %427 = dma.hbm_to_vmem [thread:$0]  %s7, 6144, %s422, [#allocation6], 128, 128, 8
        $region40: #{tpu_custom_call.1} parent=11 // pred_fallthru
          _
        // Predicated region
        $region41: #{tpu_custom_call.1} parent=11 // pred_check
          %p428 = pneg %p220
        $region42: #{tpu_custom_call.1} parent=11 // pred_check_branch
          %430 = sbr.rel (%p428) target = $region44
        $region43: #{tpu_custom_call.1} parent=11 // pred_region
          _
        $region44: #{tpu_custom_call.1} parent=11 // pred_fallthru
          _
        // Predicated region
        $region45: #{tpu_custom_call.1} parent=11 // pred_check
          %p431 = pneg %p241
        $region46: #{tpu_custom_call.1} parent=11 // pred_check_branch
          %433 = sbr.rel (%p431) target = $region48
        $region47: #{tpu_custom_call.1} parent=11 // pred_region
          _
        $region48: #{tpu_custom_call.1} parent=11 // pred_fallthru
          _
        // Predicated region
        $region49: #{tpu_custom_call.1} parent=11 // pred_check
          %p434 = pneg %p262
        $region50: #{tpu_custom_call.1} parent=11 // pred_check_branch
          %436 = sbr.rel (%p434) target = $region52
        $region51: #{tpu_custom_call.1} parent=11 // pred_region
          _
        $region52: #{tpu_custom_call.1} parent=11 // pred_fallthru
          _
        // Predicated region
        $region53: #{tpu_custom_call.1} parent=11 // pred_check
          %p437 = pneg %p283
        $region54: #{tpu_custom_call.1} parent=11 // pred_check_branch
          %439 = sbr.rel (%p437) target = $region56
        $region55: #{tpu_custom_call.1} parent=11 // pred_region
          _
        $region56: #{tpu_custom_call.1} parent=11 // pred_fallthru
          _
        // Predicated region
        $region57: #{tpu_custom_call.1} parent=11 // pred_check
          %p440 = pneg %p304
        $region58: #{tpu_custom_call.1} parent=11 // pred_check_branch
          %442 = sbr.rel (%p440) target = $region60
        $region59: #{tpu_custom_call.1} parent=11 // pred_region
          _
        $region60: #{tpu_custom_call.1} parent=11 // pred_fallthru
          _
        // Predicated region
        $region61: #{tpu_custom_call.1} parent=11 // pred_check
          %p443 = pneg %p325
        $region62: #{tpu_custom_call.1} parent=11 // pred_check_branch
          %445 = sbr.rel (%p443) target = $region64
        $region63: #{tpu_custom_call.1} parent=11 // pred_region
          _
        $region64: #{tpu_custom_call.1} parent=11 // pred_fallthru
          _
        // Predicated region
        $region65: #{tpu_custom_call.1} parent=11 // pred_check
          %p446 = pneg %p346
        $region66: #{tpu_custom_call.1} parent=11 // pred_check_branch
          %448 = sbr.rel (%p446) target = $region68
        $region67: #{tpu_custom_call.1} parent=11 // pred_region
          _
        $region68: #{tpu_custom_call.1} parent=11 // pred_fallthru
          _
      $region12: #{tpu_custom_call.1} parent=5 // pred_fallthru
        _
      %p449 = scmp.lt.s32.totalorder %s26, 2
      // Predicated region
      $region69: #{tpu_custom_call.1} parent=5 // pred_check
        %p450 = pneg %p449
      $region70: #{tpu_custom_call.1} parent=5 // pred_check_branch
        %452 = sbr.rel (%p450) target = $region72
      $region71: #{tpu_custom_call.1} parent=5 // pred_region
        // Predicated region
        $region73: #{tpu_custom_call.1} parent=71 // pred_check
          %p453 = pneg %p46
        $region74: #{tpu_custom_call.1} parent=71 // pred_check_branch
          %455 = sbr.rel (%p453) target = $region76
        $region75: #{tpu_custom_call.1} parent=71 // pred_region
          %p456 = scmp.lt.s32.totalorder %s26, 1
          %s457 = scalar_select %p456, %s26, 1
          %s458 = smul.addr %s457, 2
          %s459 = smul.addr %s458, 8
          %s460 = scalar_lea.vmem %s0, %s459
        $region76: #{tpu_custom_call.1} parent=71 // pred_fallthru
          _
      $region72: #{tpu_custom_call.1} parent=5 // pred_fallthru
        _
      %p461 = scmp.le.s32.totalorder 1, %s26
      %p462 = scmp.lt.s32.totalorder %s26, 3
      %p463 = pnand %p461, %p462
      %p464 = pneg %p463
      // Predicated region
      $region77: #{tpu_custom_call.1} parent=5 // pred_check
        _
      $region78: #{tpu_custom_call.1} parent=5 // pred_check_branch
        %466 = sbr.rel (%p463) target = $region80
      $region79: #{tpu_custom_call.1} parent=5 // pred_region
        %s467 = ssub.s32 %s26, 1
        // Predicated region
        $region81: #{tpu_custom_call.1} parent=79 // pred_check
          %p468 = pneg %p73
        $region82: #{tpu_custom_call.1} parent=79 // pred_check_branch
          %470 = sbr.rel (%p468) target = $region84
        $region83: #{tpu_custom_call.1} parent=79 // pred_region
          %471 = dma.done [#allocation3], 4608
        $region84: #{tpu_custom_call.1} parent=79 // pred_fallthru
          _
        // Predicated region
        $region85: #{tpu_custom_call.1} parent=79 // pred_check
          %p472 = pneg %p199
        $region86: #{tpu_custom_call.1} parent=79 // pred_check_branch
          %474 = sbr.rel (%p472) target = $region88
        $region87: #{tpu_custom_call.1} parent=79 // pred_region
          %475 = dma.done [#allocation6], 6144
        $region88: #{tpu_custom_call.1} parent=79 // pred_fallthru
          _
        %p476 = scmp.lt.s32.totalorder %s31, 1
        %s477 = scalar_select %p476, %s31, 1
        %s478 = smul.addr %s477, 2
        %s479 = smul.addr %s478, 8
        %s480 = scalar_lea.vmem %s0, %s479
        %p481 = pneg %p52
        %p482 = pneg %p49
        %p483 = pneg %p73
        %p484 = pneg %p70
        %p485 = pneg %p94
        %p486 = pneg %p91
        %p487 = pneg %p115
        %p488 = pneg %p112
        %p489 = pneg %p136
        %p490 = pneg %p133
        %p491 = pneg %p157
        %p492 = pneg %p154
        %p493 = pneg %p178
        %p494 = pneg %p175
        %p495 = pneg %p199
        %p496 = pneg %p196
        %p497 = pneg %p220
        %p498 = pneg %p217
        %p499 = pneg %p241
        %p500 = pneg %p238
        %p501 = pneg %p262
        %p502 = pneg %p259
        %p503 = pneg %p283
        %p504 = pneg %p280
        %p505 = pneg %p304
        %p506 = pneg %p301
        %p507 = pneg %p325
        %p508 = pneg %p322
        %p509 = pneg %p346
        %p510 = pneg %p343
        %p511 = pneg %p372
        %p512 = pneg %p369
        %s513 = sand.u32 %s359, 1
        %s514 = scalar_lea.sflag [#allocation4], %s513
        %s515 = sand.u32 %s359, 1
        %s516 = scalar_lea.vmem [#allocation7], %s515
        %p517 = scmp.lt.s32.totalorder %s31, 1
        %s518 = scalar_select %p517, %s31, 1
        %s519 = smul.addr %s518, 2
        %s520 = smul.addr %s519, 8
        %s521 = scalar_lea.vmem %s0, %s520
        %v522 = vld [vmem:[%s521] sm:$0xff]
        %v523 = vld [vmem:[%s521 + $0x8] sm:$0xff]
        %v524 = vlaneseq
        %v525 = vshrl.u32 %v524, 7
        %v526 = vadd.s32 %v525, 8
        %v527 = vlaneseq
        %v528 = vand.u32 %v527, 127
        %v529 = vadd.s32 %v528, 1
        %vm530 = vcmp.eq.s32.totalorder %v525, %v529
        %vm531 = vcmp.eq.s32.totalorder %v526, %v529
        %v532 = vsel %vm530, 1, 0
        %v533 = vsel %vm531, 1, 0
        %v534 = vcvt.s32.f32 %v532
        %v535 = vcvt.s32.f32 %v533
        %vm536 = vcmask 130048
        %v538 = vsel %vm536, %v534, 0
        %v541 = vsel %vm536, %v535, 0
        %543 = vmatprep.subr.mxu0 0.0
        %544 = vmatpush1.msra.mxu0 %v522
        %545 = vmatprep.subr.mxu0 0.0
        %546 = vmatpush1.msra.mxu0 %v523
        %547 = vmatprep.subr.mxu0 0.0
        %548 = vmatpush1.msra.mxu0 0.0
        %549 = vmatprep.subr.mxu0 0.0
        %550 = vmatpush1.msra.mxu0 0.0
        %551 = vmatprep.subr.mxu0 0.0
        %552 = vmatpush1.msra.mxu0 0.0
        %553 = vmatprep.subr.mxu0 0.0
        %554 = vmatpush1.msra.mxu0 0.0
        %555 = vmatprep.subr.mxu0 0.0
        %556 = vmatpush1.msra.mxu0 0.0
        %557 = vmatprep.subr.mxu0 0.0
        %558 = vmatpush1.msra.mxu0 0.0
        %559 = vmatprep.subr.mxu0 0.0
        %560 = vmatpush1.msra.mxu0 0.0
        %561 = vmatprep.subr.mxu0 0.0
        %562 = vmatpush1.msra.mxu0 0.0
        %563 = vmatprep.subr.mxu0 0.0
        %564 = vmatpush1.msra.mxu0 0.0
        %565 = vmatprep.subr.mxu0 0.0
        %566 = vmatpush1.msra.mxu0 0.0
        %567 = vmatprep.subr.mxu0 0.0
        %568 = vmatpush1.msra.mxu0 0.0
        %569 = vmatprep.subr.mxu0 0.0
        %570 = vmatpush1.msra.mxu0 0.0
        %571 = vmatprep.subr.mxu0 0.0
        %572 = vmatpush1.msra.mxu0 0.0
        %573 = vmatprep.subr.mxu0 0.0
        %574 = vmatpush1.msra.mxu0 0.0
        %575 = vmatprep.subr.mxu0 0.0
        %576 = vmatpush1.msra.mxu0 0.0
        %577 = vmatprep.subr.mxu0 0.0
        %578 = vmatpush1.msra.mxu0 0.0
        %579 = vmatprep.subr.mxu0 0.0
        %580 = vmatpush1.msra.mxu0 0.0
        %581 = vmatprep.subr.mxu0 0.0
        %582 = vmatpush1.msra.mxu0 0.0
        %583 = vmatprep.subr.mxu0 0.0
        %584 = vmatpush1.msra.mxu0 0.0
        %585 = vmatprep.subr.mxu0 0.0
        %586 = vmatpush1.msra.mxu0 0.0
        %587 = vmatprep.subr.mxu0 0.0
        %588 = vmatpush1.msra.mxu0 0.0
        %589 = vmatprep.subr.mxu0 0.0
        %590 = vmatpush1.msra.mxu0 0.0
        %591 = vmatprep.subr.mxu0 0.0
        %592 = vmatpush1.msra.mxu0 0.0
        %593 = vmatprep.subr.mxu0 0.0
        %594 = vmatpush1.msra.mxu0 0.0
        %595 = vmatprep.subr.mxu0 0.0
        %596 = vmatpush1.msra.mxu0 0.0
        %597 = vmatprep.subr.mxu0 0.0
        %598 = vmatpush1.msra.mxu0 0.0
        %599 = vmatprep.subr.mxu0 0.0
        %600 = vmatpush1.msra.mxu0 0.0
        %601 = vmatprep.subr.mxu0 0.0
        %602 = vmatpush1.msra.mxu0 0.0
        %603 = vmatprep.subr.mxu0 0.0
        %604 = vmatpush1.msra.mxu0 0.0
        %605 = vmatprep.subr.mxu0 0.0
        %606 = vmatpush1.msra.mxu0 0.0
        %607 = vmatprep.mubr.f32.mxu0 0.0
        %608 = vmatmul.mubr.f32.gmra.mrb[0].mxu0 %v538
        %v609 = vpop.f32.mrb[0].mxu0
        %v610 = vadd.f32 0.0, %v609
        %v611 = vpop.f32.mrb[0].mxu0
        %612 = vmatprep.mubr.f32.mxu0 0.0
        %613 = vmatmul.mubr.f32.gmra.mrb[0].mxu0 %v541
        %v614 = vpop.f32.mrb[0].mxu0
        %v615 = vadd.f32 0.0, %v614
        %v616 = vpop.f32.mrb[0].mxu0
        %617 = vdwg.mxu0
        %v618 = vadd.s32 %v525, 1
        %v619 = vadd.s32 %v526, 1
        %vm620 = vcmp.eq.s32.totalorder %v528, %v618
        %vm621 = vcmp.eq.s32.totalorder %v528, %v619
        %v622 = vsel %vm620, 1, 0
        %v623 = vsel %vm621, 1, 0
        %v624 = vcvt.s32.f32 %v622
        %v625 = vcvt.s32.f32 %v623
        %v627 = vsel %vm536, %v624, 0
        %v630 = vsel %vm536, %v625, 0
        %632 = vmatprep.subr.mxu0 0.0
        %633 = vmatpush1.msra.mxu0 %v522
        %634 = vmatprep.subr.mxu0 0.0
        %635 = vmatpush1.msra.mxu0 %v523
        %636 = vmatprep.subr.mxu0 0.0
        %637 = vmatpush1.msra.mxu0 0.0
        %638 = vmatprep.subr.mxu0 0.0
        %639 = vmatpush1.msra.mxu0 0.0
        %640 = vmatprep.subr.mxu0 0.0
        %641 = vmatpush1.msra.mxu0 0.0
        %642 = vmatprep.subr.mxu0 0.0
        %643 = vmatpush1.msra.mxu0 0.0
        %644 = vmatprep.subr.mxu0 0.0
        %645 = vmatpush1.msra.mxu0 0.0
        %646 = vmatprep.subr.mxu0 0.0
        %647 = vmatpush1.msra.mxu0 0.0
        %648 = vmatprep.subr.mxu0 0.0
        %649 = vmatpush1.msra.mxu0 0.0
        %650 = vmatprep.subr.mxu0 0.0
        %651 = vmatpush1.msra.mxu0 0.0
        %652 = vmatprep.subr.mxu0 0.0
        %653 = vmatpush1.msra.mxu0 0.0
        %654 = vmatprep.subr.mxu0 0.0
        %655 = vmatpush1.msra.mxu0 0.0
        %656 = vmatprep.subr.mxu0 0.0
        %657 = vmatpush1.msra.mxu0 0.0
        %658 = vmatprep.subr.mxu0 0.0
        %659 = vmatpush1.msra.mxu0 0.0
        %660 = vmatprep.subr.mxu0 0.0
        %661 = vmatpush1.msra.mxu0 0.0
        %662 = vmatprep.subr.mxu0 0.0
        %663 = vmatpush1.msra.mxu0 0.0
        %664 = vmatprep.subr.mxu0 0.0
        %665 = vmatpush1.msra.mxu0 0.0
        %666 = vmatprep.subr.mxu0 0.0
        %667 = vmatpush1.msra.mxu0 0.0
        %668 = vmatprep.subr.mxu0 0.0
        %669 = vmatpush1.msra.mxu0 0.0
        %670 = vmatprep.subr.mxu0 0.0
        %671 = vmatpush1.msra.mxu0 0.0
        %672 = vmatprep.subr.mxu0 0.0
        %673 = vmatpush1.msra.mxu0 0.0
        %674 = vmatprep.subr.mxu0 0.0
        %675 = vmatpush1.msra.mxu0 0.0
        %676 = vmatprep.subr.mxu0 0.0
        %677 = vmatpush1.msra.mxu0 0.0
        %678 = vmatprep.subr.mxu0 0.0
        %679 = vmatpush1.msra.mxu0 0.0
        %680 = vmatprep.subr.mxu0 0.0
        %681 = vmatpush1.msra.mxu0 0.0
        %682 = vmatprep.subr.mxu0 0.0
        %683 = vmatpush1.msra.mxu0 0.0
        %684 = vmatprep.subr.mxu0 0.0
        %685 = vmatpush1.msra.mxu0 0.0
        %686 = vmatprep.subr.mxu0 0.0
        %687 = vmatpush1.msra.mxu0 0.0
        %688 = vmatprep.subr.mxu0 0.0
        %689 = vmatpush1.msra.mxu0 0.0
        %690 = vmatprep.subr.mxu0 0.0
        %691 = vmatpush1.msra.mxu0 0.0
        %692 = vmatprep.subr.mxu0 0.0
        %693 = vmatpush1.msra.mxu0 0.0
        %694 = vmatprep.subr.mxu0 0.0
        %695 = vmatpush1.msra.mxu0 0.0
        %696 = vmatprep.mubr.f32.mxu0 0.0
        %697 = vmatmul.mubr.f32.gmra.mrb[0].mxu0 %v627
        %v698 = vpop.f32.mrb[0].mxu0
        %v699 = vadd.f32 0.0, %v698
        %v700 = vpop.f32.mrb[0].mxu0
        %701 = vmatprep.mubr.f32.mxu0 0.0
        %702 = vmatmul.mubr.f32.gmra.mrb[0].mxu0 %v630
        %v703 = vpop.f32.mrb[0].mxu0
        %v704 = vadd.f32 0.0, %v703
        %v705 = vpop.f32.mrb[0].mxu0
        %706 = vdwg.mxu0
        %v707 = vld [vmem:[#allocation2] sm:$0xff]
        %v708 = vld [vmem:[#allocation2 + $0x8] sm:$0xff]
        %v709 = vld [vmem:[#allocation2 + $0x10] sm:$0xff]
        %v710 = vld [vmem:[#allocation2 + $0x18] sm:$0xff]
        %v711 = vld [vmem:[#allocation2 + $0x20] sm:$0xff]
        %v712 = vld [vmem:[#allocation2 + $0x28] sm:$0xff]
        %s713 = scalar_lea.vmem [#allocation2], 96
        %v714 = vld [vmem:[%s713] sm:$0xff]
        %v715 = vld [vmem:[%s713 + $0x8] sm:$0xff]
        %v716 = vld [vmem:[%s713 + $0x10] sm:$0xff]
        %v717 = vld [vmem:[%s713 + $0x18] sm:$0xff]
        %v718 = vld [vmem:[%s713 + $0x20] sm:$0xff]
        %v719 = vld [vmem:[%s713 + $0x28] sm:$0xff]
        %vm720 = vcmask 392192
        %v722 = vsel %vm720, %v522, 0
        %v725 = vsel %vm720, %v523, 0
        %727 = vmatprep.subr.mxu0 0.0
        %728 = vmatpush1.msra.mxu0 %v714
        %729 = vmatprep.subr.mxu0 0.0
        %730 = vmatpush1.msra.mxu0 %v715
        %731 = vmatprep.subr.mxu0 0.0
        %732 = vmatpush1.msra.mxu0 %v716
        %733 = vmatprep.subr.mxu0 0.0
        %734 = vmatpush1.msra.mxu0 %v717
        %735 = vmatprep.subr.mxu0 0.0
        %736 = vmatpush1.msra.mxu0 %v718
        %737 = vmatprep.subr.mxu0 0.0
        %738 = vmatpush1.msra.mxu0 %v719
        %739 = vmatprep.subr.mxu0 0.0
        %740 = vmatpush1.msra.mxu0 0.0
        %741 = vmatprep.subr.mxu0 0.0
        %742 = vmatpush1.msra.mxu0 0.0
        %743 = vmatprep.subr.mxu0 0.0
        %744 = vmatpush1.msra.mxu0 0.0
        %745 = vmatprep.subr.mxu0 0.0
        %746 = vmatpush1.msra.mxu0 0.0
        %747 = vmatprep.subr.mxu0 0.0
        %748 = vmatpush1.msra.mxu0 0.0
        %749 = vmatprep.subr.mxu0 0.0
        %750 = vmatpush1.msra.mxu0 0.0
        %751 = vmatprep.subr.mxu0 0.0
        %752 = vmatpush1.msra.mxu0 0.0
        %753 = vmatprep.subr.mxu0 0.0
        %754 = vmatpush1.msra.mxu0 0.0
        %755 = vmatprep.subr.mxu0 0.0
        %756 = vmatpush1.msra.mxu0 0.0
        %757 = vmatprep.subr.mxu0 0.0
        %758 = vmatpush1.msra.mxu0 0.0
        %759 = vmatprep.subr.mxu0 0.0
        %760 = vmatpush1.msra.mxu0 0.0
        %761 = vmatprep.subr.mxu0 0.0
        %762 = vmatpush1.msra.mxu0 0.0
        %763 = vmatprep.subr.mxu0 0.0
        %764 = vmatpush1.msra.mxu0 0.0
        %765 = vmatprep.subr.mxu0 0.0
        %766 = vmatpush1.msra.mxu0 0.0
        %767 = vmatprep.subr.mxu0 0.0
        %768 = vmatpush1.msra.mxu0 0.0
        %769 = vmatprep.subr.mxu0 0.0
        %770 = vmatpush1.msra.mxu0 0.0
        %771 = vmatprep.subr.mxu0 0.0
        %772 = vmatpush1.msra.mxu0 0.0
        %773 = vmatprep.subr.mxu0 0.0
        %774 = vmatpush1.msra.mxu0 0.0
        %775 = vmatprep.subr.mxu0 0.0
        %776 = vmatpush1.msra.mxu0 0.0
        %777 = vmatprep.subr.mxu0 0.0
        %778 = vmatpush1.msra.mxu0 0.0
        %779 = vmatprep.subr.mxu0 0.0
        %780 = vmatpush1.msra.mxu0 0.0
        %781 = vmatprep.subr.mxu0 0.0
        %782 = vmatpush1.msra.mxu0 0.0
        %783 = vmatprep.subr.mxu0 0.0
        %784 = vmatpush1.msra.mxu0 0.0
        %785 = vmatprep.subr.mxu0 0.0
        %786 = vmatpush1.msra.mxu0 0.0
        %787 = vmatprep.subr.mxu0 0.0
        %788 = vmatpush1.msra.mxu0 0.0
        %789 = vmatprep.subr.mxu0 0.0
        %790 = vmatpush1.msra.mxu0 0.0
        %791 = vmatprep.mubr.f32.mxu0 0.0
        %792 = vmatmul.mubr.f32.gmra.mrb[0].mxu0 %v722
        %v793 = vpop.f32.mrb[0].mxu0
        %v794 = vadd.f32 0.0, %v793
        %v795 = vpop.f32.mrb[0].mxu0
        %796 = vmatprep.mubr.f32.mxu0 0.0
        %797 = vmatmul.mubr.f32.gmra.mrb[0].mxu0 %v725
        %v798 = vpop.f32.mrb[0].mxu0
        %v799 = vadd.f32 0.0, %v798
        %v800 = vpop.f32.mrb[0].mxu0
        %801 = vdwg.mxu0
        %v803 = vsel %vm720, %v610, 0
        %v806 = vsel %vm720, %v615, 0
        %808 = vmatprep.subr.mxu0 0.0
        %809 = vmatpush1.msra.mxu0 %v707
        %810 = vmatprep.subr.mxu0 0.0
        %811 = vmatpush1.msra.mxu0 %v708
        %812 = vmatprep.subr.mxu0 0.0
        %813 = vmatpush1.msra.mxu0 %v709
        %814 = vmatprep.subr.mxu0 0.0
        %815 = vmatpush1.msra.mxu0 %v710
        %816 = vmatprep.subr.mxu0 0.0
        %817 = vmatpush1.msra.mxu0 %v711
        %818 = vmatprep.subr.mxu0 0.0
        %819 = vmatpush1.msra.mxu0 %v712
        %820 = vmatprep.subr.mxu0 0.0
        %821 = vmatpush1.msra.mxu0 0.0
        %822 = vmatprep.subr.mxu0 0.0
        %823 = vmatpush1.msra.mxu0 0.0
        %824 = vmatprep.subr.mxu0 0.0
        %825 = vmatpush1.msra.mxu0 0.0
        %826 = vmatprep.subr.mxu0 0.0
        %827 = vmatpush1.msra.mxu0 0.0
        %828 = vmatprep.subr.mxu0 0.0
        %829 = vmatpush1.msra.mxu0 0.0
        %830 = vmatprep.subr.mxu0 0.0
        %831 = vmatpush1.msra.mxu0 0.0
        %832 = vmatprep.subr.mxu0 0.0
        %833 = vmatpush1.msra.mxu0 0.0
        %834 = vmatprep.subr.mxu0 0.0
        %835 = vmatpush1.msra.mxu0 0.0
        %836 = vmatprep.subr.mxu0 0.0
        %837 = vmatpush1.msra.mxu0 0.0
        %838 = vmatprep.subr.mxu0 0.0
        %839 = vmatpush1.msra.mxu0 0.0
        %840 = vmatprep.subr.mxu0 0.0
        %841 = vmatpush1.msra.mxu0 0.0
        %842 = vmatprep.subr.mxu0 0.0
        %843 = vmatpush1.msra.mxu0 0.0
        %844 = vmatprep.subr.mxu0 0.0
        %845 = vmatpush1.msra.mxu0 0.0
        %846 = vmatprep.subr.mxu0 0.0
        %847 = vmatpush1.msra.mxu0 0.0
        %848 = vmatprep.subr.mxu0 0.0
        %849 = vmatpush1.msra.mxu0 0.0
        %850 = vmatprep.subr.mxu0 0.0
        %851 = vmatpush1.msra.mxu0 0.0
        %852 = vmatprep.subr.mxu0 0.0
        %853 = vmatpush1.msra.mxu0 0.0
        %854 = vmatprep.subr.mxu0 0.0
        %855 = vmatpush1.msra.mxu0 0.0
        %856 = vmatprep.subr.mxu0 0.0
        %857 = vmatpush1.msra.mxu0 0.0
        %858 = vmatprep.subr.mxu0 0.0
        %859 = vmatpush1.msra.mxu0 0.0
        %860 = vmatprep.subr.mxu0 0.0
        %861 = vmatpush1.msra.mxu0 0.0
        %862 = vmatprep.subr.mxu0 0.0
        %863 = vmatpush1.msra.mxu0 0.0
        %864 = vmatprep.subr.mxu0 0.0
        %865 = vmatpush1.msra.mxu0 0.0
        %866 = vmatprep.subr.mxu0 0.0
        %867 = vmatpush1.msra.mxu0 0.0
        %868 = vmatprep.subr.mxu0 0.0
        %869 = vmatpush1.msra.mxu0 0.0
        %870 = vmatprep.subr.mxu0 0.0
        %871 = vmatpush1.msra.mxu0 0.0
        %872 = vmatprep.mubr.f32.mxu0 0.0
        %873 = vmatmul.mubr.f32.gmra.mrb[0].mxu0 %v803
        %v874 = vpop.f32.mrb[0].mxu0
        %v875 = vadd.f32 %v794, %v874
        %v876 = vpop.f32.mrb[0].mxu0
        %877 = vmatprep.mubr.f32.mxu0 0.0
        %878 = vmatmul.mubr.f32.gmra.mrb[0].mxu0 %v806
        %v879 = vpop.f32.mrb[0].mxu0
        %v880 = vadd.f32 %v799, %v879
        %v881 = vpop.f32.mrb[0].mxu0
        %882 = vdwg.mxu0
        %s883 = scalar_lea.vmem [#allocation2], 192
        %v884 = vld [vmem:[%s883] sm:$0xff]
        %v885 = vld [vmem:[%s883 + $0x8] sm:$0xff]
        %v886 = vld [vmem:[%s883 + $0x10] sm:$0xff]
        %v887 = vld [vmem:[%s883 + $0x18] sm:$0xff]
        %v888 = vld [vmem:[%s883 + $0x20] sm:$0xff]
        %v889 = vld [vmem:[%s883 + $0x28] sm:$0xff]
        %v891 = vsel %vm720, %v699, 0
        %v894 = vsel %vm720, %v704, 0
        %896 = vmatprep.subr.mxu0 0.0
        %897 = vmatpush1.msra.mxu0 %v884
        %898 = vmatprep.subr.mxu0 0.0
        %899 = vmatpush1.msra.mxu0 %v885
        %900 = vmatprep.subr.mxu0 0.0
        %901 = vmatpush1.msra.mxu0 %v886
        %902 = vmatprep.subr.mxu0 0.0
        %903 = vmatpush1.msra.mxu0 %v887
        %904 = vmatprep.subr.mxu0 0.0
        %905 = vmatpush1.msra.mxu0 %v888
        %906 = vmatprep.subr.mxu0 0.0
        %907 = vmatpush1.msra.mxu0 %v889
        %908 = vmatprep.subr.mxu0 0.0
        %909 = vmatpush1.msra.mxu0 0.0
        %910 = vmatprep.subr.mxu0 0.0
        %911 = vmatpush1.msra.mxu0 0.0
        %912 = vmatprep.subr.mxu0 0.0
        %913 = vmatpush1.msra.mxu0 0.0
        %914 = vmatprep.subr.mxu0 0.0
        %915 = vmatpush1.msra.mxu0 0.0
        %916 = vmatprep.subr.mxu0 0.0
        %917 = vmatpush1.msra.mxu0 0.0
        %918 = vmatprep.subr.mxu0 0.0
        %919 = vmatpush1.msra.mxu0 0.0
        %920 = vmatprep.subr.mxu0 0.0
        %921 = vmatpush1.msra.mxu0 0.0
        %922 = vmatprep.subr.mxu0 0.0
        %923 = vmatpush1.msra.mxu0 0.0
        %924 = vmatprep.subr.mxu0 0.0
        %925 = vmatpush1.msra.mxu0 0.0
        %926 = vmatprep.subr.mxu0 0.0
        %927 = vmatpush1.msra.mxu0 0.0
        %928 = vmatprep.subr.mxu0 0.0
        %929 = vmatpush1.msra.mxu0 0.0
        %930 = vmatprep.subr.mxu0 0.0
        %931 = vmatpush1.msra.mxu0 0.0
        %932 = vmatprep.subr.mxu0 0.0
        %933 = vmatpush1.msra.mxu0 0.0
        %934 = vmatprep.subr.mxu0 0.0
        %935 = vmatpush1.msra.mxu0 0.0
        %936 = vmatprep.subr.mxu0 0.0
        %937 = vmatpush1.msra.mxu0 0.0
        %938 = vmatprep.subr.mxu0 0.0
        %939 = vmatpush1.msra.mxu0 0.0
        %940 = vmatprep.subr.mxu0 0.0
        %941 = vmatpush1.msra.mxu0 0.0
        %942 = vmatprep.subr.mxu0 0.0
        %943 = vmatpush1.msra.mxu0 0.0
        %944 = vmatprep.subr.mxu0 0.0
        %945 = vmatpush1.msra.mxu0 0.0
        %946 = vmatprep.subr.mxu0 0.0
        %947 = vmatpush1.msra.mxu0 0.0
        %948 = vmatprep.subr.mxu0 0.0
        %949 = vmatpush1.msra.mxu0 0.0
        %950 = vmatprep.subr.mxu0 0.0
        %951 = vmatpush1.msra.mxu0 0.0
        %952 = vmatprep.subr.mxu0 0.0
        %953 = vmatpush1.msra.mxu0 0.0
        %954 = vmatprep.subr.mxu0 0.0
        %955 = vmatpush1.msra.mxu0 0.0
        %956 = vmatprep.subr.mxu0 0.0
        %957 = vmatpush1.msra.mxu0 0.0
        %958 = vmatprep.subr.mxu0 0.0
        %959 = vmatpush1.msra.mxu0 0.0
        %960 = vmatprep.mubr.f32.mxu0 0.0
        %961 = vmatmul.mubr.f32.gmra.mrb[0].mxu0 %v891
        %v962 = vpop.f32.mrb[0].mxu0
        %v963 = vadd.f32 0.0, %v962
        %v964 = vpop.f32.mrb[0].mxu0
        %965 = vmatprep.mubr.f32.mxu0 0.0
        %966 = vmatmul.mubr.f32.gmra.mrb[0].mxu0 %v894
        %v967 = vpop.f32.mrb[0].mxu0
        %v968 = vadd.f32 0.0, %v967
        %v969 = vpop.f32.mrb[0].mxu0
        %970 = vdwg.mxu0
        %v971 = vadd.f32 %v875, %v963
        %v972 = vadd.f32 %v880, %v968
        %v973 = vld [vmem:[%s2] sm:$0x1]
        %v975 = vlaneseq
        %v976 = vshrl.u32 %v975, 7
        %v977 = vsub.s32 0, %v976
        %v978 = vrot.slane %v973, %v977
        %v980 = vmul.f32 %v971, %v978
        %v981 = vmul.f32 %v972, %v978
        %v982 = vld [vmem:[%s3] sm:$0x1]
        %v984 = vlaneseq
        %v985 = vshrl.u32 %v984, 7
        %v986 = vsub.s32 0, %v985
        %v987 = vrot.slane %v982, %v986
        %v989 = vadd.f32 %v980, %v987
        %v990 = vadd.f32 %v981, %v987
        %s991 = scalar_lea.vmem [#allocation2], 48
        %v992 = vld [vmem:[%s991] sm:$0xff]
        %v993 = vld [vmem:[%s991 + $0x8] sm:$0xff]
        %v994 = vld [vmem:[%s991 + $0x10] sm:$0xff]
        %v995 = vld [vmem:[%s991 + $0x18] sm:$0xff]
        %v996 = vld [vmem:[%s991 + $0x20] sm:$0xff]
        %v997 = vld [vmem:[%s991 + $0x28] sm:$0xff]
        %s998 = scalar_lea.vmem [#allocation2], 144
        %v999 = vld [vmem:[%s998] sm:$0xff]
        %v1000 = vld [vmem:[%s998 + $0x8] sm:$0xff]
        %v1001 = vld [vmem:[%s998 + $0x10] sm:$0xff]
        %v1002 = vld [vmem:[%s998 + $0x18] sm:$0xff]
        %v1003 = vld [vmem:[%s998 + $0x20] sm:$0xff]
        %v1004 = vld [vmem:[%s998 + $0x28] sm:$0xff]
        %1005 = vmatprep.subr.mxu0 0.0
        %1006 = vmatpush1.msra.mxu0 %v999
        %1007 = vmatprep.subr.mxu0 0.0
        %1008 = vmatpush1.msra.mxu0 %v1000
        %1009 = vmatprep.subr.mxu0 0.0
        %1010 = vmatpush1.msra.mxu0 %v1001
        %1011 = vmatprep.subr.mxu0 0.0
        %1012 = vmatpush1.msra.mxu0 %v1002
        %1013 = vmatprep.subr.mxu0 0.0
        %1014 = vmatpush1.msra.mxu0 %v1003
        %1015 = vmatprep.subr.mxu0 0.0
        %1016 = vmatpush1.msra.mxu0 %v1004
        %1017 = vmatprep.subr.mxu0 0.0
        %1018 = vmatpush1.msra.mxu0 0.0
        %1019 = vmatprep.subr.mxu0 0.0
        %1020 = vmatpush1.msra.mxu0 0.0
        %1021 = vmatprep.subr.mxu0 0.0
        %1022 = vmatpush1.msra.mxu0 0.0
        %1023 = vmatprep.subr.mxu0 0.0
        %1024 = vmatpush1.msra.mxu0 0.0
        %1025 = vmatprep.subr.mxu0 0.0
        %1026 = vmatpush1.msra.mxu0 0.0
        %1027 = vmatprep.subr.mxu0 0.0
        %1028 = vmatpush1.msra.mxu0 0.0
        %1029 = vmatprep.subr.mxu0 0.0
        %1030 = vmatpush1.msra.mxu0 0.0
        %1031 = vmatprep.subr.mxu0 0.0
        %1032 = vmatpush1.msra.mxu0 0.0
        %1033 = vmatprep.subr.mxu0 0.0
        %1034 = vmatpush1.msra.mxu0 0.0
        %1035 = vmatprep.subr.mxu0 0.0
        %1036 = vmatpush1.msra.mxu0 0.0
        %1037 = vmatprep.subr.mxu0 0.0
        %1038 = vmatpush1.msra.mxu0 0.0
        %1039 = vmatprep.subr.mxu0 0.0
        %1040 = vmatpush1.msra.mxu0 0.0
        %1041 = vmatprep.subr.mxu0 0.0
        %1042 = vmatpush1.msra.mxu0 0.0
        %1043 = vmatprep.subr.mxu0 0.0
        %1044 = vmatpush1.msra.mxu0 0.0
        %1045 = vmatprep.subr.mxu0 0.0
        %1046 = vmatpush1.msra.mxu0 0.0
        %1047 = vmatprep.subr.mxu0 0.0
        %1048 = vmatpush1.msra.mxu0 0.0
        %1049 = vmatprep.subr.mxu0 0.0
        %1050 = vmatpush1.msra.mxu0 0.0
        %1051 = vmatprep.subr.mxu0 0.0
        %1052 = vmatpush1.msra.mxu0 0.0
        %1053 = vmatprep.subr.mxu0 0.0
        %1054 = vmatpush1.msra.mxu0 0.0
        %1055 = vmatprep.subr.mxu0 0.0
        %1056 = vmatpush1.msra.mxu0 0.0
        %1057 = vmatprep.subr.mxu0 0.0
        %1058 = vmatpush1.msra.mxu0 0.0
        %1059 = vmatprep.subr.mxu0 0.0
        %1060 = vmatpush1.msra.mxu0 0.0
        %1061 = vmatprep.subr.mxu0 0.0
        %1062 = vmatpush1.msra.mxu0 0.0
        %1063 = vmatprep.subr.mxu0 0.0
        %1064 = vmatpush1.msra.mxu0 0.0
        %1065 = vmatprep.subr.mxu0 0.0
        %1066 = vmatpush1.msra.mxu0 0.0
        %1067 = vmatprep.subr.mxu0 0.0
        %1068 = vmatpush1.msra.mxu0 0.0
        %1069 = vmatprep.mubr.f32.mxu0 0.0
        %1070 = vmatmul.mubr.f32.gmra.mrb[0].mxu0 %v722
        %v1071 = vpop.f32.mrb[0].mxu0
        %v1072 = vadd.f32 0.0, %v1071
        %v1073 = vpop.f32.mrb[0].mxu0
        %1074 = vmatprep.mubr.f32.mxu0 0.0
        %1075 = vmatmul.mubr.f32.gmra.mrb[0].mxu0 %v725
        %v1076 = vpop.f32.mrb[0].mxu0
        %v1077 = vadd.f32 0.0, %v1076
        %v1078 = vpop.f32.mrb[0].mxu0
        %1079 = vdwg.mxu0
        %1080 = vmatprep.subr.mxu0 0.0
        %1081 = vmatpush1.msra.mxu0 %v992
        %1082 = vmatprep.subr.mxu0 0.0
        %1083 = vmatpush1.msra.mxu0 %v993
        %1084 = vmatprep.subr.mxu0 0.0
        %1085 = vmatpush1.msra.mxu0 %v994
        %1086 = vmatprep.subr.mxu0 0.0
        %1087 = vmatpush1.msra.mxu0 %v995
        %1088 = vmatprep.subr.mxu0 0.0
        %1089 = vmatpush1.msra.mxu0 %v996
        %1090 = vmatprep.subr.mxu0 0.0
        %1091 = vmatpush1.msra.mxu0 %v997
        %1092 = vmatprep.subr.mxu0 0.0
        %1093 = vmatpush1.msra.mxu0 0.0
        %1094 = vmatprep.subr.mxu0 0.0
        %1095 = vmatpush1.msra.mxu0 0.0
        %1096 = vmatprep.subr.mxu0 0.0
        %1097 = vmatpush1.msra.mxu0 0.0
        %1098 = vmatprep.subr.mxu0 0.0
        %1099 = vmatpush1.msra.mxu0 0.0
        %1100 = vmatprep.subr.mxu0 0.0
        %1101 = vmatpush1.msra.mxu0 0.0
        %1102 = vmatprep.subr.mxu0 0.0
        %1103 = vmatpush1.msra.mxu0 0.0
        %1104 = vmatprep.subr.mxu0 0.0
        %1105 = vmatpush1.msra.mxu0 0.0
        %1106 = vmatprep.subr.mxu0 0.0
        %1107 = vmatpush1.msra.mxu0 0.0
        %1108 = vmatprep.subr.mxu0 0.0
        %1109 = vmatpush1.msra.mxu0 0.0
        %1110 = vmatprep.subr.mxu0 0.0
        %1111 = vmatpush1.msra.mxu0 0.0
        %1112 = vmatprep.subr.mxu0 0.0
        %1113 = vmatpush1.msra.mxu0 0.0
        %1114 = vmatprep.subr.mxu0 0.0
        %1115 = vmatpush1.msra.mxu0 0.0
        %1116 = vmatprep.subr.mxu0 0.0
        %1117 = vmatpush1.msra.mxu0 0.0
        %1118 = vmatprep.subr.mxu0 0.0
        %1119 = vmatpush1.msra.mxu0 0.0
        %1120 = vmatprep.subr.mxu0 0.0
        %1121 = vmatpush1.msra.mxu0 0.0
        %1122 = vmatprep.subr.mxu0 0.0
        %1123 = vmatpush1.msra.mxu0 0.0
        %1124 = vmatprep.subr.mxu0 0.0
        %1125 = vmatpush1.msra.mxu0 0.0
        %1126 = vmatprep.subr.mxu0 0.0
        %1127 = vmatpush1.msra.mxu0 0.0
        %1128 = vmatprep.subr.mxu0 0.0
        %1129 = vmatpush1.msra.mxu0 0.0
        %1130 = vmatprep.subr.mxu0 0.0
        %1131 = vmatpush1.msra.mxu0 0.0
        %1132 = vmatprep.subr.mxu0 0.0
        %1133 = vmatpush1.msra.mxu0 0.0
        %1134 = vmatprep.subr.mxu0 0.0
        %1135 = vmatpush1.msra.mxu0 0.0
        %1136 = vmatprep.subr.mxu0 0.0
        %1137 = vmatpush1.msra.mxu0 0.0
        %1138 = vmatprep.subr.mxu0 0.0
        %1139 = vmatpush1.msra.mxu0 0.0
        %1140 = vmatprep.subr.mxu0 0.0
        %1141 = vmatpush1.msra.mxu0 0.0
        %1142 = vmatprep.subr.mxu0 0.0
        %1143 = vmatpush1.msra.mxu0 0.0
        %1144 = vmatprep.mubr.f32.mxu0 0.0
        %1145 = vmatmul.mubr.f32.gmra.mrb[0].mxu0 %v803
        %v1146 = vpop.f32.mrb[0].mxu0
        %v1147 = vadd.f32 %v1072, %v1146
        %v1148 = vpop.f32.mrb[0].mxu0
        %1149 = vmatprep.mubr.f32.mxu0 0.0
        %1150 = vmatmul.mubr.f32.gmra.mrb[0].mxu0 %v806
        %v1151 = vpop.f32.mrb[0].mxu0
        %v1152 = vadd.f32 %v1077, %v1151
        %v1153 = vpop.f32.mrb[0].mxu0
        %1154 = vdwg.mxu0
        %s1155 = scalar_lea.vmem [#allocation2], 240
        %v1156 = vld [vmem:[%s1155] sm:$0xff]
        %v1157 = vld [vmem:[%s1155 + $0x8] sm:$0xff]
        %v1158 = vld [vmem:[%s1155 + $0x10] sm:$0xff]
        %v1159 = vld [vmem:[%s1155 + $0x18] sm:$0xff]
        %v1160 = vld [vmem:[%s1155 + $0x20] sm:$0xff]
        %v1161 = vld [vmem:[%s1155 + $0x28] sm:$0xff]
        %1162 = vmatprep.subr.mxu0 0.0
        %1163 = vmatpush1.msra.mxu0 %v1156
        %1164 = vmatprep.subr.mxu0 0.0
        %1165 = vmatpush1.msra.mxu0 %v1157
        %1166 = vmatprep.subr.mxu0 0.0
        %1167 = vmatpush1.msra.mxu0 %v1158
        %1168 = vmatprep.subr.mxu0 0.0
        %1169 = vmatpush1.msra.mxu0 %v1159
        %1170 = vmatprep.subr.mxu0 0.0
        %1171 = vmatpush1.msra.mxu0 %v1160
        %1172 = vmatprep.subr.mxu0 0.0
        %1173 = vmatpush1.msra.mxu0 %v1161
        %1174 = vmatprep.subr.mxu0 0.0
        %1175 = vmatpush1.msra.mxu0 0.0
        %1176 = vmatprep.subr.mxu0 0.0
        %1177 = vmatpush1.msra.mxu0 0.0
        %1178 = vmatprep.subr.mxu0 0.0
        %1179 = vmatpush1.msra.mxu0 0.0
        %1180 = vmatprep.subr.mxu0 0.0
        %1181 = vmatpush1.msra.mxu0 0.0
        %1182 = vmatprep.subr.mxu0 0.0
        %1183 = vmatpush1.msra.mxu0 0.0
        %1184 = vmatprep.subr.mxu0 0.0
        %1185 = vmatpush1.msra.mxu0 0.0
        %1186 = vmatprep.subr.mxu0 0.0
        %1187 = vmatpush1.msra.mxu0 0.0
        %1188 = vmatprep.subr.mxu0 0.0
        %1189 = vmatpush1.msra.mxu0 0.0
        %1190 = vmatprep.subr.mxu0 0.0
        %1191 = vmatpush1.msra.mxu0 0.0
        %1192 = vmatprep.subr.mxu0 0.0
        %1193 = vmatpush1.msra.mxu0 0.0
        %1194 = vmatprep.subr.mxu0 0.0
        %1195 = vmatpush1.msra.mxu0 0.0
        %1196 = vmatprep.subr.mxu0 0.0
        %1197 = vmatpush1.msra.mxu0 0.0
        %1198 = vmatprep.subr.mxu0 0.0
        %1199 = vmatpush1.msra.mxu0 0.0
        %1200 = vmatprep.subr.mxu0 0.0
        %1201 = vmatpush1.msra.mxu0 0.0
        %1202 = vmatprep.subr.mxu0 0.0
        %1203 = vmatpush1.msra.mxu0 0.0
        %1204 = vmatprep.subr.mxu0 0.0
        %1205 = vmatpush1.msra.mxu0 0.0
        %1206 = vmatprep.subr.mxu0 0.0
        %1207 = vmatpush1.msra.mxu0 0.0
        %1208 = vmatprep.subr.mxu0 0.0
        %1209 = vmatpush1.msra.mxu0 0.0
        %1210 = vmatprep.subr.mxu0 0.0
        %1211 = vmatpush1.msra.mxu0 0.0
        %1212 = vmatprep.subr.mxu0 0.0
        %1213 = vmatpush1.msra.mxu0 0.0
        %1214 = vmatprep.subr.mxu0 0.0
        %1215 = vmatpush1.msra.mxu0 0.0
        %1216 = vmatprep.subr.mxu0 0.0
        %1217 = vmatpush1.msra.mxu0 0.0
        %1218 = vmatprep.subr.mxu0 0.0
        %1219 = vmatpush1.msra.mxu0 0.0
        %1220 = vmatprep.subr.mxu0 0.0
        %1221 = vmatpush1.msra.mxu0 0.0
        %1222 = vmatprep.subr.mxu0 0.0
        %1223 = vmatpush1.msra.mxu0 0.0
        %1224 = vmatprep.subr.mxu0 0.0
        %1225 = vmatpush1.msra.mxu0 0.0
        %1226 = vmatprep.mubr.f32.mxu0 0.0
        %1227 = vmatmul.mubr.f32.gmra.mrb[0].mxu0 %v891
        %v1228 = vpop.f32.mrb[0].mxu0
        %v1229 = vadd.f32 0.0, %v1228
        %v1230 = vpop.f32.mrb[0].mxu0
        %1231 = vmatprep.mubr.f32.mxu0 0.0
        %1232 = vmatmul.mubr.f32.gmra.mrb[0].mxu0 %v894
        %v1233 = vpop.f32.mrb[0].mxu0
        %v1234 = vadd.f32 0.0, %v1233
        %v1235 = vpop.f32.mrb[0].mxu0
        %1236 = vdwg.mxu0
        %v1237 = vadd.f32 %v1147, %v1229
        %v1238 = vadd.f32 %v1152, %v1234
        %v1239 = vmul.f32 %v1237, %v978
        %v1240 = vmul.f32 %v1238, %v978
        %v1241 = vadd.f32 %v1239, %v987
        %v1242 = vadd.f32 %v1240, %v987
        %v1243 = vmax.f32 %v989, %v1241
        %v1244 = vmax.f32 %v990, %v1242
        %v1247 = vcombine.high %v1243, %v1243
        %v1249 = vunpack.c.l.s4 1983009808
        %v1250 = vunpack.c.0.s8 %v1249
        %v1251 = vlaneseq
        %v1252 = vshrl.u32 %v1251, 7
        %v1253 = vsub.s32 %v1250, %v1252
        %v1254 = vrot.slane %v1243, %v1253
        %v1256 = vunpack.c.l.s4 1983009808
        %v1257 = vunpack.c.0.s8 %v1256
        %v1258 = vlaneseq
        %v1259 = vshrl.u32 %v1258, 7
        %v1260 = vsub.s32 %v1257, %v1259
        %v1261 = vrot.slane %v1247, %v1260
        %v1262 = vcombine.high %v1254, %v1254
        %v1263 = vcombine.high %v1261, %v1261
        %v1264 = vcombine.high %v1244, %v1244
        %v1266 = vunpack.c.l.s4 1983009808
        %v1267 = vunpack.c.0.s8 %v1266
        %v1268 = vlaneseq
        %v1269 = vshrl.u32 %v1268, 7
        %v1270 = vsub.s32 %v1267, %v1269
        %v1271 = vrot.slane %v1244, %v1270
        %v1273 = vunpack.c.l.s4 1983009808
        %v1274 = vunpack.c.0.s8 %v1273
        %v1275 = vlaneseq
        %v1276 = vshrl.u32 %v1275, 7
        %v1277 = vsub.s32 %v1274, %v1276
        %v1278 = vrot.slane %v1264, %v1277
        %v1279 = vcombine.high %v1271, %v1271
        %v1280 = vcombine.high %v1278, %v1278
        %v1289 = vrot.slane %v1254, 7
        %v1290 = vrot.slane %v1289, 2
        %v1291 = vrot.slane %v1262, 7
        %v1292 = vrot.slane %v1291, 2
        %v1293 = vrot.slane %v1261, 7
        %v1294 = vrot.slane %v1293, 2
        %v1295 = vrot.slane %v1263, 7
        %v1296 = vrot.slane %v1295, 2
        %v1297 = vrot.slane %v1271, 7
        %v1298 = vrot.slane %v1297, 2
        %v1299 = vrot.slane %v1279, 7
        %v1300 = vrot.slane %v1299, 2
        %v1301 = vrot.slane %v1278, 7
        %v1302 = vrot.slane %v1301, 2
        %v1303 = vrot.slane %v1280, 7
        %v1304 = vrot.slane %v1303, 2
        %v1313 = vmax.f32 %v1254, %v1290
        %v1314 = vmax.f32 %v1262, %v1292
        %v1315 = vmax.f32 %v1261, %v1294
        %v1316 = vmax.f32 %v1263, %v1296
        %v1317 = vmax.f32 %v1271, %v1298
        %v1318 = vmax.f32 %v1279, %v1300
        %v1319 = vmax.f32 %v1278, %v1302
        %v1320 = vmax.f32 %v1280, %v1304
        %v1321 = vmax.f32 %v1313, 0.0
        %v1322 = vmax.f32 %v1314, 0.0
        %v1323 = vmax.f32 %v1315, 0.0
        %v1324 = vmax.f32 %v1316, 0.0
        %v1325 = vmax.f32 %v1317, 0.0
        %v1326 = vmax.f32 %v1318, 0.0
        %v1327 = vmax.f32 %v1319, 0.0
        %v1328 = vmax.f32 %v1320, 0.0
        %v1337 = vlaneseq
        %v1338 = vshrl.u32 %v1337, 7
        %v1339 = vsub.s32 0, %v1338
        %v1340 = vrot.slane %v1321, %v1339
        %v1341 = vlaneseq
        %v1342 = vshrl.u32 %v1341, 7
        %v1343 = vsub.s32 0, %v1342
        %v1344 = vrot.slane %v1322, %v1343
        %v1345 = vlaneseq
        %v1346 = vshrl.u32 %v1345, 7
        %v1347 = vsub.s32 0, %v1346
        %v1348 = vrot.slane %v1323, %v1347
        %v1349 = vlaneseq
        %v1350 = vshrl.u32 %v1349, 7
        %v1351 = vsub.s32 0, %v1350
        %v1352 = vrot.slane %v1324, %v1351
        %v1353 = vlaneseq
        %v1354 = vshrl.u32 %v1353, 7
        %v1355 = vsub.s32 0, %v1354
        %v1356 = vrot.slane %v1325, %v1355
        %v1357 = vlaneseq
        %v1358 = vshrl.u32 %v1357, 7
        %v1359 = vsub.s32 0, %v1358
        %v1360 = vrot.slane %v1326, %v1359
        %v1361 = vlaneseq
        %v1362 = vshrl.u32 %v1361, 7
        %v1363 = vsub.s32 0, %v1362
        %v1364 = vrot.slane %v1327, %v1363
        %v1365 = vlaneseq
        %v1366 = vshrl.u32 %v1365, 7
        %v1367 = vsub.s32 0, %v1366
        %v1368 = vrot.slane %v1328, %v1367
        %vm1369 = vcmask 1041409
        %v1370 = vsel %vm1369, %v1344, %v1340
        %vm1371 = vcmask 1042434
        %v1372 = vsel %vm1371, %v1348, %v1370
        %vm1373 = vcmask 1043459
        %v1374 = vsel %vm1373, %v1352, %v1372
        %vm1375 = vcmask 1044484
        %v1376 = vsel %vm1375, %v1356, %v1374
        %vm1377 = vcmask 1045509
        %v1378 = vsel %vm1377, %v1360, %v1376
        %vm1379 = vcmask 1046534
        %v1380 = vsel %vm1379, %v1364, %v1378
        %vm1381 = vcmask 1047559
        %v1382 = vsel %vm1381, %v1368, %v1380
        %vm1384 = vcmask 64512
        %v1385 = vsel %vm1384, %v534, 0
        %1387 = vmatprep.subr.mxu0 0.0
        %1388 = vmatpush1.msra.mxu0 %v1382
        %1389 = vmatprep.subr.mxu0 0.0
        %1390 = vmatpush1.msra.mxu0 0.0
        %1391 = vmatprep.subr.mxu0 0.0
        %1392 = vmatpush1.msra.mxu0 0.0
        %1393 = vmatprep.subr.mxu0 0.0
        %1394 = vmatpush1.msra.mxu0 0.0
        %1395 = vmatprep.subr.mxu0 0.0
        %1396 = vmatpush1.msra.mxu0 0.0
        %1397 = vmatprep.subr.mxu0 0.0
        %1398 = vmatpush1.msra.mxu0 0.0
        %1399 = vmatprep.subr.mxu0 0.0
        %1400 = vmatpush1.msra.mxu0 0.0
        %1401 = vmatprep.subr.mxu0 0.0
        %1402 = vmatpush1.msra.mxu0 0.0
        %1403 = vmatprep.subr.mxu0 0.0
        %1404 = vmatpush1.msra.mxu0 0.0
        %1405 = vmatprep.subr.mxu0 0.0
        %1406 = vmatpush1.msra.mxu0 0.0
        %1407 = vmatprep.subr.mxu0 0.0
        %1408 = vmatpush1.msra.mxu0 0.0
        %1409 = vmatprep.subr.mxu0 0.0
        %1410 = vmatpush1.msra.mxu0 0.0
        %1411 = vmatprep.subr.mxu0 0.0
        %1412 = vmatpush1.msra.mxu0 0.0
        %1413 = vmatprep.subr.mxu0 0.0
        %1414 = vmatpush1.msra.mxu0 0.0
        %1415 = vmatprep.subr.mxu0 0.0
        %1416 = vmatpush1.msra.mxu0 0.0
        %1417 = vmatprep.subr.mxu0 0.0
        %1418 = vmatpush1.msra.mxu0 0.0
        %1419 = vmatprep.subr.mxu0 0.0
        %1420 = vmatpush1.msra.mxu0 0.0
        %1421 = vmatprep.subr.mxu0 0.0
        %1422 = vmatpush1.msra.mxu0 0.0
        %1423 = vmatprep.subr.mxu0 0.0
        %1424 = vmatpush1.msra.mxu0 0.0
        %1425 = vmatprep.subr.mxu0 0.0
        %1426 = vmatpush1.msra.mxu0 0.0
        %1427 = vmatprep.subr.mxu0 0.0
        %1428 = vmatpush1.msra.mxu0 0.0
        %1429 = vmatprep.subr.mxu0 0.0
        %1430 = vmatpush1.msra.mxu0 0.0
        %1431 = vmatprep.subr.mxu0 0.0
        %1432 = vmatpush1.msra.mxu0 0.0
        %1433 = vmatprep.subr.mxu0 0.0
        %1434 = vmatpush1.msra.mxu0 0.0
        %1435 = vmatprep.subr.mxu0 0.0
        %1436 = vmatpush1.msra.mxu0 0.0
        %1437 = vmatprep.subr.mxu0 0.0
        %1438 = vmatpush1.msra.mxu0 0.0
        %1439 = vmatprep.subr.mxu0 0.0
        %1440 = vmatpush1.msra.mxu0 0.0
        %1441 = vmatprep.subr.mxu0 0.0
        %1442 = vmatpush1.msra.mxu0 0.0
        %1443 = vmatprep.subr.mxu0 0.0
        %1444 = vmatpush1.msra.mxu0 0.0
        %1445 = vmatprep.subr.mxu0 0.0
        %1446 = vmatpush1.msra.mxu0 0.0
        %1447 = vmatprep.subr.mxu0 0.0
        %1448 = vmatpush1.msra.mxu0 0.0
        %1449 = vmatprep.subr.mxu0 0.0
        %1450 = vmatpush1.msra.mxu0 0.0
        %1451 = vmatprep.mubr.f32.mxu0 0.0
        %1452 = vmatmul.mubr.f32.gmra.mrb[0].mxu0 %v1385
        %v1453 = vpop.f32.mrb[0].mxu0
        %v1454 = vadd.f32 0.0, %v1453
        %v1455 = vpop.f32.mrb[0].mxu0
        %1456 = vdwg.mxu0
        %v1457 = vsel %vm1384, %v624, 0
        %1459 = vmatprep.subr.mxu0 0.0
        %1460 = vmatpush1.msra.mxu0 %v1382
        %1461 = vmatprep.subr.mxu0 0.0
        %1462 = vmatpush1.msra.mxu0 0.0
        %1463 = vmatprep.subr.mxu0 0.0
        %1464 = vmatpush1.msra.mxu0 0.0
        %1465 = vmatprep.subr.mxu0 0.0
        %1466 = vmatpush1.msra.mxu0 0.0
        %1467 = vmatprep.subr.mxu0 0.0
        %1468 = vmatpush1.msra.mxu0 0.0
        %1469 = vmatprep.subr.mxu0 0.0
        %1470 = vmatpush1.msra.mxu0 0.0
        %1471 = vmatprep.subr.mxu0 0.0
        %1472 = vmatpush1.msra.mxu0 0.0
        %1473 = vmatprep.subr.mxu0 0.0
        %1474 = vmatpush1.msra.mxu0 0.0
        %1475 = vmatprep.subr.mxu0 0.0
        %1476 = vmatpush1.msra.mxu0 0.0
        %1477 = vmatprep.subr.mxu0 0.0
        %1478 = vmatpush1.msra.mxu0 0.0
        %1479 = vmatprep.subr.mxu0 0.0
        %1480 = vmatpush1.msra.mxu0 0.0
        %1481 = vmatprep.subr.mxu0 0.0
        %1482 = vmatpush1.msra.mxu0 0.0
        %1483 = vmatprep.subr.mxu0 0.0
        %1484 = vmatpush1.msra.mxu0 0.0
        %1485 = vmatprep.subr.mxu0 0.0
        %1486 = vmatpush1.msra.mxu0 0.0
        %1487 = vmatprep.subr.mxu0 0.0
        %1488 = vmatpush1.msra.mxu0 0.0
        %1489 = vmatprep.subr.mxu0 0.0
        %1490 = vmatpush1.msra.mxu0 0.0
        %1491 = vmatprep.subr.mxu0 0.0
        %1492 = vmatpush1.msra.mxu0 0.0
        %1493 = vmatprep.subr.mxu0 0.0
        %1494 = vmatpush1.msra.mxu0 0.0
        %1495 = vmatprep.subr.mxu0 0.0
        %1496 = vmatpush1.msra.mxu0 0.0
        %1497 = vmatprep.subr.mxu0 0.0
        %1498 = vmatpush1.msra.mxu0 0.0
        %1499 = vmatprep.subr.mxu0 0.0
        %1500 = vmatpush1.msra.mxu0 0.0
        %1501 = vmatprep.subr.mxu0 0.0
        %1502 = vmatpush1.msra.mxu0 0.0
        %1503 = vmatprep.subr.mxu0 0.0
        %1504 = vmatpush1.msra.mxu0 0.0
        %1505 = vmatprep.subr.mxu0 0.0
        %1506 = vmatpush1.msra.mxu0 0.0
        %1507 = vmatprep.subr.mxu0 0.0
        %1508 = vmatpush1.msra.mxu0 0.0
        %1509 = vmatprep.subr.mxu0 0.0
        %1510 = vmatpush1.msra.mxu0 0.0
        %1511 = vmatprep.subr.mxu0 0.0
        %1512 = vmatpush1.msra.mxu0 0.0
        %1513 = vmatprep.subr.mxu0 0.0
        %1514 = vmatpush1.msra.mxu0 0.0
        %1515 = vmatprep.subr.mxu0 0.0
        %1516 = vmatpush1.msra.mxu0 0.0
        %1517 = vmatprep.subr.mxu0 0.0
        %1518 = vmatpush1.msra.mxu0 0.0
        %1519 = vmatprep.subr.mxu0 0.0
        %1520 = vmatpush1.msra.mxu0 0.0
        %1521 = vmatprep.subr.mxu0 0.0
        %1522 = vmatpush1.msra.mxu0 0.0
        %1523 = vmatprep.mubr.f32.mxu0 0.0
        %1524 = vmatmul.mubr.f32.gmra.mrb[0].mxu0 %v1457
        %v1525 = vpop.f32.mrb[0].mxu0
        %v1526 = vadd.f32 0.0, %v1525
        %v1527 = vpop.f32.mrb[0].mxu0
        %1528 = vdwg.mxu0
        %v1529 = vld [vmem:[%s4] sm:$0xff]
        %v1530 = vld [vmem:[%s4 + $0x8] sm:$0xff]
        %v1531 = vld [vmem:[%s4 + $0x10] sm:$0xff]
        %v1532 = vld [vmem:[%s4 + $0x18] sm:$0xff]
        %v1533 = vld [vmem:[%s4 + $0x20] sm:$0xff]
        %v1534 = vld [vmem:[%s4 + $0x28] sm:$0xff]
        %v1535 = vld [vmem:[%s4 + $0x30] sm:$0xff]
        %v1536 = vld [vmem:[%s4 + $0x38] sm:$0xff]
        %s1537 = scalar_lea.vmem %s4, 128
        %v1538 = vld [vmem:[%s1537] sm:$0xff]
        %v1539 = vld [vmem:[%s1537 + $0x8] sm:$0xff]
        %v1540 = vld [vmem:[%s1537 + $0x10] sm:$0xff]
        %v1541 = vld [vmem:[%s1537 + $0x18] sm:$0xff]
        %v1542 = vld [vmem:[%s1537 + $0x20] sm:$0xff]
        %v1543 = vld [vmem:[%s1537 + $0x28] sm:$0xff]
        %v1544 = vld [vmem:[%s1537 + $0x30] sm:$0xff]
        %v1545 = vld [vmem:[%s1537 + $0x38] sm:$0xff]
        %vm1546 = vcmask 523264
        %v1547 = vsel %vm1546, %v1382, 0
        %1549 = vmatprep.subr.mxu0 0.0
        %1550 = vmatpush1.msra.mxu0 %v1538
        %1551 = vmatprep.subr.mxu0 0.0
        %1552 = vmatpush1.msra.mxu0 %v1539
        %1553 = vmatprep.subr.mxu0 0.0
        %1554 = vmatpush1.msra.mxu0 %v1540
        %1555 = vmatprep.subr.mxu0 0.0
        %1556 = vmatpush1.msra.mxu0 %v1541
        %1557 = vmatprep.subr.mxu0 0.0
        %1558 = vmatpush1.msra.mxu0 %v1542
        %1559 = vmatprep.subr.mxu0 0.0
        %1560 = vmatpush1.msra.mxu0 %v1543
        %1561 = vmatprep.subr.mxu0 0.0
        %1562 = vmatpush1.msra.mxu0 %v1544
        %1563 = vmatprep.subr.mxu0 0.0
        %1564 = vmatpush1.msra.mxu0 %v1545
        %1565 = vmatprep.subr.mxu0 0.0
        %1566 = vmatpush1.msra.mxu0 0.0
        %1567 = vmatprep.subr.mxu0 0.0
        %1568 = vmatpush1.msra.mxu0 0.0
        %1569 = vmatprep.subr.mxu0 0.0
        %1570 = vmatpush1.msra.mxu0 0.0
        %1571 = vmatprep.subr.mxu0 0.0
        %1572 = vmatpush1.msra.mxu0 0.0
        %1573 = vmatprep.subr.mxu0 0.0
        %1574 = vmatpush1.msra.mxu0 0.0
        %1575 = vmatprep.subr.mxu0 0.0
        %1576 = vmatpush1.msra.mxu0 0.0
        %1577 = vmatprep.subr.mxu0 0.0
        %1578 = vmatpush1.msra.mxu0 0.0
        %1579 = vmatprep.subr.mxu0 0.0
        %1580 = vmatpush1.msra.mxu0 0.0
        %1581 = vmatprep.subr.mxu0 0.0
        %1582 = vmatpush1.msra.mxu0 0.0
        %1583 = vmatprep.subr.mxu0 0.0
        %1584 = vmatpush1.msra.mxu0 0.0
        %1585 = vmatprep.subr.mxu0 0.0
        %1586 = vmatpush1.msra.mxu0 0.0
        %1587 = vmatprep.subr.mxu0 0.0
        %1588 = vmatpush1.msra.mxu0 0.0
        %1589 = vmatprep.subr.mxu0 0.0
        %1590 = vmatpush1.msra.mxu0 0.0
        %1591 = vmatprep.subr.mxu0 0.0
        %1592 = vmatpush1.msra.mxu0 0.0
        %1593 = vmatprep.subr.mxu0 0.0
        %1594 = vmatpush1.msra.mxu0 0.0
        %1595 = vmatprep.subr.mxu0 0.0
        %1596 = vmatpush1.msra.mxu0 0.0
        %1597 = vmatprep.subr.mxu0 0.0
        %1598 = vmatpush1.msra.mxu0 0.0
        %1599 = vmatprep.subr.mxu0 0.0
        %1600 = vmatpush1.msra.mxu0 0.0
        %1601 = vmatprep.subr.mxu0 0.0
        %1602 = vmatpush1.msra.mxu0 0.0
        %1603 = vmatprep.subr.mxu0 0.0
        %1604 = vmatpush1.msra.mxu0 0.0
        %1605 = vmatprep.subr.mxu0 0.0
        %1606 = vmatpush1.msra.mxu0 0.0
        %1607 = vmatprep.subr.mxu0 0.0
        %1608 = vmatpush1.msra.mxu0 0.0
        %1609 = vmatprep.subr.mxu0 0.0
        %1610 = vmatpush1.msra.mxu0 0.0
        %1611 = vmatprep.subr.mxu0 0.0
        %1612 = vmatpush1.msra.mxu0 0.0
        %1613 = vmatprep.mubr.f32.mxu0 0.0
        %1614 = vmatmul.mubr.f32.gmra.mrb[0].mxu0 %v1547
        %v1615 = vpop.f32.mrb[0].mxu0
        %v1616 = vadd.f32 0.0, %v1615
        %v1617 = vpop.f32.mrb[0].mxu0
        %1618 = vdwg.mxu0
        %v1620 = vsel %vm1546, %v1454, 0
        %1622 = vmatprep.subr.mxu0 0.0
        %1623 = vmatpush1.msra.mxu0 %v1529
        %1624 = vmatprep.subr.mxu0 0.0
        %1625 = vmatpush1.msra.mxu0 %v1530
        %1626 = vmatprep.subr.mxu0 0.0
        %1627 = vmatpush1.msra.mxu0 %v1531
        %1628 = vmatprep.subr.mxu0 0.0
        %1629 = vmatpush1.msra.mxu0 %v1532
        %1630 = vmatprep.subr.mxu0 0.0
        %1631 = vmatpush1.msra.mxu0 %v1533
        %1632 = vmatprep.subr.mxu0 0.0
        %1633 = vmatpush1.msra.mxu0 %v1534
        %1634 = vmatprep.subr.mxu0 0.0
        %1635 = vmatpush1.msra.mxu0 %v1535
        %1636 = vmatprep.subr.mxu0 0.0
        %1637 = vmatpush1.msra.mxu0 %v1536
        %1638 = vmatprep.subr.mxu0 0.0
        %1639 = vmatpush1.msra.mxu0 0.0
        %1640 = vmatprep.subr.mxu0 0.0
        %1641 = vmatpush1.msra.mxu0 0.0
        %1642 = vmatprep.subr.mxu0 0.0
        %1643 = vmatpush1.msra.mxu0 0.0
        %1644 = vmatprep.subr.mxu0 0.0
        %1645 = vmatpush1.msra.mxu0 0.0
        %1646 = vmatprep.subr.mxu0 0.0
        %1647 = vmatpush1.msra.mxu0 0.0
        %1648 = vmatprep.subr.mxu0 0.0
        %1649 = vmatpush1.msra.mxu0 0.0
        %1650 = vmatprep.subr.mxu0 0.0
        %1651 = vmatpush1.msra.mxu0 0.0
        %1652 = vmatprep.subr.mxu0 0.0
        %1653 = vmatpush1.msra.mxu0 0.0
        %1654 = vmatprep.subr.mxu0 0.0
        %1655 = vmatpush1.msra.mxu0 0.0
        %1656 = vmatprep.subr.mxu0 0.0
        %1657 = vmatpush1.msra.mxu0 0.0
        %1658 = vmatprep.subr.mxu0 0.0
        %1659 = vmatpush1.msra.mxu0 0.0
        %1660 = vmatprep.subr.mxu0 0.0
        %1661 = vmatpush1.msra.mxu0 0.0
        %1662 = vmatprep.subr.mxu0 0.0
        %1663 = vmatpush1.msra.mxu0 0.0
        %1664 = vmatprep.subr.mxu0 0.0
        %1665 = vmatpush1.msra.mxu0 0.0
        %1666 = vmatprep.subr.mxu0 0.0
        %1667 = vmatpush1.msra.mxu0 0.0
        %1668 = vmatprep.subr.mxu0 0.0
        %1669 = vmatpush1.msra.mxu0 0.0
        %1670 = vmatprep.subr.mxu0 0.0
        %1671 = vmatpush1.msra.mxu0 0.0
        %1672 = vmatprep.subr.mxu0 0.0
        %1673 = vmatpush1.msra.mxu0 0.0
        %1674 = vmatprep.subr.mxu0 0.0
        %1675 = vmatpush1.msra.mxu0 0.0
        %1676 = vmatprep.subr.mxu0 0.0
        %1677 = vmatpush1.msra.mxu0 0.0
        %1678 = vmatprep.subr.mxu0 0.0
        %1679 = vmatpush1.msra.mxu0 0.0
        %1680 = vmatprep.subr.mxu0 0.0
        %1681 = vmatpush1.msra.mxu0 0.0
        %1682 = vmatprep.subr.mxu0 0.0
        %1683 = vmatpush1.msra.mxu0 0.0
        %1684 = vmatprep.subr.mxu0 0.0
        %1685 = vmatpush1.msra.mxu0 0.0
        %1686 = vmatprep.mubr.f32.mxu0 0.0
        %1687 = vmatmul.mubr.f32.gmra.mrb[0].mxu0 %v1620
        %v1688 = vpop.f32.mrb[0].mxu0
        %v1689 = vadd.f32 %v1616, %v1688
        %v1690 = vpop.f32.mrb[0].mxu0
        %1691 = vdwg.mxu0
        %s1692 = scalar_lea.vmem %s4, 256
        %v1693 = vld [vmem:[%s1692] sm:$0xff]
        %v1694 = vld [vmem:[%s1692 + $0x8] sm:$0xff]
        %v1695 = vld [vmem:[%s1692 + $0x10] sm:$0xff]
        %v1696 = vld [vmem:[%s1692 + $0x18] sm:$0xff]
        %v1697 = vld [vmem:[%s1692 + $0x20] sm:$0xff]
        %v1698 = vld [vmem:[%s1692 + $0x28] sm:$0xff]
        %v1699 = vld [vmem:[%s1692 + $0x30] sm:$0xff]
        %v1700 = vld [vmem:[%s1692 + $0x38] sm:$0xff]
        %v1702 = vsel %vm1546, %v1526, 0
        %1704 = vmatprep.subr.mxu0 0.0
        %1705 = vmatpush1.msra.mxu0 %v1693
        %1706 = vmatprep.subr.mxu0 0.0
        %1707 = vmatpush1.msra.mxu0 %v1694
        %1708 = vmatprep.subr.mxu0 0.0
        %1709 = vmatpush1.msra.mxu0 %v1695
        %1710 = vmatprep.subr.mxu0 0.0
        %1711 = vmatpush1.msra.mxu0 %v1696
        %1712 = vmatprep.subr.mxu0 0.0
        %1713 = vmatpush1.msra.mxu0 %v1697
        %1714 = vmatprep.subr.mxu0 0.0
        %1715 = vmatpush1.msra.mxu0 %v1698
        %1716 = vmatprep.subr.mxu0 0.0
        %1717 = vmatpush1.msra.mxu0 %v1699
        %1718 = vmatprep.subr.mxu0 0.0
        %1719 = vmatpush1.msra.mxu0 %v1700
        %1720 = vmatprep.subr.mxu0 0.0
        %1721 = vmatpush1.msra.mxu0 0.0
        %1722 = vmatprep.subr.mxu0 0.0
        %1723 = vmatpush1.msra.mxu0 0.0
        %1724 = vmatprep.subr.mxu0 0.0
        %1725 = vmatpush1.msra.mxu0 0.0
        %1726 = vmatprep.subr.mxu0 0.0
        %1727 = vmatpush1.msra.mxu0 0.0
        %1728 = vmatprep.subr.mxu0 0.0
        %1729 = vmatpush1.msra.mxu0 0.0
        %1730 = vmatprep.subr.mxu0 0.0
        %1731 = vmatpush1.msra.mxu0 0.0
        %1732 = vmatprep.subr.mxu0 0.0
        %1733 = vmatpush1.msra.mxu0 0.0
        %1734 = vmatprep.subr.mxu0 0.0
        %1735 = vmatpush1.msra.mxu0 0.0
        %1736 = vmatprep.subr.mxu0 0.0
        %1737 = vmatpush1.msra.mxu0 0.0
        %1738 = vmatprep.subr.mxu0 0.0
        %1739 = vmatpush1.msra.mxu0 0.0
        %1740 = vmatprep.subr.mxu0 0.0
        %1741 = vmatpush1.msra.mxu0 0.0
        %1742 = vmatprep.subr.mxu0 0.0
        %1743 = vmatpush1.msra.mxu0 0.0
        %1744 = vmatprep.subr.mxu0 0.0
        %1745 = vmatpush1.msra.mxu0 0.0
        %1746 = vmatprep.subr.mxu0 0.0
        %1747 = vmatpush1.msra.mxu0 0.0
        %1748 = vmatprep.subr.mxu0 0.0
        %1749 = vmatpush1.msra.mxu0 0.0
        %1750 = vmatprep.subr.mxu0 0.0
        %1751 = vmatpush1.msra.mxu0 0.0
        %1752 = vmatprep.subr.mxu0 0.0
        %1753 = vmatpush1.msra.mxu0 0.0
        %1754 = vmatprep.subr.mxu0 0.0
        %1755 = vmatpush1.msra.mxu0 0.0
        %1756 = vmatprep.subr.mxu0 0.0
        %1757 = vmatpush1.msra.mxu0 0.0
        %1758 = vmatprep.subr.mxu0 0.0
        %1759 = vmatpush1.msra.mxu0 0.0
        %1760 = vmatprep.subr.mxu0 0.0
        %1761 = vmatpush1.msra.mxu0 0.0
        %1762 = vmatprep.subr.mxu0 0.0
        %1763 = vmatpush1.msra.mxu0 0.0
        %1764 = vmatprep.subr.mxu0 0.0
        %1765 = vmatpush1.msra.mxu0 0.0
        %1766 = vmatprep.subr.mxu0 0.0
        %1767 = vmatpush1.msra.mxu0 0.0
        %1768 = vmatprep.mubr.f32.mxu0 0.0
        %1769 = vmatmul.mubr.f32.gmra.mrb[0].mxu0 %v1702
        %v1770 = vpop.f32.mrb[0].mxu0
        %v1771 = vadd.f32 0.0, %v1770
        %v1772 = vpop.f32.mrb[0].mxu0
        %1773 = vdwg.mxu0
        %v1774 = vadd.f32 %v1689, %v1771
        %v1775 = vld [vmem:[%s5] sm:$0x1]
        %v1777 = vlaneseq
        %v1778 = vshrl.u32 %v1777, 7
        %v1779 = vsub.s32 0, %v1778
        %v1780 = vrot.slane %v1775, %v1779
        %v1782 = vmul.f32 %v1774, %v1780
        %v1783 = vld [vmem:[%s6] sm:$0x1]
        %v1785 = vlaneseq
        %v1786 = vshrl.u32 %v1785, 7
        %v1787 = vsub.s32 0, %v1786
        %v1788 = vrot.slane %v1783, %v1787
        %v1790 = vadd.f32 %v1782, %v1788
        %s1791 = scalar_lea.vmem %s4, 64
        %v1792 = vld [vmem:[%s1791] sm:$0xff]
        %v1793 = vld [vmem:[%s1791 + $0x8] sm:$0xff]
        %v1794 = vld [vmem:[%s1791 + $0x10] sm:$0xff]
        %v1795 = vld [vmem:[%s1791 + $0x18] sm:$0xff]
        %v1796 = vld [vmem:[%s1791 + $0x20] sm:$0xff]
        %v1797 = vld [vmem:[%s1791 + $0x28] sm:$0xff]
        %v1798 = vld [vmem:[%s1791 + $0x30] sm:$0xff]
        %v1799 = vld [vmem:[%s1791 + $0x38] sm:$0xff]
        %s1800 = scalar_lea.vmem %s4, 192
        %v1801 = vld [vmem:[%s1800] sm:$0xff]
        %v1802 = vld [vmem:[%s1800 + $0x8] sm:$0xff]
        %v1803 = vld [vmem:[%s1800 + $0x10] sm:$0xff]
        %v1804 = vld [vmem:[%s1800 + $0x18] sm:$0xff]
        %v1805 = vld [vmem:[%s1800 + $0x20] sm:$0xff]
        %v1806 = vld [vmem:[%s1800 + $0x28] sm:$0xff]
        %v1807 = vld [vmem:[%s1800 + $0x30] sm:$0xff]
        %v1808 = vld [vmem:[%s1800 + $0x38] sm:$0xff]
        %1809 = vmatprep.subr.mxu0 0.0
        %1810 = vmatpush1.msra.mxu0 %v1801
        %1811 = vmatprep.subr.mxu0 0.0
        %1812 = vmatpush1.msra.mxu0 %v1802
        %1813 = vmatprep.subr.mxu0 0.0
        %1814 = vmatpush1.msra.mxu0 %v1803
        %1815 = vmatprep.subr.mxu0 0.0
        %1816 = vmatpush1.msra.mxu0 %v1804
        %1817 = vmatprep.subr.mxu0 0.0
        %1818 = vmatpush1.msra.mxu0 %v1805
        %1819 = vmatprep.subr.mxu0 0.0
        %1820 = vmatpush1.msra.mxu0 %v1806
        %1821 = vmatprep.subr.mxu0 0.0
        %1822 = vmatpush1.msra.mxu0 %v1807
        %1823 = vmatprep.subr.mxu0 0.0
        %1824 = vmatpush1.msra.mxu0 %v1808
        %1825 = vmatprep.subr.mxu0 0.0
        %1826 = vmatpush1.msra.mxu0 0.0
        %1827 = vmatprep.subr.mxu0 0.0
        %1828 = vmatpush1.msra.mxu0 0.0
        %1829 = vmatprep.subr.mxu0 0.0
        %1830 = vmatpush1.msra.mxu0 0.0
        %1831 = vmatprep.subr.mxu0 0.0
        %1832 = vmatpush1.msra.mxu0 0.0
        %1833 = vmatprep.subr.mxu0 0.0
        %1834 = vmatpush1.msra.mxu0 0.0
        %1835 = vmatprep.subr.mxu0 0.0
        %1836 = vmatpush1.msra.mxu0 0.0
        %1837 = vmatprep.subr.mxu0 0.0
        %1838 = vmatpush1.msra.mxu0 0.0
        %1839 = vmatprep.subr.mxu0 0.0
        %1840 = vmatpush1.msra.mxu0 0.0
        %1841 = vmatprep.subr.mxu0 0.0
        %1842 = vmatpush1.msra.mxu0 0.0
        %1843 = vmatprep.subr.mxu0 0.0
        %1844 = vmatpush1.msra.mxu0 0.0
        %1845 = vmatprep.subr.mxu0 0.0
        %1846 = vmatpush1.msra.mxu0 0.0
        %1847 = vmatprep.subr.mxu0 0.0
        %1848 = vmatpush1.msra.mxu0 0.0
        %1849 = vmatprep.subr.mxu0 0.0
        %1850 = vmatpush1.msra.mxu0 0.0
        %1851 = vmatprep.subr.mxu0 0.0
        %1852 = vmatpush1.msra.mxu0 0.0
        %1853 = vmatprep.subr.mxu0 0.0
        %1854 = vmatpush1.msra.mxu0 0.0
        %1855 = vmatprep.subr.mxu0 0.0
        %1856 = vmatpush1.msra.mxu0 0.0
        %1857 = vmatprep.subr.mxu0 0.0
        %1858 = vmatpush1.msra.mxu0 0.0
        %1859 = vmatprep.subr.mxu0 0.0
        %1860 = vmatpush1.msra.mxu0 0.0
        %1861 = vmatprep.subr.mxu0 0.0
        %1862 = vmatpush1.msra.mxu0 0.0
        %1863 = vmatprep.subr.mxu0 0.0
        %1864 = vmatpush1.msra.mxu0 0.0
        %1865 = vmatprep.subr.mxu0 0.0
        %1866 = vmatpush1.msra.mxu0 0.0
        %1867 = vmatprep.subr.mxu0 0.0
        %1868 = vmatpush1.msra.mxu0 0.0
        %1869 = vmatprep.subr.mxu0 0.0
        %1870 = vmatpush1.msra.mxu0 0.0
        %1871 = vmatprep.subr.mxu0 0.0
        %1872 = vmatpush1.msra.mxu0 0.0
        %1873 = vmatprep.mubr.f32.mxu0 0.0
        %1874 = vmatmul.mubr.f32.gmra.mrb[0].mxu0 %v1547
        %v1875 = vpop.f32.mrb[0].mxu0
        %v1876 = vadd.f32 0.0, %v1875
        %v1877 = vpop.f32.mrb[0].mxu0
        %1878 = vdwg.mxu0
        %1879 = vmatprep.subr.mxu0 0.0
        %1880 = vmatpush1.msra.mxu0 %v1792
        %1881 = vmatprep.subr.mxu0 0.0
        %1882 = vmatpush1.msra.mxu0 %v1793
        %1883 = vmatprep.subr.mxu0 0.0
        %1884 = vmatpush1.msra.mxu0 %v1794
        %1885 = vmatprep.subr.mxu0 0.0
        %1886 = vmatpush1.msra.mxu0 %v1795
        %1887 = vmatprep.subr.mxu0 0.0
        %1888 = vmatpush1.msra.mxu0 %v1796
        %1889 = vmatprep.subr.mxu0 0.0
        %1890 = vmatpush1.msra.mxu0 %v1797
        %1891 = vmatprep.subr.mxu0 0.0
        %1892 = vmatpush1.msra.mxu0 %v1798
        %1893 = vmatprep.subr.mxu0 0.0
        %1894 = vmatpush1.msra.mxu0 %v1799
        %1895 = vmatprep.subr.mxu0 0.0
        %1896 = vmatpush1.msra.mxu0 0.0
        %1897 = vmatprep.subr.mxu0 0.0
        %1898 = vmatpush1.msra.mxu0 0.0
        %1899 = vmatprep.subr.mxu0 0.0
        %1900 = vmatpush1.msra.mxu0 0.0
        %1901 = vmatprep.subr.mxu0 0.0
        %1902 = vmatpush1.msra.mxu0 0.0
        %1903 = vmatprep.subr.mxu0 0.0
        %1904 = vmatpush1.msra.mxu0 0.0
        %1905 = vmatprep.subr.mxu0 0.0
        %1906 = vmatpush1.msra.mxu0 0.0
        %1907 = vmatprep.subr.mxu0 0.0
        %1908 = vmatpush1.msra.mxu0 0.0
        %1909 = vmatprep.subr.mxu0 0.0
        %1910 = vmatpush1.msra.mxu0 0.0
        %1911 = vmatprep.subr.mxu0 0.0
        %1912 = vmatpush1.msra.mxu0 0.0
        %1913 = vmatprep.subr.mxu0 0.0
        %1914 = vmatpush1.msra.mxu0 0.0
        %1915 = vmatprep.subr.mxu0 0.0
        %1916 = vmatpush1.msra.mxu0 0.0
        %1917 = vmatprep.subr.mxu0 0.0
        %1918 = vmatpush1.msra.mxu0 0.0
        %1919 = vmatprep.subr.mxu0 0.0
        %1920 = vmatpush1.msra.mxu0 0.0
        %1921 = vmatprep.subr.mxu0 0.0
        %1922 = vmatpush1.msra.mxu0 0.0
        %1923 = vmatprep.subr.mxu0 0.0
        %1924 = vmatpush1.msra.mxu0 0.0
        %1925 = vmatprep.subr.mxu0 0.0
        %1926 = vmatpush1.msra.mxu0 0.0
        %1927 = vmatprep.subr.mxu0 0.0
        %1928 = vmatpush1.msra.mxu0 0.0
        %1929 = vmatprep.subr.mxu0 0.0
        %1930 = vmatpush1.msra.mxu0 0.0
        %1931 = vmatprep.subr.mxu0 0.0
        %1932 = vmatpush1.msra.mxu0 0.0
        %1933 = vmatprep.subr.mxu0 0.0
        %1934 = vmatpush1.msra.mxu0 0.0
        %1935 = vmatprep.subr.mxu0 0.0
        %1936 = vmatpush1.msra.mxu0 0.0
        %1937 = vmatprep.subr.mxu0 0.0
        %1938 = vmatpush1.msra.mxu0 0.0
        %1939 = vmatprep.subr.mxu0 0.0
        %1940 = vmatpush1.msra.mxu0 0.0
        %1941 = vmatprep.subr.mxu0 0.0
        %1942 = vmatpush1.msra.mxu0 0.0
        %1943 = vmatprep.mubr.f32.mxu0 0.0
        %1944 = vmatmul.mubr.f32.gmra.mrb[0].mxu0 %v1620
        %v1945 = vpop.f32.mrb[0].mxu0
        %v1946 = vadd.f32 %v1876, %v1945
        %v1947 = vpop.f32.mrb[0].mxu0
        %1948 = vdwg.mxu0
        %s1949 = scalar_lea.vmem %s4, 320
        %v1950 = vld [vmem:[%s1949] sm:$0xff]
        %v1951 = vld [vmem:[%s1949 + $0x8] sm:$0xff]
        %v1952 = vld [vmem:[%s1949 + $0x10] sm:$0xff]
        %v1953 = vld [vmem:[%s1949 + $0x18] sm:$0xff]
        %v1954 = vld [vmem:[%s1949 + $0x20] sm:$0xff]
        %v1955 = vld [vmem:[%s1949 + $0x28] sm:$0xff]
        %v1956 = vld [vmem:[%s1949 + $0x30] sm:$0xff]
        %v1957 = vld [vmem:[%s1949 + $0x38] sm:$0xff]
        %1958 = vmatprep.subr.mxu0 0.0
        %1959 = vmatpush1.msra.mxu0 %v1950
        %1960 = vmatprep.subr.mxu0 0.0
        %1961 = vmatpush1.msra.mxu0 %v1951
        %1962 = vmatprep.subr.mxu0 0.0
        %1963 = vmatpush1.msra.mxu0 %v1952
        %1964 = vmatprep.subr.mxu0 0.0
        %1965 = vmatpush1.msra.mxu0 %v1953
        %1966 = vmatprep.subr.mxu0 0.0
        %1967 = vmatpush1.msra.mxu0 %v1954
        %1968 = vmatprep.subr.mxu0 0.0
        %1969 = vmatpush1.msra.mxu0 %v1955
        %1970 = vmatprep.subr.mxu0 0.0
        %1971 = vmatpush1.msra.mxu0 %v1956
        %1972 = vmatprep.subr.mxu0 0.0
        %1973 = vmatpush1.msra.mxu0 %v1957
        %1974 = vmatprep.subr.mxu0 0.0
        %1975 = vmatpush1.msra.mxu0 0.0
        %1976 = vmatprep.subr.mxu0 0.0
        %1977 = vmatpush1.msra.mxu0 0.0
        %1978 = vmatprep.subr.mxu0 0.0
        %1979 = vmatpush1.msra.mxu0 0.0
        %1980 = vmatprep.subr.mxu0 0.0
        %1981 = vmatpush1.msra.mxu0 0.0
        %1982 = vmatprep.subr.mxu0 0.0
        %1983 = vmatpush1.msra.mxu0 0.0
        %1984 = vmatprep.subr.mxu0 0.0
        %1985 = vmatpush1.msra.mxu0 0.0
        %1986 = vmatprep.subr.mxu0 0.0
        %1987 = vmatpush1.msra.mxu0 0.0
        %1988 = vmatprep.subr.mxu0 0.0
        %1989 = vmatpush1.msra.mxu0 0.0
        %1990 = vmatprep.subr.mxu0 0.0
        %1991 = vmatpush1.msra.mxu0 0.0
        %1992 = vmatprep.subr.mxu0 0.0
        %1993 = vmatpush1.msra.mxu0 0.0
        %1994 = vmatprep.subr.mxu0 0.0
        %1995 = vmatpush1.msra.mxu0 0.0
        %1996 = vmatprep.subr.mxu0 0.0
        %1997 = vmatpush1.msra.mxu0 0.0
        %1998 = vmatprep.subr.mxu0 0.0
        %1999 = vmatpush1.msra.mxu0 0.0
        %2000 = vmatprep.subr.mxu0 0.0
        %2001 = vmatpush1.msra.mxu0 0.0
        %2002 = vmatprep.subr.mxu0 0.0
        %2003 = vmatpush1.msra.mxu0 0.0
        %2004 = vmatprep.subr.mxu0 0.0
        %2005 = vmatpush1.msra.mxu0 0.0
        %2006 = vmatprep.subr.mxu0 0.0
        %2007 = vmatpush1.msra.mxu0 0.0
        %2008 = vmatprep.subr.mxu0 0.0
        %2009 = vmatpush1.msra.mxu0 0.0
        %2010 = vmatprep.subr.mxu0 0.0
        %2011 = vmatpush1.msra.mxu0 0.0
        %2012 = vmatprep.subr.mxu0 0.0
        %2013 = vmatpush1.msra.mxu0 0.0
        %2014 = vmatprep.subr.mxu0 0.0
        %2015 = vmatpush1.msra.mxu0 0.0
        %2016 = vmatprep.subr.mxu0 0.0
        %2017 = vmatpush1.msra.mxu0 0.0
        %2018 = vmatprep.subr.mxu0 0.0
        %2019 = vmatpush1.msra.mxu0 0.0
        %2020 = vmatprep.subr.mxu0 0.0
        %2021 = vmatpush1.msra.mxu0 0.0
        %2022 = vmatprep.mubr.f32.mxu0 0.0
        %2023 = vmatmul.mubr.f32.gmra.mrb[0].mxu0 %v1702
        %v2024 = vpop.f32.mrb[0].mxu0
        %v2025 = vadd.f32 0.0, %v2024
        %v2026 = vpop.f32.mrb[0].mxu0
        %2027 = vdwg.mxu0
        %v2028 = vadd.f32 %v1946, %v2025
        %v2029 = vmul.f32 %v2028, %v1780
        %v2030 = vadd.f32 %v2029, %v1788
        %v2031 = vmax.f32 %v1790, %v2030
        %v2033 = vcombine.high %v2031, %v2031
        %v2035 = vunpack.c.l.s4 1983009808
        %v2036 = vunpack.c.0.s8 %v2035
        %v2037 = vlaneseq
        %v2038 = vshrl.u32 %v2037, 7
        %v2039 = vsub.s32 %v2036, %v2038
        %v2040 = vrot.slane %v2031, %v2039
        %v2042 = vunpack.c.l.s4 1983009808
        %v2043 = vunpack.c.0.s8 %v2042
        %v2044 = vlaneseq
        %v2045 = vshrl.u32 %v2044, 7
        %v2046 = vsub.s32 %v2043, %v2045
        %v2047 = vrot.slane %v2033, %v2046
        %v2048 = vcombine.high %v2040, %v2040
        %v2049 = vcombine.high %v2047, %v2047
        %v2054 = vrot.slane %v2040, 7
        %v2055 = vrot.slane %v2054, 2
        %v2056 = vrot.slane %v2048, 7
        %v2057 = vrot.slane %v2056, 2
        %v2058 = vrot.slane %v2047, 7
        %v2059 = vrot.slane %v2058, 2
        %v2060 = vrot.slane %v2049, 7
        %v2061 = vrot.slane %v2060, 2
        %v2066 = vmax.f32 %v2040, %v2055
        %v2067 = vmax.f32 %v2048, %v2057
        %v2068 = vmax.f32 %v2047, %v2059
        %v2069 = vmax.f32 %v2049, %v2061
        %v2070 = vmax.f32 %v2066, 0.0
        %v2071 = vmax.f32 %v2067, 0.0
        %v2072 = vmax.f32 %v2068, 0.0
        %v2073 = vmax.f32 %v2069, 0.0
        %v2078 = vlaneseq
        %v2079 = vshrl.u32 %v2078, 7
        %v2080 = vsub.s32 0, %v2079
        %v2081 = vrot.slane %v2070, %v2080
        %v2082 = vlaneseq
        %v2083 = vshrl.u32 %v2082, 7
        %v2084 = vsub.s32 0, %v2083
        %v2085 = vrot.slane %v2071, %v2084
        %v2086 = vlaneseq
        %v2087 = vshrl.u32 %v2086, 7
        %v2088 = vsub.s32 0, %v2087
        %v2089 = vrot.slane %v2072, %v2088
        %v2090 = vlaneseq
        %v2091 = vshrl.u32 %v2090, 7
        %v2092 = vsub.s32 0, %v2091
        %v2093 = vrot.slane %v2073, %v2092
        %v2094 = vsel %vm1369, %v2085, %v2081
        %v2095 = vsel %vm1371, %v2089, %v2094
        %v2096 = vsel %vm1373, %v2093, %v2095
        %vm2097 = vcmask 31744
        %v2098 = vsel %vm2097, %v534, 0
        %vm2100 = vcmask 1043456
        %v2101 = vsel %vm2100, %v2096, 0
        %2103 = vmatprep.subr.mxu0 0.0
        %2104 = vmatpush1.msra.mxu0 %v2101
        %2105 = vmatprep.subr.mxu0 0.0
        %2106 = vmatpush1.msra.mxu0 0.0
        %2107 = vmatprep.subr.mxu0 0.0
        %2108 = vmatpush1.msra.mxu0 0.0
        %2109 = vmatprep.subr.mxu0 0.0
        %2110 = vmatpush1.msra.mxu0 0.0
        %2111 = vmatprep.subr.mxu0 0.0
        %2112 = vmatpush1.msra.mxu0 0.0
        %2113 = vmatprep.subr.mxu0 0.0
        %2114 = vmatpush1.msra.mxu0 0.0
        %2115 = vmatprep.subr.mxu0 0.0
        %2116 = vmatpush1.msra.mxu0 0.0
        %2117 = vmatprep.subr.mxu0 0.0
        %2118 = vmatpush1.msra.mxu0 0.0
        %2119 = vmatprep.subr.mxu0 0.0
        %2120 = vmatpush1.msra.mxu0 0.0
        %2121 = vmatprep.subr.mxu0 0.0
        %2122 = vmatpush1.msra.mxu0 0.0
        %2123 = vmatprep.subr.mxu0 0.0
        %2124 = vmatpush1.msra.mxu0 0.0
        %2125 = vmatprep.subr.mxu0 0.0
        %2126 = vmatpush1.msra.mxu0 0.0
        %2127 = vmatprep.subr.mxu0 0.0
        %2128 = vmatpush1.msra.mxu0 0.0
        %2129 = vmatprep.subr.mxu0 0.0
        %2130 = vmatpush1.msra.mxu0 0.0
        %2131 = vmatprep.subr.mxu0 0.0
        %2132 = vmatpush1.msra.mxu0 0.0
        %2133 = vmatprep.subr.mxu0 0.0
        %2134 = vmatpush1.msra.mxu0 0.0
        %2135 = vmatprep.subr.mxu0 0.0
        %2136 = vmatpush1.msra.mxu0 0.0
        %2137 = vmatprep.subr.mxu0 0.0
        %2138 = vmatpush1.msra.mxu0 0.0
        %2139 = vmatprep.subr.mxu0 0.0
        %2140 = vmatpush1.msra.mxu0 0.0
        %2141 = vmatprep.subr.mxu0 0.0
        %2142 = vmatpush1.msra.mxu0 0.0
        %2143 = vmatprep.subr.mxu0 0.0
        %2144 = vmatpush1.msra.mxu0 0.0
        %2145 = vmatprep.subr.mxu0 0.0
        %2146 = vmatpush1.msra.mxu0 0.0
        %2147 = vmatprep.subr.mxu0 0.0
        %2148 = vmatpush1.msra.mxu0 0.0
        %2149 = vmatprep.subr.mxu0 0.0
        %2150 = vmatpush1.msra.mxu0 0.0
        %2151 = vmatprep.subr.mxu0 0.0
        %2152 = vmatpush1.msra.mxu0 0.0
        %2153 = vmatprep.subr.mxu0 0.0
        %2154 = vmatpush1.msra.mxu0 0.0
        %2155 = vmatprep.subr.mxu0 0.0
        %2156 = vmatpush1.msra.mxu0 0.0
        %2157 = vmatprep.subr.mxu0 0.0
        %2158 = vmatpush1.msra.mxu0 0.0
        %2159 = vmatprep.subr.mxu0 0.0
        %2160 = vmatpush1.msra.mxu0 0.0
        %2161 = vmatprep.subr.mxu0 0.0
        %2162 = vmatpush1.msra.mxu0 0.0
        %2163 = vmatprep.subr.mxu0 0.0
        %2164 = vmatpush1.msra.mxu0 0.0
        %2165 = vmatprep.subr.mxu0 0.0
        %2166 = vmatpush1.msra.mxu0 0.0
        %2167 = vmatprep.mubr.f32.mxu0 0.0
        %2168 = vmatmul.mubr.f32.gmra.mrb[0].mxu0 %v2098
        %v2169 = vpop.f32.mrb[0].mxu0
        %v2170 = vadd.f32 0.0, %v2169
        %v2171 = vpop.f32.mrb[0].mxu0
        %2172 = vdwg.mxu0
        %v2173 = vsel %vm2097, %v624, 0
        %2175 = vmatprep.subr.mxu0 0.0
        %2176 = vmatpush1.msra.mxu0 %v2101
        %2177 = vmatprep.subr.mxu0 0.0
        %2178 = vmatpush1.msra.mxu0 0.0
        %2179 = vmatprep.subr.mxu0 0.0
        %2180 = vmatpush1.msra.mxu0 0.0
        %2181 = vmatprep.subr.mxu0 0.0
        %2182 = vmatpush1.msra.mxu0 0.0
        %2183 = vmatprep.subr.mxu0 0.0
        %2184 = vmatpush1.msra.mxu0 0.0
        %2185 = vmatprep.subr.mxu0 0.0
        %2186 = vmatpush1.msra.mxu0 0.0
        %2187 = vmatprep.subr.mxu0 0.0
        %2188 = vmatpush1.msra.mxu0 0.0
        %2189 = vmatprep.subr.mxu0 0.0
        %2190 = vmatpush1.msra.mxu0 0.0
        %2191 = vmatprep.subr.mxu0 0.0
        %2192 = vmatpush1.msra.mxu0 0.0
        %2193 = vmatprep.subr.mxu0 0.0
        %2194 = vmatpush1.msra.mxu0 0.0
        %2195 = vmatprep.subr.mxu0 0.0
        %2196 = vmatpush1.msra.mxu0 0.0
        %2197 = vmatprep.subr.mxu0 0.0
        %2198 = vmatpush1.msra.mxu0 0.0
        %2199 = vmatprep.subr.mxu0 0.0
        %2200 = vmatpush1.msra.mxu0 0.0
        %2201 = vmatprep.subr.mxu0 0.0
        %2202 = vmatpush1.msra.mxu0 0.0
        %2203 = vmatprep.subr.mxu0 0.0
        %2204 = vmatpush1.msra.mxu0 0.0
        %2205 = vmatprep.subr.mxu0 0.0
        %2206 = vmatpush1.msra.mxu0 0.0
        %2207 = vmatprep.subr.mxu0 0.0
        %2208 = vmatpush1.msra.mxu0 0.0
        %2209 = vmatprep.subr.mxu0 0.0
        %2210 = vmatpush1.msra.mxu0 0.0
        %2211 = vmatprep.subr.mxu0 0.0
        %2212 = vmatpush1.msra.mxu0 0.0
        %2213 = vmatprep.subr.mxu0 0.0
        %2214 = vmatpush1.msra.mxu0 0.0
        %2215 = vmatprep.subr.mxu0 0.0
        %2216 = vmatpush1.msra.mxu0 0.0
        %2217 = vmatprep.subr.mxu0 0.0
        %2218 = vmatpush1.msra.mxu0 0.0
        %2219 = vmatprep.subr.mxu0 0.0
        %2220 = vmatpush1.msra.mxu0 0.0
        %2221 = vmatprep.subr.mxu0 0.0
        %2222 = vmatpush1.msra.mxu0 0.0
        %2223 = vmatprep.subr.mxu0 0.0
        %2224 = vmatpush1.msra.mxu0 0.0
        %2225 = vmatprep.subr.mxu0 0.0
        %2226 = vmatpush1.msra.mxu0 0.0
        %2227 = vmatprep.subr.mxu0 0.0
        %2228 = vmatpush1.msra.mxu0 0.0
        %2229 = vmatprep.subr.mxu0 0.0
        %2230 = vmatpush1.msra.mxu0 0.0
        %2231 = vmatprep.subr.mxu0 0.0
        %2232 = vmatpush1.msra.mxu0 0.0
        %2233 = vmatprep.subr.mxu0 0.0
        %2234 = vmatpush1.msra.mxu0 0.0
        %2235 = vmatprep.subr.mxu0 0.0
        %2236 = vmatpush1.msra.mxu0 0.0
        %2237 = vmatprep.subr.mxu0 0.0
        %2238 = vmatpush1.msra.mxu0 0.0
        %2239 = vmatprep.mubr.f32.mxu0 0.0
        %2240 = vmatmul.mubr.f32.gmra.mrb[0].mxu0 %v2173
        %v2241 = vpop.f32.mrb[0].mxu0
        %v2242 = vadd.f32 0.0, %v2241
        %v2243 = vpop.f32.mrb[0].mxu0
        %2244 = vdwg.mxu0
        %v2245 = vld [vmem:[#allocation5] sm:$0xff]
        %v2246 = vld [vmem:[#allocation5 + $0x8] sm:$0xff]
        %v2247 = vld [vmem:[#allocation5 + $0x10] sm:$0xff]
        %v2248 = vld [vmem:[#allocation5 + $0x18] sm:$0xff]
        %v2249 = vld [vmem:[#allocation5 + $0x20] sm:$0xff]
        %v2250 = vld [vmem:[#allocation5 + $0x28] sm:$0xff]
        %v2251 = vld [vmem:[#allocation5 + $0x30] sm:$0xff]
        %v2252 = vld [vmem:[#allocation5 + $0x38] sm:$0xff]
        %s2253 = scalar_lea.vmem [#allocation5], 128
        %v2254 = vld [vmem:[%s2253] sm:$0xff]
        %v2255 = vld [vmem:[%s2253 + $0x8] sm:$0xff]
        %v2256 = vld [vmem:[%s2253 + $0x10] sm:$0xff]
        %v2257 = vld [vmem:[%s2253 + $0x18] sm:$0xff]
        %v2258 = vld [vmem:[%s2253 + $0x20] sm:$0xff]
        %v2259 = vld [vmem:[%s2253 + $0x28] sm:$0xff]
        %v2260 = vld [vmem:[%s2253 + $0x30] sm:$0xff]
        %v2261 = vld [vmem:[%s2253 + $0x38] sm:$0xff]
        %v2262 = vsel %vm1546, %v2096, 0
        %2264 = vmatprep.subr.mxu0 0.0
        %2265 = vmatpush1.msra.mxu0 %v2254
        %2266 = vmatprep.subr.mxu0 0.0
        %2267 = vmatpush1.msra.mxu0 %v2255
        %2268 = vmatprep.subr.mxu0 0.0
        %2269 = vmatpush1.msra.mxu0 %v2256
        %2270 = vmatprep.subr.mxu0 0.0
        %2271 = vmatpush1.msra.mxu0 %v2257
        %2272 = vmatprep.subr.mxu0 0.0
        %2273 = vmatpush1.msra.mxu0 %v2258
        %2274 = vmatprep.subr.mxu0 0.0
        %2275 = vmatpush1.msra.mxu0 %v2259
        %2276 = vmatprep.subr.mxu0 0.0
        %2277 = vmatpush1.msra.mxu0 %v2260
        %2278 = vmatprep.subr.mxu0 0.0
        %2279 = vmatpush1.msra.mxu0 %v2261
        %2280 = vmatprep.subr.mxu0 0.0
        %2281 = vmatpush1.msra.mxu0 0.0
        %2282 = vmatprep.subr.mxu0 0.0
        %2283 = vmatpush1.msra.mxu0 0.0
        %2284 = vmatprep.subr.mxu0 0.0
        %2285 = vmatpush1.msra.mxu0 0.0
        %2286 = vmatprep.subr.mxu0 0.0
        %2287 = vmatpush1.msra.mxu0 0.0
        %2288 = vmatprep.subr.mxu0 0.0
        %2289 = vmatpush1.msra.mxu0 0.0
        %2290 = vmatprep.subr.mxu0 0.0
        %2291 = vmatpush1.msra.mxu0 0.0
        %2292 = vmatprep.subr.mxu0 0.0
        %2293 = vmatpush1.msra.mxu0 0.0
        %2294 = vmatprep.subr.mxu0 0.0
        %2295 = vmatpush1.msra.mxu0 0.0
        %2296 = vmatprep.subr.mxu0 0.0
        %2297 = vmatpush1.msra.mxu0 0.0
        %2298 = vmatprep.subr.mxu0 0.0
        %2299 = vmatpush1.msra.mxu0 0.0
        %2300 = vmatprep.subr.mxu0 0.0
        %2301 = vmatpush1.msra.mxu0 0.0
        %2302 = vmatprep.subr.mxu0 0.0
        %2303 = vmatpush1.msra.mxu0 0.0
        %2304 = vmatprep.subr.mxu0 0.0
        %2305 = vmatpush1.msra.mxu0 0.0
        %2306 = vmatprep.subr.mxu0 0.0
        %2307 = vmatpush1.msra.mxu0 0.0
        %2308 = vmatprep.subr.mxu0 0.0
        %2309 = vmatpush1.msra.mxu0 0.0
        %2310 = vmatprep.subr.mxu0 0.0
        %2311 = vmatpush1.msra.mxu0 0.0
        %2312 = vmatprep.subr.mxu0 0.0
        %2313 = vmatpush1.msra.mxu0 0.0
        %2314 = vmatprep.subr.mxu0 0.0
        %2315 = vmatpush1.msra.mxu0 0.0
        %2316 = vmatprep.subr.mxu0 0.0
        %2317 = vmatpush1.msra.mxu0 0.0
        %2318 = vmatprep.subr.mxu0 0.0
        %2319 = vmatpush1.msra.mxu0 0.0
        %2320 = vmatprep.subr.mxu0 0.0
        %2321 = vmatpush1.msra.mxu0 0.0
        %2322 = vmatprep.subr.mxu0 0.0
        %2323 = vmatpush1.msra.mxu0 0.0
        %2324 = vmatprep.subr.mxu0 0.0
        %2325 = vmatpush1.msra.mxu0 0.0
        %2326 = vmatprep.subr.mxu0 0.0
        %2327 = vmatpush1.msra.mxu0 0.0
        %2328 = vmatprep.mubr.f32.mxu0 0.0
        %2329 = vmatmul.mubr.f32.gmra.mrb[0].mxu0 %v2262
        %v2330 = vpop.f32.mrb[0].mxu0
        %v2331 = vadd.f32 0.0, %v2330
        %v2332 = vpop.f32.mrb[0].mxu0
        %2333 = vdwg.mxu0
        %v2335 = vsel %vm1546, %v2170, 0
        %2337 = vmatprep.subr.mxu0 0.0
        %2338 = vmatpush1.msra.mxu0 %v2245
        %2339 = vmatprep.subr.mxu0 0.0
        %2340 = vmatpush1.msra.mxu0 %v2246
        %2341 = vmatprep.subr.mxu0 0.0
        %2342 = vmatpush1.msra.mxu0 %v2247
        %2343 = vmatprep.subr.mxu0 0.0
        %2344 = vmatpush1.msra.mxu0 %v2248
        %2345 = vmatprep.subr.mxu0 0.0
        %2346 = vmatpush1.msra.mxu0 %v2249
        %2347 = vmatprep.subr.mxu0 0.0
        %2348 = vmatpush1.msra.mxu0 %v2250
        %2349 = vmatprep.subr.mxu0 0.0
        %2350 = vmatpush1.msra.mxu0 %v2251
        %2351 = vmatprep.subr.mxu0 0.0
        %2352 = vmatpush1.msra.mxu0 %v2252
        %2353 = vmatprep.subr.mxu0 0.0
        %2354 = vmatpush1.msra.mxu0 0.0
        %2355 = vmatprep.subr.mxu0 0.0
        %2356 = vmatpush1.msra.mxu0 0.0
        %2357 = vmatprep.subr.mxu0 0.0
        %2358 = vmatpush1.msra.mxu0 0.0
        %2359 = vmatprep.subr.mxu0 0.0
        %2360 = vmatpush1.msra.mxu0 0.0
        %2361 = vmatprep.subr.mxu0 0.0
        %2362 = vmatpush1.msra.mxu0 0.0
        %2363 = vmatprep.subr.mxu0 0.0
        %2364 = vmatpush1.msra.mxu0 0.0
        %2365 = vmatprep.subr.mxu0 0.0
        %2366 = vmatpush1.msra.mxu0 0.0
        %2367 = vmatprep.subr.mxu0 0.0
        %2368 = vmatpush1.msra.mxu0 0.0
        %2369 = vmatprep.subr.mxu0 0.0
        %2370 = vmatpush1.msra.mxu0 0.0
        %2371 = vmatprep.subr.mxu0 0.0
        %2372 = vmatpush1.msra.mxu0 0.0
        %2373 = vmatprep.subr.mxu0 0.0
        %2374 = vmatpush1.msra.mxu0 0.0
        %2375 = vmatprep.subr.mxu0 0.0
        %2376 = vmatpush1.msra.mxu0 0.0
        %2377 = vmatprep.subr.mxu0 0.0
        %2378 = vmatpush1.msra.mxu0 0.0
        %2379 = vmatprep.subr.mxu0 0.0
        %2380 = vmatpush1.msra.mxu0 0.0
        %2381 = vmatprep.subr.mxu0 0.0
        %2382 = vmatpush1.msra.mxu0 0.0
        %2383 = vmatprep.subr.mxu0 0.0
        %2384 = vmatpush1.msra.mxu0 0.0
        %2385 = vmatprep.subr.mxu0 0.0
        %2386 = vmatpush1.msra.mxu0 0.0
        %2387 = vmatprep.subr.mxu0 0.0
        %2388 = vmatpush1.msra.mxu0 0.0
        %2389 = vmatprep.subr.mxu0 0.0
        %2390 = vmatpush1.msra.mxu0 0.0
        %2391 = vmatprep.subr.mxu0 0.0
        %2392 = vmatpush1.msra.mxu0 0.0
        %2393 = vmatprep.subr.mxu0 0.0
        %2394 = vmatpush1.msra.mxu0 0.0
        %2395 = vmatprep.subr.mxu0 0.0
        %2396 = vmatpush1.msra.mxu0 0.0
        %2397 = vmatprep.subr.mxu0 0.0
        %2398 = vmatpush1.msra.mxu0 0.0
        %2399 = vmatprep.subr.mxu0 0.0
        %2400 = vmatpush1.msra.mxu0 0.0
        %2401 = vmatprep.mubr.f32.mxu0 0.0
        %2402 = vmatmul.mubr.f32.gmra.mrb[0].mxu0 %v2335
        %v2403 = vpop.f32.mrb[0].mxu0
        %v2404 = vadd.f32 %v2331, %v2403
        %v2405 = vpop.f32.mrb[0].mxu0
        %2406 = vdwg.mxu0
        %s2407 = scalar_lea.vmem [#allocation5], 256
        %v2408 = vld [vmem:[%s2407] sm:$0xff]
        %v2409 = vld [vmem:[%s2407 + $0x8] sm:$0xff]
        %v2410 = vld [vmem:[%s2407 + $0x10] sm:$0xff]
        %v2411 = vld [vmem:[%s2407 + $0x18] sm:$0xff]
        %v2412 = vld [vmem:[%s2407 + $0x20] sm:$0xff]
        %v2413 = vld [vmem:[%s2407 + $0x28] sm:$0xff]
        %v2414 = vld [vmem:[%s2407 + $0x30] sm:$0xff]
        %v2415 = vld [vmem:[%s2407 + $0x38] sm:$0xff]
        %v2417 = vsel %vm1546, %v2242, 0
        %2419 = vmatprep.subr.mxu0 0.0
        %2420 = vmatpush1.msra.mxu0 %v2408
        %2421 = vmatprep.subr.mxu0 0.0
        %2422 = vmatpush1.msra.mxu0 %v2409
        %2423 = vmatprep.subr.mxu0 0.0
        %2424 = vmatpush1.msra.mxu0 %v2410
        %2425 = vmatprep.subr.mxu0 0.0
        %2426 = vmatpush1.msra.mxu0 %v2411
        %2427 = vmatprep.subr.mxu0 0.0
        %2428 = vmatpush1.msra.mxu0 %v2412
        %2429 = vmatprep.subr.mxu0 0.0
        %2430 = vmatpush1.msra.mxu0 %v2413
        %2431 = vmatprep.subr.mxu0 0.0
        %2432 = vmatpush1.msra.mxu0 %v2414
        %2433 = vmatprep.subr.mxu0 0.0
        %2434 = vmatpush1.msra.mxu0 %v2415
        %2435 = vmatprep.subr.mxu0 0.0
        %2436 = vmatpush1.msra.mxu0 0.0
        %2437 = vmatprep.subr.mxu0 0.0
        %2438 = vmatpush1.msra.mxu0 0.0
        %2439 = vmatprep.subr.mxu0 0.0
        %2440 = vmatpush1.msra.mxu0 0.0
        %2441 = vmatprep.subr.mxu0 0.0
        %2442 = vmatpush1.msra.mxu0 0.0
        %2443 = vmatprep.subr.mxu0 0.0
        %2444 = vmatpush1.msra.mxu0 0.0
        %2445 = vmatprep.subr.mxu0 0.0
        %2446 = vmatpush1.msra.mxu0 0.0
        %2447 = vmatprep.subr.mxu0 0.0
        %2448 = vmatpush1.msra.mxu0 0.0
        %2449 = vmatprep.subr.mxu0 0.0
        %2450 = vmatpush1.msra.mxu0 0.0
        %2451 = vmatprep.subr.mxu0 0.0
        %2452 = vmatpush1.msra.mxu0 0.0
        %2453 = vmatprep.subr.mxu0 0.0
        %2454 = vmatpush1.msra.mxu0 0.0
        %2455 = vmatprep.subr.mxu0 0.0
        %2456 = vmatpush1.msra.mxu0 0.0
        %2457 = vmatprep.subr.mxu0 0.0
        %2458 = vmatpush1.msra.mxu0 0.0
        %2459 = vmatprep.subr.mxu0 0.0
        %2460 = vmatpush1.msra.mxu0 0.0
        %2461 = vmatprep.subr.mxu0 0.0
        %2462 = vmatpush1.msra.mxu0 0.0
        %2463 = vmatprep.subr.mxu0 0.0
        %2464 = vmatpush1.msra.mxu0 0.0
        %2465 = vmatprep.subr.mxu0 0.0
        %2466 = vmatpush1.msra.mxu0 0.0
        %2467 = vmatprep.subr.mxu0 0.0
        %2468 = vmatpush1.msra.mxu0 0.0
        %2469 = vmatprep.subr.mxu0 0.0
        %2470 = vmatpush1.msra.mxu0 0.0
        %2471 = vmatprep.subr.mxu0 0.0
        %2472 = vmatpush1.msra.mxu0 0.0
        %2473 = vmatprep.subr.mxu0 0.0
        %2474 = vmatpush1.msra.mxu0 0.0
        %2475 = vmatprep.subr.mxu0 0.0
        %2476 = vmatpush1.msra.mxu0 0.0
        %2477 = vmatprep.subr.mxu0 0.0
        %2478 = vmatpush1.msra.mxu0 0.0
        %2479 = vmatprep.subr.mxu0 0.0
        %2480 = vmatpush1.msra.mxu0 0.0
        %2481 = vmatprep.subr.mxu0 0.0
        %2482 = vmatpush1.msra.mxu0 0.0
        %2483 = vmatprep.mubr.f32.mxu0 0.0
        %2484 = vmatmul.mubr.f32.gmra.mrb[0].mxu0 %v2417
        %v2485 = vpop.f32.mrb[0].mxu0
        %v2486 = vadd.f32 0.0, %v2485
        %v2487 = vpop.f32.mrb[0].mxu0
        %2488 = vdwg.mxu0
        %v2489 = vadd.f32 %v2404, %v2486
        %v2490 = vld [vmem:[%s8] sm:$0x1]
        %v2492 = vlaneseq
        %v2493 = vshrl.u32 %v2492, 7
        %v2494 = vsub.s32 0, %v2493
        %v2495 = vrot.slane %v2490, %v2494
        %v2497 = vmul.f32 %v2489, %v2495
        %v2498 = vld [vmem:[%s9] sm:$0x1]
        %v2500 = vlaneseq
        %v2501 = vshrl.u32 %v2500, 7
        %v2502 = vsub.s32 0, %v2501
        %v2503 = vrot.slane %v2498, %v2502
        %v2505 = vadd.f32 %v2497, %v2503
        %s2506 = scalar_lea.vmem [#allocation5], 64
        %v2507 = vld [vmem:[%s2506] sm:$0xff]
        %v2508 = vld [vmem:[%s2506 + $0x8] sm:$0xff]
        %v2509 = vld [vmem:[%s2506 + $0x10] sm:$0xff]
        %v2510 = vld [vmem:[%s2506 + $0x18] sm:$0xff]
        %v2511 = vld [vmem:[%s2506 + $0x20] sm:$0xff]
        %v2512 = vld [vmem:[%s2506 + $0x28] sm:$0xff]
        %v2513 = vld [vmem:[%s2506 + $0x30] sm:$0xff]
        %v2514 = vld [vmem:[%s2506 + $0x38] sm:$0xff]
        %s2515 = scalar_lea.vmem [#allocation5], 192
        %v2516 = vld [vmem:[%s2515] sm:$0xff]
        %v2517 = vld [vmem:[%s2515 + $0x8] sm:$0xff]
        %v2518 = vld [vmem:[%s2515 + $0x10] sm:$0xff]
        %v2519 = vld [vmem:[%s2515 + $0x18] sm:$0xff]
        %v2520 = vld [vmem:[%s2515 + $0x20] sm:$0xff]
        %v2521 = vld [vmem:[%s2515 + $0x28] sm:$0xff]
        %v2522 = vld [vmem:[%s2515 + $0x30] sm:$0xff]
        %v2523 = vld [vmem:[%s2515 + $0x38] sm:$0xff]
        %2524 = vmatprep.subr.mxu0 0.0
        %2525 = vmatpush1.msra.mxu0 %v2516
        %2526 = vmatprep.subr.mxu0 0.0
        %2527 = vmatpush1.msra.mxu0 %v2517
        %2528 = vmatprep.subr.mxu0 0.0
        %2529 = vmatpush1.msra.mxu0 %v2518
        %2530 = vmatprep.subr.mxu0 0.0
        %2531 = vmatpush1.msra.mxu0 %v2519
        %2532 = vmatprep.subr.mxu0 0.0
        %2533 = vmatpush1.msra.mxu0 %v2520
        %2534 = vmatprep.subr.mxu0 0.0
        %2535 = vmatpush1.msra.mxu0 %v2521
        %2536 = vmatprep.subr.mxu0 0.0
        %2537 = vmatpush1.msra.mxu0 %v2522
        %2538 = vmatprep.subr.mxu0 0.0
        %2539 = vmatpush1.msra.mxu0 %v2523
        %2540 = vmatprep.subr.mxu0 0.0
        %2541 = vmatpush1.msra.mxu0 0.0
        %2542 = vmatprep.subr.mxu0 0.0
        %2543 = vmatpush1.msra.mxu0 0.0
        %2544 = vmatprep.subr.mxu0 0.0
        %2545 = vmatpush1.msra.mxu0 0.0
        %2546 = vmatprep.subr.mxu0 0.0
        %2547 = vmatpush1.msra.mxu0 0.0
        %2548 = vmatprep.subr.mxu0 0.0
        %2549 = vmatpush1.msra.mxu0 0.0
        %2550 = vmatprep.subr.mxu0 0.0
        %2551 = vmatpush1.msra.mxu0 0.0
        %2552 = vmatprep.subr.mxu0 0.0
        %2553 = vmatpush1.msra.mxu0 0.0
        %2554 = vmatprep.subr.mxu0 0.0
        %2555 = vmatpush1.msra.mxu0 0.0
        %2556 = vmatprep.subr.mxu0 0.0
        %2557 = vmatpush1.msra.mxu0 0.0
        %2558 = vmatprep.subr.mxu0 0.0
        %2559 = vmatpush1.msra.mxu0 0.0
        %2560 = vmatprep.subr.mxu0 0.0
        %2561 = vmatpush1.msra.mxu0 0.0
        %2562 = vmatprep.subr.mxu0 0.0
        %2563 = vmatpush1.msra.mxu0 0.0
        %2564 = vmatprep.subr.mxu0 0.0
        %2565 = vmatpush1.msra.mxu0 0.0
        %2566 = vmatprep.subr.mxu0 0.0
        %2567 = vmatpush1.msra.mxu0 0.0
        %2568 = vmatprep.subr.mxu0 0.0
        %2569 = vmatpush1.msra.mxu0 0.0
        %2570 = vmatprep.subr.mxu0 0.0
        %2571 = vmatpush1.msra.mxu0 0.0
        %2572 = vmatprep.subr.mxu0 0.0
        %2573 = vmatpush1.msra.mxu0 0.0
        %2574 = vmatprep.subr.mxu0 0.0
        %2575 = vmatpush1.msra.mxu0 0.0
        %2576 = vmatprep.subr.mxu0 0.0
        %2577 = vmatpush1.msra.mxu0 0.0
        %2578 = vmatprep.subr.mxu0 0.0
        %2579 = vmatpush1.msra.mxu0 0.0
        %2580 = vmatprep.subr.mxu0 0.0
        %2581 = vmatpush1.msra.mxu0 0.0
        %2582 = vmatprep.subr.mxu0 0.0
        %2583 = vmatpush1.msra.mxu0 0.0
        %2584 = vmatprep.subr.mxu0 0.0
        %2585 = vmatpush1.msra.mxu0 0.0
        %2586 = vmatprep.subr.mxu0 0.0
        %2587 = vmatpush1.msra.mxu0 0.0
        %2588 = vmatprep.mubr.f32.mxu0 0.0
        %2589 = vmatmul.mubr.f32.gmra.mrb[0].mxu0 %v2262
        %v2590 = vpop.f32.mrb[0].mxu0
        %v2591 = vadd.f32 0.0, %v2590
        %v2592 = vpop.f32.mrb[0].mxu0
        %2593 = vdwg.mxu0
        %2594 = vmatprep.subr.mxu0 0.0
        %2595 = vmatpush1.msra.mxu0 %v2507
        %2596 = vmatprep.subr.mxu0 0.0
        %2597 = vmatpush1.msra.mxu0 %v2508
        %2598 = vmatprep.subr.mxu0 0.0
        %2599 = vmatpush1.msra.mxu0 %v2509
        %2600 = vmatprep.subr.mxu0 0.0
        %2601 = vmatpush1.msra.mxu0 %v2510
        %2602 = vmatprep.subr.mxu0 0.0
        %2603 = vmatpush1.msra.mxu0 %v2511
        %2604 = vmatprep.subr.mxu0 0.0
        %2605 = vmatpush1.msra.mxu0 %v2512
        %2606 = vmatprep.subr.mxu0 0.0
        %2607 = vmatpush1.msra.mxu0 %v2513
        %2608 = vmatprep.subr.mxu0 0.0
        %2609 = vmatpush1.msra.mxu0 %v2514
        %2610 = vmatprep.subr.mxu0 0.0
        %2611 = vmatpush1.msra.mxu0 0.0
        %2612 = vmatprep.subr.mxu0 0.0
        %2613 = vmatpush1.msra.mxu0 0.0
        %2614 = vmatprep.subr.mxu0 0.0
        %2615 = vmatpush1.msra.mxu0 0.0
        %2616 = vmatprep.subr.mxu0 0.0
        %2617 = vmatpush1.msra.mxu0 0.0
        %2618 = vmatprep.subr.mxu0 0.0
        %2619 = vmatpush1.msra.mxu0 0.0
        %2620 = vmatprep.subr.mxu0 0.0
        %2621 = vmatpush1.msra.mxu0 0.0
        %2622 = vmatprep.subr.mxu0 0.0
        %2623 = vmatpush1.msra.mxu0 0.0
        %2624 = vmatprep.subr.mxu0 0.0
        %2625 = vmatpush1.msra.mxu0 0.0
        %2626 = vmatprep.subr.mxu0 0.0
        %2627 = vmatpush1.msra.mxu0 0.0
        %2628 = vmatprep.subr.mxu0 0.0
        %2629 = vmatpush1.msra.mxu0 0.0
        %2630 = vmatprep.subr.mxu0 0.0
        %2631 = vmatpush1.msra.mxu0 0.0
        %2632 = vmatprep.subr.mxu0 0.0
        %2633 = vmatpush1.msra.mxu0 0.0
        %2634 = vmatprep.subr.mxu0 0.0
        %2635 = vmatpush1.msra.mxu0 0.0
        %2636 = vmatprep.subr.mxu0 0.0
        %2637 = vmatpush1.msra.mxu0 0.0
        %2638 = vmatprep.subr.mxu0 0.0
        %2639 = vmatpush1.msra.mxu0 0.0
        %2640 = vmatprep.subr.mxu0 0.0
        %2641 = vmatpush1.msra.mxu0 0.0
        %2642 = vmatprep.subr.mxu0 0.0
        %2643 = vmatpush1.msra.mxu0 0.0
        %2644 = vmatprep.subr.mxu0 0.0
        %2645 = vmatpush1.msra.mxu0 0.0
        %2646 = vmatprep.subr.mxu0 0.0
        %2647 = vmatpush1.msra.mxu0 0.0
        %2648 = vmatprep.subr.mxu0 0.0
        %2649 = vmatpush1.msra.mxu0 0.0
        %2650 = vmatprep.subr.mxu0 0.0
        %2651 = vmatpush1.msra.mxu0 0.0
        %2652 = vmatprep.subr.mxu0 0.0
        %2653 = vmatpush1.msra.mxu0 0.0
        %2654 = vmatprep.subr.mxu0 0.0
        %2655 = vmatpush1.msra.mxu0 0.0
        %2656 = vmatprep.subr.mxu0 0.0
        %2657 = vmatpush1.msra.mxu0 0.0
        %2658 = vmatprep.mubr.f32.mxu0 0.0
        %2659 = vmatmul.mubr.f32.gmra.mrb[0].mxu0 %v2335
        %v2660 = vpop.f32.mrb[0].mxu0
        %v2661 = vadd.f32 %v2591, %v2660
        %v2662 = vpop.f32.mrb[0].mxu0
        %2663 = vdwg.mxu0
        %s2664 = scalar_lea.vmem [#allocation5], 320
        %v2665 = vld [vmem:[%s2664] sm:$0xff]
        %v2666 = vld [vmem:[%s2664 + $0x8] sm:$0xff]
        %v2667 = vld [vmem:[%s2664 + $0x10] sm:$0xff]
        %v2668 = vld [vmem:[%s2664 + $0x18] sm:$0xff]
        %v2669 = vld [vmem:[%s2664 + $0x20] sm:$0xff]
        %v2670 = vld [vmem:[%s2664 + $0x28] sm:$0xff]
        %v2671 = vld [vmem:[%s2664 + $0x30] sm:$0xff]
        %v2672 = vld [vmem:[%s2664 + $0x38] sm:$0xff]
        %2673 = vmatprep.subr.mxu0 0.0
        %2674 = vmatpush1.msra.mxu0 %v2665
        %2675 = vmatprep.subr.mxu0 0.0
        %2676 = vmatpush1.msra.mxu0 %v2666
        %2677 = vmatprep.subr.mxu0 0.0
        %2678 = vmatpush1.msra.mxu0 %v2667
        %2679 = vmatprep.subr.mxu0 0.0
        %2680 = vmatpush1.msra.mxu0 %v2668
        %2681 = vmatprep.subr.mxu0 0.0
        %2682 = vmatpush1.msra.mxu0 %v2669
        %2683 = vmatprep.subr.mxu0 0.0
        %2684 = vmatpush1.msra.mxu0 %v2670
        %2685 = vmatprep.subr.mxu0 0.0
        %2686 = vmatpush1.msra.mxu0 %v2671
        %2687 = vmatprep.subr.mxu0 0.0
        %2688 = vmatpush1.msra.mxu0 %v2672
        %2689 = vmatprep.subr.mxu0 0.0
        %2690 = vmatpush1.msra.mxu0 0.0
        %2691 = vmatprep.subr.mxu0 0.0
        %2692 = vmatpush1.msra.mxu0 0.0
        %2693 = vmatprep.subr.mxu0 0.0
        %2694 = vmatpush1.msra.mxu0 0.0
        %2695 = vmatprep.subr.mxu0 0.0
        %2696 = vmatpush1.msra.mxu0 0.0
        %2697 = vmatprep.subr.mxu0 0.0
        %2698 = vmatpush1.msra.mxu0 0.0
        %2699 = vmatprep.subr.mxu0 0.0
        %2700 = vmatpush1.msra.mxu0 0.0
        %2701 = vmatprep.subr.mxu0 0.0
        %2702 = vmatpush1.msra.mxu0 0.0
        %2703 = vmatprep.subr.mxu0 0.0
        %2704 = vmatpush1.msra.mxu0 0.0
        %2705 = vmatprep.subr.mxu0 0.0
        %2706 = vmatpush1.msra.mxu0 0.0
        %2707 = vmatprep.subr.mxu0 0.0
        %2708 = vmatpush1.msra.mxu0 0.0
        %2709 = vmatprep.subr.mxu0 0.0
        %2710 = vmatpush1.msra.mxu0 0.0
        %2711 = vmatprep.subr.mxu0 0.0
        %2712 = vmatpush1.msra.mxu0 0.0
        %2713 = vmatprep.subr.mxu0 0.0
        %2714 = vmatpush1.msra.mxu0 0.0
        %2715 = vmatprep.subr.mxu0 0.0
        %2716 = vmatpush1.msra.mxu0 0.0
        %2717 = vmatprep.subr.mxu0 0.0
        %2718 = vmatpush1.msra.mxu0 0.0
        %2719 = vmatprep.subr.mxu0 0.0
        %2720 = vmatpush1.msra.mxu0 0.0
        %2721 = vmatprep.subr.mxu0 0.0
        %2722 = vmatpush1.msra.mxu0 0.0
        %2723 = vmatprep.subr.mxu0 0.0
        %2724 = vmatpush1.msra.mxu0 0.0
        %2725 = vmatprep.subr.mxu0 0.0
        %2726 = vmatpush1.msra.mxu0 0.0
        %2727 = vmatprep.subr.mxu0 0.0
        %2728 = vmatpush1.msra.mxu0 0.0
        %2729 = vmatprep.subr.mxu0 0.0
        %2730 = vmatpush1.msra.mxu0 0.0
        %2731 = vmatprep.subr.mxu0 0.0
        %2732 = vmatpush1.msra.mxu0 0.0
        %2733 = vmatprep.subr.mxu0 0.0
        %2734 = vmatpush1.msra.mxu0 0.0
        %2735 = vmatprep.subr.mxu0 0.0
        %2736 = vmatpush1.msra.mxu0 0.0
        %2737 = vmatprep.mubr.f32.mxu0 0.0
        %2738 = vmatmul.mubr.f32.gmra.mrb[0].mxu0 %v2417
        %v2739 = vpop.f32.mrb[0].mxu0
        %v2740 = vadd.f32 0.0, %v2739
        %v2741 = vpop.f32.mrb[0].mxu0
        %2742 = vdwg.mxu0
        %v2743 = vadd.f32 %v2661, %v2740
        %v2744 = vmul.f32 %v2743, %v2495
        %v2745 = vadd.f32 %v2744, %v2503
        %v2746 = vmax.f32 %v2505, %v2745
        %v2749 = vunpack.c.l.s4 1983009808
        %v2750 = vunpack.c.0.s8 %v2749
        %v2751 = vlaneseq
        %v2752 = vshrl.u32 %v2751, 7
        %v2753 = vsub.s32 %v2750, %v2752
        %v2754 = vrot.slane %v2746, %v2753
        %v2755 = vcombine.high %v2754, %v2754
        %v2758 = vrot.slane %v2754, 7
        %v2759 = vrot.slane %v2758, 2
        %v2760 = vrot.slane %v2755, 7
        %v2761 = vrot.slane %v2760, 2
        %v2764 = vmax.f32 %v2754, %v2759
        %v2765 = vmax.f32 %v2755, %v2761
        %v2766 = vmax.f32 %v2764, 0.0
        %v2767 = vmax.f32 %v2765, 0.0
        %v2770 = vlaneseq
        %v2771 = vshrl.u32 %v2770, 7
        %v2772 = vsub.s32 0, %v2771
        %v2773 = vrot.slane %v2766, %v2772
        %v2774 = vlaneseq
        %v2775 = vshrl.u32 %v2774, 7
        %v2776 = vsub.s32 0, %v2775
        %v2777 = vrot.slane %v2767, %v2776
        %v2778 = vsel %vm1369, %v2777, %v2773
        %vm2779 = vcmask 15360
        %v2780 = vsel %vm2779, %v534, 0
        %vm2782 = vcmask 1041408
        %v2783 = vsel %vm2782, %v2778, 0
        %2785 = vmatprep.subr.mxu0 0.0
        %2786 = vmatpush1.msra.mxu0 %v2783
        %2787 = vmatprep.subr.mxu0 0.0
        %2788 = vmatpush1.msra.mxu0 0.0
        %2789 = vmatprep.subr.mxu0 0.0
        %2790 = vmatpush1.msra.mxu0 0.0
        %2791 = vmatprep.subr.mxu0 0.0
        %2792 = vmatpush1.msra.mxu0 0.0
        %2793 = vmatprep.subr.mxu0 0.0
        %2794 = vmatpush1.msra.mxu0 0.0
        %2795 = vmatprep.subr.mxu0 0.0
        %2796 = vmatpush1.msra.mxu0 0.0
        %2797 = vmatprep.subr.mxu0 0.0
        %2798 = vmatpush1.msra.mxu0 0.0
        %2799 = vmatprep.subr.mxu0 0.0
        %2800 = vmatpush1.msra.mxu0 0.0
        %2801 = vmatprep.subr.mxu0 0.0
        %2802 = vmatpush1.msra.mxu0 0.0
        %2803 = vmatprep.subr.mxu0 0.0
        %2804 = vmatpush1.msra.mxu0 0.0
        %2805 = vmatprep.subr.mxu0 0.0
        %2806 = vmatpush1.msra.mxu0 0.0
        %2807 = vmatprep.subr.mxu0 0.0
        %2808 = vmatpush1.msra.mxu0 0.0
        %2809 = vmatprep.subr.mxu0 0.0
        %2810 = vmatpush1.msra.mxu0 0.0
        %2811 = vmatprep.subr.mxu0 0.0
        %2812 = vmatpush1.msra.mxu0 0.0
        %2813 = vmatprep.subr.mxu0 0.0
        %2814 = vmatpush1.msra.mxu0 0.0
        %2815 = vmatprep.subr.mxu0 0.0
        %2816 = vmatpush1.msra.mxu0 0.0
        %2817 = vmatprep.subr.mxu0 0.0
        %2818 = vmatpush1.msra.mxu0 0.0
        %2819 = vmatprep.subr.mxu0 0.0
        %2820 = vmatpush1.msra.mxu0 0.0
        %2821 = vmatprep.subr.mxu0 0.0
        %2822 = vmatpush1.msra.mxu0 0.0
        %2823 = vmatprep.subr.mxu0 0.0
        %2824 = vmatpush1.msra.mxu0 0.0
        %2825 = vmatprep.subr.mxu0 0.0
        %2826 = vmatpush1.msra.mxu0 0.0
        %2827 = vmatprep.subr.mxu0 0.0
        %2828 = vmatpush1.msra.mxu0 0.0
        %2829 = vmatprep.subr.mxu0 0.0
        %2830 = vmatpush1.msra.mxu0 0.0
        %2831 = vmatprep.subr.mxu0 0.0
        %2832 = vmatpush1.msra.mxu0 0.0
        %2833 = vmatprep.subr.mxu0 0.0
        %2834 = vmatpush1.msra.mxu0 0.0
        %2835 = vmatprep.subr.mxu0 0.0
        %2836 = vmatpush1.msra.mxu0 0.0
        %2837 = vmatprep.subr.mxu0 0.0
        %2838 = vmatpush1.msra.mxu0 0.0
        %2839 = vmatprep.subr.mxu0 0.0
        %2840 = vmatpush1.msra.mxu0 0.0
        %2841 = vmatprep.subr.mxu0 0.0
        %2842 = vmatpush1.msra.mxu0 0.0
        %2843 = vmatprep.subr.mxu0 0.0
        %2844 = vmatpush1.msra.mxu0 0.0
        %2845 = vmatprep.subr.mxu0 0.0
        %2846 = vmatpush1.msra.mxu0 0.0
        %2847 = vmatprep.subr.mxu0 0.0
        %2848 = vmatpush1.msra.mxu0 0.0
        %2849 = vmatprep.mubr.f32.mxu0 0.0
        %2850 = vmatmul.mubr.f32.gmra.mrb[0].mxu0 %v2780
        %v2851 = vpop.f32.mrb[0].mxu0
        %v2852 = vadd.f32 0.0, %v2851
        %v2853 = vpop.f32.mrb[0].mxu0
        %2854 = vdwg.mxu0
        %v2855 = vsel %vm2779, %v624, 0
        %2857 = vmatprep.subr.mxu0 0.0
        %2858 = vmatpush1.msra.mxu0 %v2783
        %2859 = vmatprep.subr.mxu0 0.0
        %2860 = vmatpush1.msra.mxu0 0.0
        %2861 = vmatprep.subr.mxu0 0.0
        %2862 = vmatpush1.msra.mxu0 0.0
        %2863 = vmatprep.subr.mxu0 0.0
        %2864 = vmatpush1.msra.mxu0 0.0
        %2865 = vmatprep.subr.mxu0 0.0
        %2866 = vmatpush1.msra.mxu0 0.0
        %2867 = vmatprep.subr.mxu0 0.0
        %2868 = vmatpush1.msra.mxu0 0.0
        %2869 = vmatprep.subr.mxu0 0.0
        %2870 = vmatpush1.msra.mxu0 0.0
        %2871 = vmatprep.subr.mxu0 0.0
        %2872 = vmatpush1.msra.mxu0 0.0
        %2873 = vmatprep.subr.mxu0 0.0
        %2874 = vmatpush1.msra.mxu0 0.0
        %2875 = vmatprep.subr.mxu0 0.0
        %2876 = vmatpush1.msra.mxu0 0.0
        %2877 = vmatprep.subr.mxu0 0.0
        %2878 = vmatpush1.msra.mxu0 0.0
        %2879 = vmatprep.subr.mxu0 0.0
        %2880 = vmatpush1.msra.mxu0 0.0
        %2881 = vmatprep.subr.mxu0 0.0
        %2882 = vmatpush1.msra.mxu0 0.0
        %2883 = vmatprep.subr.mxu0 0.0
        %2884 = vmatpush1.msra.mxu0 0.0
        %2885 = vmatprep.subr.mxu0 0.0
        %2886 = vmatpush1.msra.mxu0 0.0
        %2887 = vmatprep.subr.mxu0 0.0
        %2888 = vmatpush1.msra.mxu0 0.0
        %2889 = vmatprep.subr.mxu0 0.0
        %2890 = vmatpush1.msra.mxu0 0.0
        %2891 = vmatprep.subr.mxu0 0.0
        %2892 = vmatpush1.msra.mxu0 0.0
        %2893 = vmatprep.subr.mxu0 0.0
        %2894 = vmatpush1.msra.mxu0 0.0
        %2895 = vmatprep.subr.mxu0 0.0
        %2896 = vmatpush1.msra.mxu0 0.0
        %2897 = vmatprep.subr.mxu0 0.0
        %2898 = vmatpush1.msra.mxu0 0.0
        %2899 = vmatprep.subr.mxu0 0.0
        %2900 = vmatpush1.msra.mxu0 0.0
        %2901 = vmatprep.subr.mxu0 0.0
        %2902 = vmatpush1.msra.mxu0 0.0
        %2903 = vmatprep.subr.mxu0 0.0
        %2904 = vmatpush1.msra.mxu0 0.0
        %2905 = vmatprep.subr.mxu0 0.0
        %2906 = vmatpush1.msra.mxu0 0.0
        %2907 = vmatprep.subr.mxu0 0.0
        %2908 = vmatpush1.msra.mxu0 0.0
        %2909 = vmatprep.subr.mxu0 0.0
        %2910 = vmatpush1.msra.mxu0 0.0
        %2911 = vmatprep.subr.mxu0 0.0
        %2912 = vmatpush1.msra.mxu0 0.0
        %2913 = vmatprep.subr.mxu0 0.0
        %2914 = vmatpush1.msra.mxu0 0.0
        %2915 = vmatprep.subr.mxu0 0.0
        %2916 = vmatpush1.msra.mxu0 0.0
        %2917 = vmatprep.subr.mxu0 0.0
        %2918 = vmatpush1.msra.mxu0 0.0
        %2919 = vmatprep.subr.mxu0 0.0
        %2920 = vmatpush1.msra.mxu0 0.0
        %2921 = vmatprep.mubr.f32.mxu0 0.0
        %2922 = vmatmul.mubr.f32.gmra.mrb[0].mxu0 %v2855
        %v2923 = vpop.f32.mrb[0].mxu0
        %v2924 = vadd.f32 0.0, %v2923
        %v2925 = vpop.f32.mrb[0].mxu0
        %2926 = vdwg.mxu0
        %v2927 = vld [vmem:[%s10] sm:$0xff]
        %v2928 = vld [vmem:[%s10 + $0x8] sm:$0xff]
        %v2929 = vld [vmem:[%s10 + $0x10] sm:$0xff]
        %v2930 = vld [vmem:[%s10 + $0x18] sm:$0xff]
        %v2931 = vld [vmem:[%s10 + $0x20] sm:$0xff]
        %v2932 = vld [vmem:[%s10 + $0x28] sm:$0xff]
        %v2933 = vld [vmem:[%s10 + $0x30] sm:$0xff]
        %v2934 = vld [vmem:[%s10 + $0x38] sm:$0xff]
        %s2935 = scalar_lea.vmem %s10, 128
        %v2936 = vld [vmem:[%s2935] sm:$0xff]
        %v2937 = vld [vmem:[%s2935 + $0x8] sm:$0xff]
        %v2938 = vld [vmem:[%s2935 + $0x10] sm:$0xff]
        %v2939 = vld [vmem:[%s2935 + $0x18] sm:$0xff]
        %v2940 = vld [vmem:[%s2935 + $0x20] sm:$0xff]
        %v2941 = vld [vmem:[%s2935 + $0x28] sm:$0xff]
        %v2942 = vld [vmem:[%s2935 + $0x30] sm:$0xff]
        %v2943 = vld [vmem:[%s2935 + $0x38] sm:$0xff]
        %v2944 = vsel %vm1546, %v2778, 0
        %2946 = vmatprep.subr.mxu0 0.0
        %2947 = vmatpush1.msra.mxu0 %v2936
        %2948 = vmatprep.subr.mxu0 0.0
        %2949 = vmatpush1.msra.mxu0 %v2937
        %2950 = vmatprep.subr.mxu0 0.0
        %2951 = vmatpush1.msra.mxu0 %v2938
        %2952 = vmatprep.subr.mxu0 0.0
        %2953 = vmatpush1.msra.mxu0 %v2939
        %2954 = vmatprep.subr.mxu0 0.0
        %2955 = vmatpush1.msra.mxu0 %v2940
        %2956 = vmatprep.subr.mxu0 0.0
        %2957 = vmatpush1.msra.mxu0 %v2941
        %2958 = vmatprep.subr.mxu0 0.0
        %2959 = vmatpush1.msra.mxu0 %v2942
        %2960 = vmatprep.subr.mxu0 0.0
        %2961 = vmatpush1.msra.mxu0 %v2943
        %2962 = vmatprep.subr.mxu0 0.0
        %2963 = vmatpush1.msra.mxu0 0.0
        %2964 = vmatprep.subr.mxu0 0.0
        %2965 = vmatpush1.msra.mxu0 0.0
        %2966 = vmatprep.subr.mxu0 0.0
        %2967 = vmatpush1.msra.mxu0 0.0
        %2968 = vmatprep.subr.mxu0 0.0
        %2969 = vmatpush1.msra.mxu0 0.0
        %2970 = vmatprep.subr.mxu0 0.0
        %2971 = vmatpush1.msra.mxu0 0.0
        %2972 = vmatprep.subr.mxu0 0.0
        %2973 = vmatpush1.msra.mxu0 0.0
        %2974 = vmatprep.subr.mxu0 0.0
        %2975 = vmatpush1.msra.mxu0 0.0
        %2976 = vmatprep.subr.mxu0 0.0
        %2977 = vmatpush1.msra.mxu0 0.0
        %2978 = vmatprep.subr.mxu0 0.0
        %2979 = vmatpush1.msra.mxu0 0.0
        %2980 = vmatprep.subr.mxu0 0.0
        %2981 = vmatpush1.msra.mxu0 0.0
        %2982 = vmatprep.subr.mxu0 0.0
        %2983 = vmatpush1.msra.mxu0 0.0
        %2984 = vmatprep.subr.mxu0 0.0
        %2985 = vmatpush1.msra.mxu0 0.0
        %2986 = vmatprep.subr.mxu0 0.0
        %2987 = vmatpush1.msra.mxu0 0.0
        %2988 = vmatprep.subr.mxu0 0.0
        %2989 = vmatpush1.msra.mxu0 0.0
        %2990 = vmatprep.subr.mxu0 0.0
        %2991 = vmatpush1.msra.mxu0 0.0
        %2992 = vmatprep.subr.mxu0 0.0
        %2993 = vmatpush1.msra.mxu0 0.0
        %2994 = vmatprep.subr.mxu0 0.0
        %2995 = vmatpush1.msra.mxu0 0.0
        %2996 = vmatprep.subr.mxu0 0.0
        %2997 = vmatpush1.msra.mxu0 0.0
        %2998 = vmatprep.subr.mxu0 0.0
        %2999 = vmatpush1.msra.mxu0 0.0
        %3000 = vmatprep.subr.mxu0 0.0
        %3001 = vmatpush1.msra.mxu0 0.0
        %3002 = vmatprep.subr.mxu0 0.0
        %3003 = vmatpush1.msra.mxu0 0.0
        %3004 = vmatprep.subr.mxu0 0.0
        %3005 = vmatpush1.msra.mxu0 0.0
        %3006 = vmatprep.subr.mxu0 0.0
        %3007 = vmatpush1.msra.mxu0 0.0
        %3008 = vmatprep.subr.mxu0 0.0
        %3009 = vmatpush1.msra.mxu0 0.0
        %3010 = vmatprep.mubr.f32.mxu0 0.0
        %3011 = vmatmul.mubr.f32.gmra.mrb[0].mxu0 %v2944
        %v3012 = vpop.f32.mrb[0].mxu0
        %v3013 = vadd.f32 0.0, %v3012
        %v3014 = vpop.f32.mrb[0].mxu0
        %3015 = vdwg.mxu0
        %v3017 = vsel %vm1546, %v2852, 0
        %3019 = vmatprep.subr.mxu0 0.0
        %3020 = vmatpush1.msra.mxu0 %v2927
        %3021 = vmatprep.subr.mxu0 0.0
        %3022 = vmatpush1.msra.mxu0 %v2928
        %3023 = vmatprep.subr.mxu0 0.0
        %3024 = vmatpush1.msra.mxu0 %v2929
        %3025 = vmatprep.subr.mxu0 0.0
        %3026 = vmatpush1.msra.mxu0 %v2930
        %3027 = vmatprep.subr.mxu0 0.0
        %3028 = vmatpush1.msra.mxu0 %v2931
        %3029 = vmatprep.subr.mxu0 0.0
        %3030 = vmatpush1.msra.mxu0 %v2932
        %3031 = vmatprep.subr.mxu0 0.0
        %3032 = vmatpush1.msra.mxu0 %v2933
        %3033 = vmatprep.subr.mxu0 0.0
        %3034 = vmatpush1.msra.mxu0 %v2934
        %3035 = vmatprep.subr.mxu0 0.0
        %3036 = vmatpush1.msra.mxu0 0.0
        %3037 = vmatprep.subr.mxu0 0.0
        %3038 = vmatpush1.msra.mxu0 0.0
        %3039 = vmatprep.subr.mxu0 0.0
        %3040 = vmatpush1.msra.mxu0 0.0
        %3041 = vmatprep.subr.mxu0 0.0
        %3042 = vmatpush1.msra.mxu0 0.0
        %3043 = vmatprep.subr.mxu0 0.0
        %3044 = vmatpush1.msra.mxu0 0.0
        %3045 = vmatprep.subr.mxu0 0.0
        %3046 = vmatpush1.msra.mxu0 0.0
        %3047 = vmatprep.subr.mxu0 0.0
        %3048 = vmatpush1.msra.mxu0 0.0
        %3049 = vmatprep.subr.mxu0 0.0
        %3050 = vmatpush1.msra.mxu0 0.0
        %3051 = vmatprep.subr.mxu0 0.0
        %3052 = vmatpush1.msra.mxu0 0.0
        %3053 = vmatprep.subr.mxu0 0.0
        %3054 = vmatpush1.msra.mxu0 0.0
        %3055 = vmatprep.subr.mxu0 0.0
        %3056 = vmatpush1.msra.mxu0 0.0
        %3057 = vmatprep.subr.mxu0 0.0
        %3058 = vmatpush1.msra.mxu0 0.0
        %3059 = vmatprep.subr.mxu0 0.0
        %3060 = vmatpush1.msra.mxu0 0.0
        %3061 = vmatprep.subr.mxu0 0.0
        %3062 = vmatpush1.msra.mxu0 0.0
        %3063 = vmatprep.subr.mxu0 0.0
        %3064 = vmatpush1.msra.mxu0 0.0
        %3065 = vmatprep.subr.mxu0 0.0
        %3066 = vmatpush1.msra.mxu0 0.0
        %3067 = vmatprep.subr.mxu0 0.0
        %3068 = vmatpush1.msra.mxu0 0.0
        %3069 = vmatprep.subr.mxu0 0.0
        %3070 = vmatpush1.msra.mxu0 0.0
        %3071 = vmatprep.subr.mxu0 0.0
        %3072 = vmatpush1.msra.mxu0 0.0
        %3073 = vmatprep.subr.mxu0 0.0
        %3074 = vmatpush1.msra.mxu0 0.0
        %3075 = vmatprep.subr.mxu0 0.0
        %3076 = vmatpush1.msra.mxu0 0.0
        %3077 = vmatprep.subr.mxu0 0.0
        %3078 = vmatpush1.msra.mxu0 0.0
        %3079 = vmatprep.subr.mxu0 0.0
        %3080 = vmatpush1.msra.mxu0 0.0
        %3081 = vmatprep.subr.mxu0 0.0
        %3082 = vmatpush1.msra.mxu0 0.0
        %3083 = vmatprep.mubr.f32.mxu0 0.0
        %3084 = vmatmul.mubr.f32.gmra.mrb[0].mxu0 %v3017
        %v3085 = vpop.f32.mrb[0].mxu0
        %v3086 = vadd.f32 %v3013, %v3085
        %v3087 = vpop.f32.mrb[0].mxu0
        %3088 = vdwg.mxu0
        %s3089 = scalar_lea.vmem %s10, 256
        %v3090 = vld [vmem:[%s3089] sm:$0xff]
        %v3091 = vld [vmem:[%s3089 + $0x8] sm:$0xff]
        %v3092 = vld [vmem:[%s3089 + $0x10] sm:$0xff]
        %v3093 = vld [vmem:[%s3089 + $0x18] sm:$0xff]
        %v3094 = vld [vmem:[%s3089 + $0x20] sm:$0xff]
        %v3095 = vld [vmem:[%s3089 + $0x28] sm:$0xff]
        %v3096 = vld [vmem:[%s3089 + $0x30] sm:$0xff]
        %v3097 = vld [vmem:[%s3089 + $0x38] sm:$0xff]
        %v3099 = vsel %vm1546, %v2924, 0
        %3101 = vmatprep.subr.mxu0 0.0
        %3102 = vmatpush1.msra.mxu0 %v3090
        %3103 = vmatprep.subr.mxu0 0.0
        %3104 = vmatpush1.msra.mxu0 %v3091
        %3105 = vmatprep.subr.mxu0 0.0
        %3106 = vmatpush1.msra.mxu0 %v3092
        %3107 = vmatprep.subr.mxu0 0.0
        %3108 = vmatpush1.msra.mxu0 %v3093
        %3109 = vmatprep.subr.mxu0 0.0
        %3110 = vmatpush1.msra.mxu0 %v3094
        %3111 = vmatprep.subr.mxu0 0.0
        %3112 = vmatpush1.msra.mxu0 %v3095
        %3113 = vmatprep.subr.mxu0 0.0
        %3114 = vmatpush1.msra.mxu0 %v3096
        %3115 = vmatprep.subr.mxu0 0.0
        %3116 = vmatpush1.msra.mxu0 %v3097
        %3117 = vmatprep.subr.mxu0 0.0
        %3118 = vmatpush1.msra.mxu0 0.0
        %3119 = vmatprep.subr.mxu0 0.0
        %3120 = vmatpush1.msra.mxu0 0.0
        %3121 = vmatprep.subr.mxu0 0.0
        %3122 = vmatpush1.msra.mxu0 0.0
        %3123 = vmatprep.subr.mxu0 0.0
        %3124 = vmatpush1.msra.mxu0 0.0
        %3125 = vmatprep.subr.mxu0 0.0
        %3126 = vmatpush1.msra.mxu0 0.0
        %3127 = vmatprep.subr.mxu0 0.0
        %3128 = vmatpush1.msra.mxu0 0.0
        %3129 = vmatprep.subr.mxu0 0.0
        %3130 = vmatpush1.msra.mxu0 0.0
        %3131 = vmatprep.subr.mxu0 0.0
        %3132 = vmatpush1.msra.mxu0 0.0
        %3133 = vmatprep.subr.mxu0 0.0
        %3134 = vmatpush1.msra.mxu0 0.0
        %3135 = vmatprep.subr.mxu0 0.0
        %3136 = vmatpush1.msra.mxu0 0.0
        %3137 = vmatprep.subr.mxu0 0.0
        %3138 = vmatpush1.msra.mxu0 0.0
        %3139 = vmatprep.subr.mxu0 0.0
        %3140 = vmatpush1.msra.mxu0 0.0
        %3141 = vmatprep.subr.mxu0 0.0
        %3142 = vmatpush1.msra.mxu0 0.0
        %3143 = vmatprep.subr.mxu0 0.0
        %3144 = vmatpush1.msra.mxu0 0.0
        %3145 = vmatprep.subr.mxu0 0.0
        %3146 = vmatpush1.msra.mxu0 0.0
        %3147 = vmatprep.subr.mxu0 0.0
        %3148 = vmatpush1.msra.mxu0 0.0
        %3149 = vmatprep.subr.mxu0 0.0
        %3150 = vmatpush1.msra.mxu0 0.0
        %3151 = vmatprep.subr.mxu0 0.0
        %3152 = vmatpush1.msra.mxu0 0.0
        %3153 = vmatprep.subr.mxu0 0.0
        %3154 = vmatpush1.msra.mxu0 0.0
        %3155 = vmatprep.subr.mxu0 0.0
        %3156 = vmatpush1.msra.mxu0 0.0
        %3157 = vmatprep.subr.mxu0 0.0
        %3158 = vmatpush1.msra.mxu0 0.0
        %3159 = vmatprep.subr.mxu0 0.0
        %3160 = vmatpush1.msra.mxu0 0.0
        %3161 = vmatprep.subr.mxu0 0.0
        %3162 = vmatpush1.msra.mxu0 0.0
        %3163 = vmatprep.subr.mxu0 0.0
        %3164 = vmatpush1.msra.mxu0 0.0
        %3165 = vmatprep.mubr.f32.mxu0 0.0
        %3166 = vmatmul.mubr.f32.gmra.mrb[0].mxu0 %v3099
        %v3167 = vpop.f32.mrb[0].mxu0
        %v3168 = vadd.f32 0.0, %v3167
        %v3169 = vpop.f32.mrb[0].mxu0
        %3170 = vdwg.mxu0
        %v3171 = vadd.f32 %v3086, %v3168
        %v3172 = vld [vmem:[%s11] sm:$0x1]
        %v3174 = vlaneseq
        %v3175 = vshrl.u32 %v3174, 7
        %v3176 = vsub.s32 0, %v3175
        %v3177 = vrot.slane %v3172, %v3176
        %v3179 = vmul.f32 %v3171, %v3177
        %v3180 = vld [vmem:[%s12] sm:$0x1]
        %v3182 = vlaneseq
        %v3183 = vshrl.u32 %v3182, 7
        %v3184 = vsub.s32 0, %v3183
        %v3185 = vrot.slane %v3180, %v3184
        %v3187 = vadd.f32 %v3179, %v3185
        %s3188 = scalar_lea.vmem %s10, 64
        %v3189 = vld [vmem:[%s3188] sm:$0xff]
        %v3190 = vld [vmem:[%s3188 + $0x8] sm:$0xff]
        %v3191 = vld [vmem:[%s3188 + $0x10] sm:$0xff]
        %v3192 = vld [vmem:[%s3188 + $0x18] sm:$0xff]
        %v3193 = vld [vmem:[%s3188 + $0x20] sm:$0xff]
        %v3194 = vld [vmem:[%s3188 + $0x28] sm:$0xff]
        %v3195 = vld [vmem:[%s3188 + $0x30] sm:$0xff]
        %v3196 = vld [vmem:[%s3188 + $0x38] sm:$0xff]
        %s3197 = scalar_lea.vmem %s10, 192
        %v3198 = vld [vmem:[%s3197] sm:$0xff]
        %v3199 = vld [vmem:[%s3197 + $0x8] sm:$0xff]
        %v3200 = vld [vmem:[%s3197 + $0x10] sm:$0xff]
        %v3201 = vld [vmem:[%s3197 + $0x18] sm:$0xff]
        %v3202 = vld [vmem:[%s3197 + $0x20] sm:$0xff]
        %v3203 = vld [vmem:[%s3197 + $0x28] sm:$0xff]
        %v3204 = vld [vmem:[%s3197 + $0x30] sm:$0xff]
        %v3205 = vld [vmem:[%s3197 + $0x38] sm:$0xff]
        %3206 = vmatprep.subr.mxu0 0.0
        %3207 = vmatpush1.msra.mxu0 %v3198
        %3208 = vmatprep.subr.mxu0 0.0
        %3209 = vmatpush1.msra.mxu0 %v3199
        %3210 = vmatprep.subr.mxu0 0.0
        %3211 = vmatpush1.msra.mxu0 %v3200
        %3212 = vmatprep.subr.mxu0 0.0
        %3213 = vmatpush1.msra.mxu0 %v3201
        %3214 = vmatprep.subr.mxu0 0.0
        %3215 = vmatpush1.msra.mxu0 %v3202
        %3216 = vmatprep.subr.mxu0 0.0
        %3217 = vmatpush1.msra.mxu0 %v3203
        %3218 = vmatprep.subr.mxu0 0.0
        %3219 = vmatpush1.msra.mxu0 %v3204
        %3220 = vmatprep.subr.mxu0 0.0
        %3221 = vmatpush1.msra.mxu0 %v3205
        %3222 = vmatprep.subr.mxu0 0.0
        %3223 = vmatpush1.msra.mxu0 0.0
        %3224 = vmatprep.subr.mxu0 0.0
        %3225 = vmatpush1.msra.mxu0 0.0
        %3226 = vmatprep.subr.mxu0 0.0
        %3227 = vmatpush1.msra.mxu0 0.0
        %3228 = vmatprep.subr.mxu0 0.0
        %3229 = vmatpush1.msra.mxu0 0.0
        %3230 = vmatprep.subr.mxu0 0.0
        %3231 = vmatpush1.msra.mxu0 0.0
        %3232 = vmatprep.subr.mxu0 0.0
        %3233 = vmatpush1.msra.mxu0 0.0
        %3234 = vmatprep.subr.mxu0 0.0
        %3235 = vmatpush1.msra.mxu0 0.0
        %3236 = vmatprep.subr.mxu0 0.0
        %3237 = vmatpush1.msra.mxu0 0.0
        %3238 = vmatprep.subr.mxu0 0.0
        %3239 = vmatpush1.msra.mxu0 0.0
        %3240 = vmatprep.subr.mxu0 0.0
        %3241 = vmatpush1.msra.mxu0 0.0
        %3242 = vmatprep.subr.mxu0 0.0
        %3243 = vmatpush1.msra.mxu0 0.0
        %3244 = vmatprep.subr.mxu0 0.0
        %3245 = vmatpush1.msra.mxu0 0.0
        %3246 = vmatprep.subr.mxu0 0.0
        %3247 = vmatpush1.msra.mxu0 0.0
        %3248 = vmatprep.subr.mxu0 0.0
        %3249 = vmatpush1.msra.mxu0 0.0
        %3250 = vmatprep.subr.mxu0 0.0
        %3251 = vmatpush1.msra.mxu0 0.0
        %3252 = vmatprep.subr.mxu0 0.0
        %3253 = vmatpush1.msra.mxu0 0.0
        %3254 = vmatprep.subr.mxu0 0.0
        %3255 = vmatpush1.msra.mxu0 0.0
        %3256 = vmatprep.subr.mxu0 0.0
        %3257 = vmatpush1.msra.mxu0 0.0
        %3258 = vmatprep.subr.mxu0 0.0
        %3259 = vmatpush1.msra.mxu0 0.0
        %3260 = vmatprep.subr.mxu0 0.0
        %3261 = vmatpush1.msra.mxu0 0.0
        %3262 = vmatprep.subr.mxu0 0.0
        %3263 = vmatpush1.msra.mxu0 0.0
        %3264 = vmatprep.subr.mxu0 0.0
        %3265 = vmatpush1.msra.mxu0 0.0
        %3266 = vmatprep.subr.mxu0 0.0
        %3267 = vmatpush1.msra.mxu0 0.0
        %3268 = vmatprep.subr.mxu0 0.0
        %3269 = vmatpush1.msra.mxu0 0.0
        %3270 = vmatprep.mubr.f32.mxu0 0.0
        %3271 = vmatmul.mubr.f32.gmra.mrb[0].mxu0 %v2944
        %v3272 = vpop.f32.mrb[0].mxu0
        %v3273 = vadd.f32 0.0, %v3272
        %v3274 = vpop.f32.mrb[0].mxu0
        %3275 = vdwg.mxu0
        %3276 = vmatprep.subr.mxu0 0.0
        %3277 = vmatpush1.msra.mxu0 %v3189
        %3278 = vmatprep.subr.mxu0 0.0
        %3279 = vmatpush1.msra.mxu0 %v3190
        %3280 = vmatprep.subr.mxu0 0.0
        %3281 = vmatpush1.msra.mxu0 %v3191
        %3282 = vmatprep.subr.mxu0 0.0
        %3283 = vmatpush1.msra.mxu0 %v3192
        %3284 = vmatprep.subr.mxu0 0.0
        %3285 = vmatpush1.msra.mxu0 %v3193
        %3286 = vmatprep.subr.mxu0 0.0
        %3287 = vmatpush1.msra.mxu0 %v3194
        %3288 = vmatprep.subr.mxu0 0.0
        %3289 = vmatpush1.msra.mxu0 %v3195
        %3290 = vmatprep.subr.mxu0 0.0
        %3291 = vmatpush1.msra.mxu0 %v3196
        %3292 = vmatprep.subr.mxu0 0.0
        %3293 = vmatpush1.msra.mxu0 0.0
        %3294 = vmatprep.subr.mxu0 0.0
        %3295 = vmatpush1.msra.mxu0 0.0
        %3296 = vmatprep.subr.mxu0 0.0
        %3297 = vmatpush1.msra.mxu0 0.0
        %3298 = vmatprep.subr.mxu0 0.0
        %3299 = vmatpush1.msra.mxu0 0.0
        %3300 = vmatprep.subr.mxu0 0.0
        %3301 = vmatpush1.msra.mxu0 0.0
        %3302 = vmatprep.subr.mxu0 0.0
        %3303 = vmatpush1.msra.mxu0 0.0
        %3304 = vmatprep.subr.mxu0 0.0
        %3305 = vmatpush1.msra.mxu0 0.0
        %3306 = vmatprep.subr.mxu0 0.0
        %3307 = vmatpush1.msra.mxu0 0.0
        %3308 = vmatprep.subr.mxu0 0.0
        %3309 = vmatpush1.msra.mxu0 0.0
        %3310 = vmatprep.subr.mxu0 0.0
        %3311 = vmatpush1.msra.mxu0 0.0
        %3312 = vmatprep.subr.mxu0 0.0
        %3313 = vmatpush1.msra.mxu0 0.0
        %3314 = vmatprep.subr.mxu0 0.0
        %3315 = vmatpush1.msra.mxu0 0.0
        %3316 = vmatprep.subr.mxu0 0.0
        %3317 = vmatpush1.msra.mxu0 0.0
        %3318 = vmatprep.subr.mxu0 0.0
        %3319 = vmatpush1.msra.mxu0 0.0
        %3320 = vmatprep.subr.mxu0 0.0
        %3321 = vmatpush1.msra.mxu0 0.0
        %3322 = vmatprep.subr.mxu0 0.0
        %3323 = vmatpush1.msra.mxu0 0.0
        %3324 = vmatprep.subr.mxu0 0.0
        %3325 = vmatpush1.msra.mxu0 0.0
        %3326 = vmatprep.subr.mxu0 0.0
        %3327 = vmatpush1.msra.mxu0 0.0
        %3328 = vmatprep.subr.mxu0 0.0
        %3329 = vmatpush1.msra.mxu0 0.0
        %3330 = vmatprep.subr.mxu0 0.0
        %3331 = vmatpush1.msra.mxu0 0.0
        %3332 = vmatprep.subr.mxu0 0.0
        %3333 = vmatpush1.msra.mxu0 0.0
        %3334 = vmatprep.subr.mxu0 0.0
        %3335 = vmatpush1.msra.mxu0 0.0
        %3336 = vmatprep.subr.mxu0 0.0
        %3337 = vmatpush1.msra.mxu0 0.0
        %3338 = vmatprep.subr.mxu0 0.0
        %3339 = vmatpush1.msra.mxu0 0.0
        %3340 = vmatprep.mubr.f32.mxu0 0.0
        %3341 = vmatmul.mubr.f32.gmra.mrb[0].mxu0 %v3017
        %v3342 = vpop.f32.mrb[0].mxu0
        %v3343 = vadd.f32 %v3273, %v3342
        %v3344 = vpop.f32.mrb[0].mxu0
        %3345 = vdwg.mxu0
        %s3346 = scalar_lea.vmem %s10, 320
        %v3347 = vld [vmem:[%s3346] sm:$0xff]
        %v3348 = vld [vmem:[%s3346 + $0x8] sm:$0xff]
        %v3349 = vld [vmem:[%s3346 + $0x10] sm:$0xff]
        %v3350 = vld [vmem:[%s3346 + $0x18] sm:$0xff]
        %v3351 = vld [vmem:[%s3346 + $0x20] sm:$0xff]
        %v3352 = vld [vmem:[%s3346 + $0x28] sm:$0xff]
        %v3353 = vld [vmem:[%s3346 + $0x30] sm:$0xff]
        %v3354 = vld [vmem:[%s3346 + $0x38] sm:$0xff]
        %3355 = vmatprep.subr.mxu0 0.0
        %3356 = vmatpush1.msra.mxu0 %v3347
        %3357 = vmatprep.subr.mxu0 0.0
        %3358 = vmatpush1.msra.mxu0 %v3348
        %3359 = vmatprep.subr.mxu0 0.0
        %3360 = vmatpush1.msra.mxu0 %v3349
        %3361 = vmatprep.subr.mxu0 0.0
        %3362 = vmatpush1.msra.mxu0 %v3350
        %3363 = vmatprep.subr.mxu0 0.0
        %3364 = vmatpush1.msra.mxu0 %v3351
        %3365 = vmatprep.subr.mxu0 0.0
        %3366 = vmatpush1.msra.mxu0 %v3352
        %3367 = vmatprep.subr.mxu0 0.0
        %3368 = vmatpush1.msra.mxu0 %v3353
        %3369 = vmatprep.subr.mxu0 0.0
        %3370 = vmatpush1.msra.mxu0 %v3354
        %3371 = vmatprep.subr.mxu0 0.0
        %3372 = vmatpush1.msra.mxu0 0.0
        %3373 = vmatprep.subr.mxu0 0.0
        %3374 = vmatpush1.msra.mxu0 0.0
        %3375 = vmatprep.subr.mxu0 0.0
        %3376 = vmatpush1.msra.mxu0 0.0
        %3377 = vmatprep.subr.mxu0 0.0
        %3378 = vmatpush1.msra.mxu0 0.0
        %3379 = vmatprep.subr.mxu0 0.0
        %3380 = vmatpush1.msra.mxu0 0.0
        %3381 = vmatprep.subr.mxu0 0.0
        %3382 = vmatpush1.msra.mxu0 0.0
        %3383 = vmatprep.subr.mxu0 0.0
        %3384 = vmatpush1.msra.mxu0 0.0
        %3385 = vmatprep.subr.mxu0 0.0
        %3386 = vmatpush1.msra.mxu0 0.0
        %3387 = vmatprep.subr.mxu0 0.0
        %3388 = vmatpush1.msra.mxu0 0.0
        %3389 = vmatprep.subr.mxu0 0.0
        %3390 = vmatpush1.msra.mxu0 0.0
        %3391 = vmatprep.subr.mxu0 0.0
        %3392 = vmatpush1.msra.mxu0 0.0
        %3393 = vmatprep.subr.mxu0 0.0
        %3394 = vmatpush1.msra.mxu0 0.0
        %3395 = vmatprep.subr.mxu0 0.0
        %3396 = vmatpush1.msra.mxu0 0.0
        %3397 = vmatprep.subr.mxu0 0.0
        %3398 = vmatpush1.msra.mxu0 0.0
        %3399 = vmatprep.subr.mxu0 0.0
        %3400 = vmatpush1.msra.mxu0 0.0
        %3401 = vmatprep.subr.mxu0 0.0
        %3402 = vmatpush1.msra.mxu0 0.0
        %3403 = vmatprep.subr.mxu0 0.0
        %3404 = vmatpush1.msra.mxu0 0.0
        %3405 = vmatprep.subr.mxu0 0.0
        %3406 = vmatpush1.msra.mxu0 0.0
        %3407 = vmatprep.subr.mxu0 0.0
        %3408 = vmatpush1.msra.mxu0 0.0
        %3409 = vmatprep.subr.mxu0 0.0
        %3410 = vmatpush1.msra.mxu0 0.0
        %3411 = vmatprep.subr.mxu0 0.0
        %3412 = vmatpush1.msra.mxu0 0.0
        %3413 = vmatprep.subr.mxu0 0.0
        %3414 = vmatpush1.msra.mxu0 0.0
        %3415 = vmatprep.subr.mxu0 0.0
        %3416 = vmatpush1.msra.mxu0 0.0
        %3417 = vmatprep.subr.mxu0 0.0
        %3418 = vmatpush1.msra.mxu0 0.0
        %3419 = vmatprep.mubr.f32.mxu0 0.0
        %3420 = vmatmul.mubr.f32.gmra.mrb[0].mxu0 %v3099
        %v3421 = vpop.f32.mrb[0].mxu0
        %v3422 = vadd.f32 0.0, %v3421
        %v3423 = vpop.f32.mrb[0].mxu0
        %3424 = vdwg.mxu0
        %v3425 = vadd.f32 %v3343, %v3422
        %v3426 = vmul.f32 %v3425, %v3177
        %v3427 = vadd.f32 %v3426, %v3185
        %v3428 = vmax.f32 %v3187, %v3427
        %v3430 = vrot.slane %v3428, 1
        %v3432 = vmax.f32 %v3428, %v3430
        %v3433 = vmax.f32 %v3432, 0.0
        %v3434 = vld [vmem:[%s13] sm:$0xff]
        %v3435 = vld [vmem:[%s13 + $0x8] sm:$0xff]
        %v3436 = vld [vmem:[%s13 + $0x10] sm:$0xff]
        %v3437 = vld [vmem:[%s13 + $0x18] sm:$0xff]
        %v3438 = vld [vmem:[%s14] sm:$0x1]
        %vm3439 = vcmask 261120
        %v3441 = vsel %vm3439, %v3433, 0
        %3443 = vmatprep.subr.mxu0 0.0
        %3444 = vmatpush1.msra.mxu0 %v3434
        %3445 = vmatprep.subr.mxu0 0.0
        %3446 = vmatpush1.msra.mxu0 %v3435
        %3447 = vmatprep.subr.mxu0 0.0
        %3448 = vmatpush1.msra.mxu0 %v3436
        %3449 = vmatprep.subr.mxu0 0.0
        %3450 = vmatpush1.msra.mxu0 %v3437
        %3451 = vmatprep.subr.mxu0 0.0
        %3452 = vmatpush1.msra.mxu0 0.0
        %3453 = vmatprep.subr.mxu0 0.0
        %3454 = vmatpush1.msra.mxu0 0.0
        %3455 = vmatprep.subr.mxu0 0.0
        %3456 = vmatpush1.msra.mxu0 0.0
        %3457 = vmatprep.subr.mxu0 0.0
        %3458 = vmatpush1.msra.mxu0 0.0
        %3459 = vmatprep.subr.mxu0 0.0
        %3460 = vmatpush1.msra.mxu0 0.0
        %3461 = vmatprep.subr.mxu0 0.0
        %3462 = vmatpush1.msra.mxu0 0.0
        %3463 = vmatprep.subr.mxu0 0.0
        %3464 = vmatpush1.msra.mxu0 0.0
        %3465 = vmatprep.subr.mxu0 0.0
        %3466 = vmatpush1.msra.mxu0 0.0
        %3467 = vmatprep.subr.mxu0 0.0
        %3468 = vmatpush1.msra.mxu0 0.0
        %3469 = vmatprep.subr.mxu0 0.0
        %3470 = vmatpush1.msra.mxu0 0.0
        %3471 = vmatprep.subr.mxu0 0.0
        %3472 = vmatpush1.msra.mxu0 0.0
        %3473 = vmatprep.subr.mxu0 0.0
        %3474 = vmatpush1.msra.mxu0 0.0
        %3475 = vmatprep.subr.mxu0 0.0
        %3476 = vmatpush1.msra.mxu0 0.0
        %3477 = vmatprep.subr.mxu0 0.0
        %3478 = vmatpush1.msra.mxu0 0.0
        %3479 = vmatprep.subr.mxu0 0.0
        %3480 = vmatpush1.msra.mxu0 0.0
        %3481 = vmatprep.subr.mxu0 0.0
        %3482 = vmatpush1.msra.mxu0 0.0
        %3483 = vmatprep.subr.mxu0 0.0
        %3484 = vmatpush1.msra.mxu0 0.0
        %3485 = vmatprep.subr.mxu0 0.0
        %3486 = vmatpush1.msra.mxu0 0.0
        %3487 = vmatprep.subr.mxu0 0.0
        %3488 = vmatpush1.msra.mxu0 0.0
        %3489 = vmatprep.subr.mxu0 0.0
        %3490 = vmatpush1.msra.mxu0 0.0
        %3491 = vmatprep.subr.mxu0 0.0
        %3492 = vmatpush1.msra.mxu0 0.0
        %3493 = vmatprep.subr.mxu0 0.0
        %3494 = vmatpush1.msra.mxu0 0.0
        %3495 = vmatprep.subr.mxu0 0.0
        %3496 = vmatpush1.msra.mxu0 0.0
        %3497 = vmatprep.subr.mxu0 0.0
        %3498 = vmatpush1.msra.mxu0 0.0
        %3499 = vmatprep.subr.mxu0 0.0
        %3500 = vmatpush1.msra.mxu0 0.0
        %3501 = vmatprep.subr.mxu0 0.0
        %3502 = vmatpush1.msra.mxu0 0.0
        %3503 = vmatprep.subr.mxu0 0.0
        %3504 = vmatpush1.msra.mxu0 0.0
        %3505 = vmatprep.subr.mxu0 0.0
        %3506 = vmatpush1.msra.mxu0 0.0
        %3507 = vmatprep.mubr.f32.mxu0 0.0
        %3508 = vmatmul.mubr.f32.gmra.mrb[0].mxu0 %v3441
        %v3509 = vpop.f32.mrb[0].mxu0
        %v3510 = vadd.f32 %v3438, %v3509
        %v3511 = vpop.f32.mrb[0].mxu0
        %3512 = vdwg.mxu0
        %vm3513 = vcmask 73728
        %3514 = vst.msk [vmem:[%s516] sm:$0x1] %vm3513, %v3510
        %s3515 = sand.u32 %s359, 1
        %s3516 = scalar_lea.sflag [#allocation4], %s3515
        %s3517 = sand.u32 %s359, 1
        %s3518 = scalar_lea.vmem [#allocation7], %s3517
        // Predicated region
        $region89: #{tpu_custom_call.1} parent=79 // pred_check
          %p3519 = pneg %p369
        $region90: #{tpu_custom_call.1} parent=79 // pred_check_branch
          %3521 = sbr.rel (%p3519) target = $region92
        $region91: #{tpu_custom_call.1} parent=79 // pred_region
          %s3523 = ssub.s32 16, 16
          %3524 = vsyncadd %s3516, %s3523
          %s3525 = smul.addr %s31, 16
          %s3526 = scalar_lea.hbm %s15, %s3525
          %s3528 = sshll.u32 %s3518, 4
          %s3529 = int_to_ptr.vmem [resolvable:$true] %s3528
          %3531 = dma.vmem_to_hbm [thread:$0]  %s3529, 16, %s3526, %s3516
        $region92: #{tpu_custom_call.1} parent=79 // pred_fallthru
          _
      $region80: #{tpu_custom_call.1} parent=5 // pred_fallthru
        _
      %p3532 = scmp.le.s32.totalorder 2, %s26
      // Predicated region
      $region93: #{tpu_custom_call.1} parent=5 // pred_check
        %p3533 = pneg %p3532
      $region94: #{tpu_custom_call.1} parent=5 // pred_check_branch
        %3535 = sbr.rel (%p3533) target = $region96
      $region95: #{tpu_custom_call.1} parent=5 // pred_region
        %s3536 = ssub.s32 %s26, 2
        // Predicated region
        $region97: #{tpu_custom_call.1} parent=95 // pred_check
          %p3537 = pneg %p375
        $region98: #{tpu_custom_call.1} parent=95 // pred_check_branch
          %3539 = sbr.rel (%p3537) target = $region100
        $region99: #{tpu_custom_call.1} parent=95 // pred_region
          %s3540 = sand.u32 %s360, 1
          %s3541 = scalar_lea.sflag [#allocation4], %s3540
          %s3542 = sand.u32 %s360, 1
          %s3543 = scalar_lea.vmem [#allocation7], %s3542
          %3544 = dma.done %s3541, 16
        $region100: #{tpu_custom_call.1} parent=95 // pred_fallthru
          _
      $region96: #{tpu_custom_call.1} parent=5 // pred_fallthru
        _
    $region6: #{tpu_custom_call.1} parent=1 // loop_footer
      %s30 = sadd.s32 1, %s26
    $region7: #{tpu_custom_call.1} parent=1 // loop_footer_branch
      %25 = sbr.rel target = $region3
    $region8: #{tpu_custom_call.1} parent=1 // loop_exit
      _
    %3545 = vsyncpa [#allocation3], 1
    %s3546 = scalar_lea.sflag [#allocation3], 1
    %3547 = vsyncpa %s3546, 1
    %3548 = vsyncpa [#allocation6], 1
    %3549 = vsyncpa [#allocation4], 1
    %s3550 = scalar_lea.sflag [#allocation4], 1
    %3551 = vsyncpa %s3550, 1

</llo_original>
